<compile_context>
chip_gen: v7x
topology: tpu7x:2x2x1
jax: 0.10.0
libtpu: 0.0.40
codegen_flags: <defaults>
</compile_context>

<pallas_src>
import numpy as np
import jax
import jax.numpy as jnp
from jax.experimental import pallas as pl
from jax.experimental.pallas import tpu as pltpu

# ---- small, deterministic hyper-parameters (match module __init__ args) -----
INPUT_SIZE = 4      # input_size
HIDDEN_SIZE = 32    # hidden_size
NUM_LAYERS = 2      # num_layers
CNN_CHANNELS = 8    # cnn_channels
KERNEL_SIZE = 3     # kernel_size (odd -> symmetric 'same' padding)
BATCH = 2
SEQ_LEN = 16
B_PAD = 8           # sublane-pad the batch to a full (8,128) tile row count


def make_kernel(Bp, T, H, num_layers):
    def kernel(*refs):
        x_col_ref, mask_ref, scale_ref = refs[0], refs[1], refs[2]
        idx = 3
        layers = []
        for _ in range(num_layers):
            layers.append((refs[idx], refs[idx + 1], refs[idx + 2]))
            idx += 3
        w_fc_ref, b_fc_ref = refs[idx], refs[idx + 1]
        out_ref = refs[idx + 2]
        xproj = [refs[idx + 3], refs[idx + 4]]   # two (T*Bp, 4H) VMEM scratches

        # Layer-0 hoisted whole-sequence input projection (Conv1d folded in,
        # gate-fused bias folded in) -- one wide MXU matmul, off the recurrence.
        w_in0_ref, b0_ref, _ = layers[0]
        xproj[0][...] = (
            jnp.dot(x_col_ref[...], w_in0_ref[...],
                    preferred_element_type=jnp.float32)
            + b0_ref[...])

        acc = jnp.zeros((Bp, H), jnp.float32)
        for l in range(num_layers):
            _, _, w_hh_ref = layers[l]
            w_hh = w_hh_ref[...]                 # (H, 4H) bf16, kept in vregs
            cur = xproj[l % 2]
            last = (l == num_layers - 1)
            if not last:
                w_in_next = layers[l + 1][0][...]   # (H, 4H) f32
                b_next = layers[l + 1][1][...]      # (1, 4H) f32
                nxt = xproj[(l + 1) % 2]

            h = jnp.zeros((Bp, H), jnp.float32)
            c = jnp.zeros((Bp, H), jnp.float32)

            # Fully-unrolled recurrence: only h(bf16) @ W_hh(bf16) stays on the
            # serial chain; all slice offsets are static, all per-step loads
            # and stores are full aligned (8, 128) tiles.
            for t in range(T):
                z = (cur[pl.ds(t * Bp, Bp), :]
                     + jnp.dot(h.astype(jnp.bfloat16), w_hh,
                               preferred_element_type=jnp.float32))
                # gate order i|f|o|g (repacked in the wrapper): sigmoid only on
                # the first 3H lanes, tanh only on the g quarter.
                s = jax.nn.sigmoid(z[:, 0:3 * H])
                g = jnp.tanh(z[:, 3 * H:4 * H])
                i_g = s[:, 0:H]
                f_g = s[:, H:2 * H]
                o_g = s[:, 2 * H:3 * H]
                c = f_g * c + i_g * g
                h = o_g * jnp.tanh(c)
                # packed-sequence semantics: zero output past each length.
                # (h/c freeze is redundant: mask is a prefix and no final
                #  hidden state is returned.)
                out_t = h * mask_ref[pl.ds(t * Bp, Bp), :]
                if last:
                    acc = acc + out_t
                else:
                    # Fused next-layer input projection: lane-dense 128-wide
                    # store, off the h-dependency chain.
                    nxt[pl.ds(t * Bp, Bp), :] = (
                        jnp.dot(out_t, w_in_next,
                                preferred_element_type=jnp.float32)
                        + b_next)

        # pad_packed_sequence pads to max(lengths); torch.mean divides by it.
        pooled = acc * scale_ref[0, 0]           # SMEM scalar broadcast

        # TODO(synk): nn.Dropout(0.3) and the LSTM inter-layer dropout are
        # training-only; at inference they are identity and omitted here.

        out_ref[...] = (jnp.dot(pooled, w_fc_ref[...],
                                preferred_element_type=jnp.float32)
                        + b_fc_ref[...])
    return kernel


def parkinsons_lstm_forward(data, mask, params):
    B, T, F = data.shape
    C, _, K = params["conv_w"].shape
    H = params["lstm"][0][1].shape[1]
    L = len(params["lstm"])
    pad = (K - 1) // 2
    Bp = B_PAD

    # ---- glue: im2col for conv, batch padding, gate fusion, conv fold -------
    xp = jnp.pad(data, ((0, 0), (pad, pad), (0, 0)))                  # (B,T+K-1,F)
    cols = jnp.stack([xp[:, k:k + T, :] for k in range(K)], axis=2)   # (B,T,K,F)
    x_col = cols.transpose(1, 0, 2, 3).reshape(T, B, K * F)           # (T,B,K*F)
    x_col = jnp.pad(x_col, ((0, 0), (0, Bp - B), (0, 0)))             # pad batch
    x_col = x_col.reshape(T * Bp, K * F)                              # (T*Bp,K*F)

    w_col = params["conv_w"].transpose(2, 1, 0).reshape(K * F, C)     # (K*F, C)
    b_conv = params["conv_b"].reshape(1, C)                           # (1, C)

    lengths = jnp.sum(mask[:, :, 0], axis=1)                          # (B,) float
    inv_max_len = (1.0 / jnp.max(lengths)).reshape(1, 1)              # (1, 1)

    # Precomputed {0,1} validity slab, time-major, batch padded: (T*Bp, H).
    t_idx = jnp.arange(T, dtype=jnp.float32)[:, None]                 # (T, 1)
    valid = (t_idx < lengths[None, :]).astype(jnp.float32)            # (T, B)
    valid = jnp.pad(valid, ((0, 0), (0, Bp - B)))                     # (T, Bp)
    mask_seq = jnp.broadcast_to(valid[:, :, None],
                                (T, Bp, H)).reshape(T * Bp, H)

    # PyTorch gate row order is i|f|g|o; repack to i|f|o|g.
    perm = np.concatenate([np.arange(0, H), np.arange(H, 2 * H),
                           np.arange(3 * H, 4 * H), np.arange(2 * H, 3 * H)])
    layer_args = []
    for l, (w_ih, w_hh, b_ih, b_hh) in enumerate(params["lstm"]):
        w_ih_f = w_ih[perm].T                            # (in_dim, 4H), i|f|o|g
        w_hh_f = w_hh[perm].T.astype(jnp.bfloat16)       # (H, 4H) bf16
        b = (b_ih + b_hh)[perm].reshape(1, 4 * H)        # (1, 4H)
        if l == 0:
            w_in = w_col @ w_ih_f                        # fold Conv1d: (K*F,4H)
            b = b_conv @ w_ih_f + b
        else:
            w_in = w_ih_f                                # f32, used off-chain
        layer_args += [w_in, b, w_hh_f]

    w_fc_t = params["fc_w"].T                            # (H, 2)
    b_fc = params["fc_b"].reshape(1, 2)

    inputs = [x_col, mask_seq, inv_max_len, *layer_args, w_fc_t, b_fc]
    in_specs = [pl.BlockSpec(memory_space=pltpu.MemorySpace.VMEM)] * len(inputs)
    in_specs[2] = pl.BlockSpec(memory_space=pltpu.MemorySpace.SMEM)   # scale

    kernel = make_kernel(Bp, T, H, L)
    out = pl.pallas_call(
        kernel,
        out_shape=jax.ShapeDtypeStruct((Bp, 2), jnp.float32),
        in_specs=in_specs,
        out_specs=pl.BlockSpec(memory_space=pltpu.MemorySpace.VMEM),
        scratch_shapes=[pltpu.VMEM((T * Bp, 4 * H), jnp.float32),
                        pltpu.VMEM((T * Bp, 4 * H), jnp.float32)],
    )(*inputs)
    return out[:B]


def init_params(key):
    ks = jax.random.split(key, 16)

    def u(k, shape, scale):
        return jax.random.uniform(k, shape, jnp.float32, -scale, scale)

    s_conv = 1.0 / np.sqrt(INPUT_SIZE * KERNEL_SIZE)
    s_h = 1.0 / np.sqrt(HIDDEN_SIZE)
    params = {
        "conv_w": u(ks[0], (CNN_CHANNELS, INPUT_SIZE, KERNEL_SIZE), s_conv),
        "conv_b": u(ks[1], (CNN_CHANNELS,), s_conv),
        "lstm": [],
        "fc_w": u(ks[2], (2, HIDDEN_SIZE), s_h),
        "fc_b": u(ks[3], (2,), s_h),
    }
    i = 4
    for l in range(NUM_LAYERS):
        in_dim = CNN_CHANNELS if l == 0 else HIDDEN_SIZE
        params["lstm"].append((
            u(ks[i + 0], (4 * HIDDEN_SIZE, in_dim), s_h),       # weight_ih_l{l}
            u(ks[i + 1], (4 * HIDDEN_SIZE, HIDDEN_SIZE), s_h),  # weight_hh_l{l}
            u(ks[i + 2], (4 * HIDDEN_SIZE,), s_h),              # bias_ih_l{l}
            u(ks[i + 3], (4 * HIDDEN_SIZE,), s_h),              # bias_hh_l{l}
        ))
        i += 4
    return params


def reference_forward(data, mask, params):
    """Pure-JAX re-implementation of the PyTorch forward (eval mode, f32)."""
    B, T, F = data.shape
    C, _, K = params["conv_w"].shape
    H = HIDDEN_SIZE
    pad = (K - 1) // 2
    lengths = jnp.sum(mask, axis=1)[:, 0]                              # (B,)
    xp = jnp.pad(data, ((0, 0), (pad, pad), (0, 0)))
    cols = jnp.stack([xp[:, k:k + T, :] for k in range(K)], axis=2)    # (B,T,K,F)
    seq = jnp.einsum("btkf,cfk->btc", cols, params["conv_w"]) + params["conv_b"]

    for (w_ih, w_hh, b_ih, b_hh) in params["lstm"]:
        h = jnp.zeros((B, H), jnp.float32)
        c = jnp.zeros((B, H), jnp.float32)
        outs = []
        for t in range(T):
            xt = seq[:, t, :]
            z = xt @ w_ih.T + h @ w_hh.T + b_ih + b_hh
            i = jax.nn.sigmoid(z[:, 0:H])
            f = jax.nn.sigmoid(z[:, H:2 * H])
            g = jnp.tanh(z[:, 2 * H:3 * H])
            o = jax.nn.sigmoid(z[:, 3 * H:4 * H])
            c_new = f * c + i * g
            h_new = o * jnp.tanh(c_new)
            valid = (t < lengths)[:, None]
            h = jnp.where(valid, h_new, h)
            c = jnp.where(valid, c_new, c)
            outs.append(jnp.where(valid, h_new, 0.0))
        seq = jnp.stack(outs, axis=1)
    pooled = jnp.sum(seq, axis=1) / jnp.max(lengths)
    return pooled @ params["fc_w"].T + params["fc_b"]


if __name__ == "__main__":
    key = jax.random.PRNGKey(0)
    k_data, k_param = jax.random.split(key)
    params = init_params(k_param)

    data = jax.random.normal(k_data, (BATCH, SEQ_LEN, INPUT_SIZE), jnp.float32)
    lengths = jnp.array([SEQ_LEN, 10], dtype=jnp.int32)
    t_idx = jnp.arange(SEQ_LEN)[None, :, None]
    mask = (t_idx < lengths[:, None, None]).astype(jnp.float32)
    mask = jnp.broadcast_to(mask, (BATCH, SEQ_LEN, INPUT_SIZE))
    data = data * mask  # zero the padded region, like real padded batches

    out = parkinsons_lstm_forward(data, mask, params)
    out = jax.block_until_ready(out)

    ref = reference_forward(data, mask, params)
    np.testing.assert_allclose(np.asarray(out), np.asarray(ref),
                               rtol=1e-2, atol=1e-2)
    print("KERNEL_OK")
</pallas_src>

<mosaic_0001>
module attributes {stable_mosaic.version = 11 : i64} {
  func.func @kernel(%arg0: memref<128x12xf32, #tpu.memory_space<vmem>>, %arg1: memref<128x32xf32, #tpu.memory_space<vmem>>, %arg2: memref<1x1xf32, #tpu.memory_space<smem>>, %arg3: memref<12x128xf32, #tpu.memory_space<vmem>>, %arg4: memref<1x128xf32, #tpu.memory_space<vmem>>, %arg5: memref<32x128xbf16, #tpu.memory_space<vmem>>, %arg6: memref<32x128xf32, #tpu.memory_space<vmem>>, %arg7: memref<1x128xf32, #tpu.memory_space<vmem>>, %arg8: memref<32x128xbf16, #tpu.memory_space<vmem>>, %arg9: memref<32x2xf32, #tpu.memory_space<vmem>>, %arg10: memref<1x2xf32, #tpu.memory_space<vmem>>, %arg11: memref<8x2xf32, #tpu.memory_space<vmem>>, %arg12: memref<128x128xf32, #tpu.memory_space<vmem>>, %arg13: memref<128x128xf32, #tpu.memory_space<vmem>>) attributes {dimension_semantics = [], scalar_prefetch = 0 : i64, scratch_operands = 2 : i64, tpu.core_type = #tpu.core_type<tc>} {
    %c0 = arith.constant 0 : index
    %c0_0 = arith.constant 0 : index
    %0 = vector.load %arg0[%c0, %c0_0] : memref<128x12xf32, #tpu.memory_space<vmem>>, vector<128x12xf32>
    %c0_1 = arith.constant 0 : index
    %c0_2 = arith.constant 0 : index
    %1 = vector.load %arg3[%c0_1, %c0_2] : memref<12x128xf32, #tpu.memory_space<vmem>>, vector<12x128xf32>
    %cst = arith.constant dense<0.000000e+00> : vector<128x128xf32>
    %2 = tpu.matmul %0, %1, %cst {dimension_numbers = #tpu.dot_dimension_numbers<[1], [0], [0], [1], [0, 0, 1, 1], [], []>} : vector<128x12xf32>, vector<12x128xf32>, vector<128x128xf32> -> vector<128x128xf32>
    %c0_3 = arith.constant 0 : index
    %c0_4 = arith.constant 0 : index
    %3 = vector.load %arg4[%c0_3, %c0_4] : memref<1x128xf32, #tpu.memory_space<vmem>>, vector<1x128xf32>
    %4 = vector.broadcast %3 : vector<1x128xf32> to vector<128x128xf32>
    %5 = arith.addf %2, %4 : vector<128x128xf32>
    %c0_5 = arith.constant 0 : index
    %c0_6 = arith.constant 0 : index
    %6 = vector.load %arg12[%c0_5, %c0_6] : memref<128x128xf32, #tpu.memory_space<vmem>>, vector<128x128xf32>
    tpu.vector_store %arg12[%c0_5, %c0_6], %5 {strides = array<i32>} : memref<128x128xf32, #tpu.memory_space<vmem>>, vector<128x128xf32>,
    %cst_7 = arith.constant 0.000000e+00 : f32
    %7 = vector.broadcast %cst_7 : f32 to vector<8x32xf32>
    %c0_8 = arith.constant 0 : index
    %c0_9 = arith.constant 0 : index
    %8 = vector.load %arg5[%c0_8, %c0_9] : memref<32x128xbf16, #tpu.memory_space<vmem>>, vector<32x128xbf16>
    %c0_10 = arith.constant 0 : index
    %c0_11 = arith.constant 0 : index
    %9 = vector.load %arg6[%c0_10, %c0_11] : memref<32x128xf32, #tpu.memory_space<vmem>>, vector<32x128xf32>
    %c0_12 = arith.constant 0 : index
    %c0_13 = arith.constant 0 : index
    %10 = vector.load %arg7[%c0_12, %c0_13] : memref<1x128xf32, #tpu.memory_space<vmem>>, vector<1x128xf32>
    %cst_14 = arith.constant 0.000000e+00 : f32
    %11 = vector.broadcast %cst_14 : f32 to vector<8x32xf32>
    %cst_15 = arith.constant 0.000000e+00 : f32
    %12 = vector.broadcast %cst_15 : f32 to vector<8x32xf32>
    %c0_16 = arith.constant 0 : index
    %c0_17 = arith.constant 0 : index
    %13 = vector.load %arg12[%c0_16, %c0_17] : memref<128x128xf32, #tpu.memory_space<vmem>>, vector<8x128xf32>
    %14 = arith.truncf %11 : vector<8x32xf32> to vector<8x32xbf16>
    %cst_18 = arith.constant dense<0.000000e+00> : vector<8x128xf32>
    %15 = tpu.matmul %14, %8, %cst_18 {dimension_numbers = #tpu.dot_dimension_numbers<[1], [0], [0], [1], [0, 0, 1, 1], [], []>} : vector<8x32xbf16>, vector<32x128xbf16>, vector<8x128xf32> -> vector<8x128xf32>
    %16 = arith.addf %13, %15 : vector<8x128xf32>
    %17 = vector.extract_strided_slice %16 {offsets = [0, 0], sizes = [8, 96], strides = [1, 1]} : vector<8x128xf32> to vector<8x96xf32>
    %18 = arith.negf %17 : vector<8x96xf32>
    %19 = math.exp %18 : vector<8x96xf32>
    %cst_19 = arith.constant 1.000000e+00 : f32
    %20 = vector.broadcast %cst_19 : f32 to vector<8x96xf32>
    %21 = arith.addf %20, %19 : vector<8x96xf32>
    %22 = arith.divf %20, %21 : vector<8x96xf32>
    %23 = vector.extract_strided_slice %16 {offsets = [0, 96], sizes = [8, 32], strides = [1, 1]} : vector<8x128xf32> to vector<8x32xf32>
    %24 = math.tanh %23 : vector<8x32xf32>
    %25 = vector.extract_strided_slice %22 {offsets = [0, 0], sizes = [8, 32], strides = [1, 1]} : vector<8x96xf32> to vector<8x32xf32>
    %26 = vector.extract_strided_slice %22 {offsets = [0, 32], sizes = [8, 32], strides = [1, 1]} : vector<8x96xf32> to vector<8x32xf32>
    %27 = vector.extract_strided_slice %22 {offsets = [0, 64], sizes = [8, 32], strides = [1, 1]} : vector<8x96xf32> to vector<8x32xf32>
    %28 = arith.mulf %26, %12 : vector<8x32xf32>
    %29 = arith.mulf %25, %24 : vector<8x32xf32>
    %30 = arith.addf %28, %29 : vector<8x32xf32>
    %31 = math.tanh %30 : vector<8x32xf32>
    %32 = arith.mulf %27, %31 : vector<8x32xf32>
    %c0_20 = arith.constant 0 : index
    %c0_21 = arith.constant 0 : index
    %33 = vector.load %arg1[%c0_20, %c0_21] : memref<128x32xf32, #tpu.memory_space<vmem>>, vector<8x32xf32>
    %34 = arith.mulf %32, %33 : vector<8x32xf32>
    %cst_22 = arith.constant dense<0.000000e+00> : vector<8x128xf32>
    %35 = tpu.matmul %34, %9, %cst_22 {dimension_numbers = #tpu.dot_dimension_numbers<[1], [0], [0], [1], [0, 0, 1, 1], [], []>} : vector<8x32xf32>, vector<32x128xf32>, vector<8x128xf32> -> vector<8x128xf32>
    %36 = vector.broadcast %10 : vector<1x128xf32> to vector<8x128xf32>
    %37 = arith.addf %35, %36 : vector<8x128xf32>
    %c0_23 = arith.constant 0 : index
    %c0_24 = arith.constant 0 : index
    %38 = vector.load %arg13[%c0_23, %c0_24] : memref<128x128xf32, #tpu.memory_space<vmem>>, vector<8x128xf32>
    tpu.vector_store %arg13[%c0_23, %c0_24], %37 {strides = array<i32>} : memref<128x128xf32, #tpu.memory_space<vmem>>, vector<8x128xf32>,
    %c8 = arith.constant 8 : index
    %c0_25 = arith.constant 0 : index
    %39 = vector.load %arg12[%c8, %c0_25] : memref<128x128xf32, #tpu.memory_space<vmem>>, vector<8x128xf32>
    %40 = arith.truncf %32 : vector<8x32xf32> to vector<8x32xbf16>
    %cst_26 = arith.constant dense<0.000000e+00> : vector<8x128xf32>
    %41 = tpu.matmul %40, %8, %cst_26 {dimension_numbers = #tpu.dot_dimension_numbers<[1], [0], [0], [1], [0, 0, 1, 1], [], []>} : vector<8x32xbf16>, vector<32x128xbf16>, vector<8x128xf32> -> vector<8x128xf32>
    %42 = arith.addf %39, %41 : vector<8x128xf32>
    %43 = vector.extract_strided_slice %42 {offsets = [0, 0], sizes = [8, 96], strides = [1, 1]} : vector<8x128xf32> to vector<8x96xf32>
    %44 = arith.negf %43 : vector<8x96xf32>
    %45 = math.exp %44 : vector<8x96xf32>
    %cst_27 = arith.constant 1.000000e+00 : f32
    %46 = vector.broadcast %cst_27 : f32 to vector<8x96xf32>
    %47 = arith.addf %46, %45 : vector<8x96xf32>
    %48 = arith.divf %46, %47 : vector<8x96xf32>
    %49 = vector.extract_strided_slice %42 {offsets = [0, 96], sizes = [8, 32], strides = [1, 1]} : vector<8x128xf32> to vector<8x32xf32>
    %50 = math.tanh %49 : vector<8x32xf32>
    %51 = vector.extract_strided_slice %48 {offsets = [0, 0], sizes = [8, 32], strides = [1, 1]} : vector<8x96xf32> to vector<8x32xf32>
    %52 = vector.extract_strided_slice %48 {offsets = [0, 32], sizes = [8, 32], strides = [1, 1]} : vector<8x96xf32> to vector<8x32xf32>
    %53 = vector.extract_strided_slice %48 {offsets = [0, 64], sizes = [8, 32], strides = [1, 1]} : vector<8x96xf32> to vector<8x32xf32>
    %54 = arith.mulf %52, %30 : vector<8x32xf32>
    %55 = arith.mulf %51, %50 : vector<8x32xf32>
    %56 = arith.addf %54, %55 : vector<8x32xf32>
    %57 = math.tanh %56 : vector<8x32xf32>
    %58 = arith.mulf %53, %57 : vector<8x32xf32>
    %c8_28 = arith.constant 8 : index
    %c0_29 = arith.constant 0 : index
    %59 = vector.load %arg1[%c8_28, %c0_29] : memref<128x32xf32, #tpu.memory_space<vmem>>, vector<8x32xf32>
    %60 = arith.mulf %58, %59 : vector<8x32xf32>
    %cst_30 = arith.constant dense<0.000000e+00> : vector<8x128xf32>
    %61 = tpu.matmul %60, %9, %cst_30 {dimension_numbers = #tpu.dot_dimension_numbers<[1], [0], [0], [1], [0, 0, 1, 1], [], []>} : vector<8x32xf32>, vector<32x128xf32>, vector<8x128xf32> -> vector<8x128xf32>
    %62 = vector.broadcast %10 : vector<1x128xf32> to vector<8x128xf32>
    %63 = arith.addf %61, %62 : vector<8x128xf32>
    %c8_31 = arith.constant 8 : index
    %c0_32 = arith.constant 0 : index
    %64 = vector.load %arg13[%c8_31, %c0_32] : memref<128x128xf32, #tpu.memory_space<vmem>>, vector<8x128xf32>
    tpu.vector_store %arg13[%c8_31, %c0_32], %63 {strides = array<i32>} : memref<128x128xf32, #tpu.memory_space<vmem>>, vector<8x128xf32>,
    %c16 = arith.constant 16 : index
    %c0_33 = arith.constant 0 : index
    %65 = vector.load %arg12[%c16, %c0_33] : memref<128x128xf32, #tpu.memory_space<vmem>>, vector<8x128xf32>
    %66 = arith.truncf %58 : vector<8x32xf32> to vector<8x32xbf16>
    %cst_34 = arith.constant dense<0.000000e+00> : vector<8x128xf32>
    %67 = tpu.matmul %66, %8, %cst_34 {dimension_numbers = #tpu.dot_dimension_numbers<[1], [0], [0], [1], [0, 0, 1, 1], [], []>} : vector<8x32xbf16>, vector<32x128xbf16>, vector<8x128xf32> -> vector<8x128xf32>
    %68 = arith.addf %65, %67 : vector<8x128xf32>
    %69 = vector.extract_strided_slice %68 {offsets = [0, 0], sizes = [8, 96], strides = [1, 1]} : vector<8x128xf32> to vector<8x96xf32>
    %70 = arith.negf %69 : vector<8x96xf32>
    %71 = math.exp %70 : vector<8x96xf32>
    %cst_35 = arith.constant 1.000000e+00 : f32
    %72 = vector.broadcast %cst_35 : f32 to vector<8x96xf32>
    %73 = arith.addf %72, %71 : vector<8x96xf32>
    %74 = arith.divf %72, %73 : vector<8x96xf32>
    %75 = vector.extract_strided_slice %68 {offsets = [0, 96], sizes = [8, 32], strides = [1, 1]} : vector<8x128xf32> to vector<8x32xf32>
    %76 = math.tanh %75 : vector<8x32xf32>
    %77 = vector.extract_strided_slice %74 {offsets = [0, 0], sizes = [8, 32], strides = [1, 1]} : vector<8x96xf32> to vector<8x32xf32>
    %78 = vector.extract_strided_slice %74 {offsets = [0, 32], sizes = [8, 32], strides = [1, 1]} : vector<8x96xf32> to vector<8x32xf32>
    %79 = vector.extract_strided_slice %74 {offsets = [0, 64], sizes = [8, 32], strides = [1, 1]} : vector<8x96xf32> to vector<8x32xf32>
    %80 = arith.mulf %78, %56 : vector<8x32xf32>
    %81 = arith.mulf %77, %76 : vector<8x32xf32>
    %82 = arith.addf %80, %81 : vector<8x32xf32>
    %83 = math.tanh %82 : vector<8x32xf32>
    %84 = arith.mulf %79, %83 : vector<8x32xf32>
    %c16_36 = arith.constant 16 : index
    %c0_37 = arith.constant 0 : index
    %85 = vector.load %arg1[%c16_36, %c0_37] : memref<128x32xf32, #tpu.memory_space<vmem>>, vector<8x32xf32>
    %86 = arith.mulf %84, %85 : vector<8x32xf32>
    %cst_38 = arith.constant dense<0.000000e+00> : vector<8x128xf32>
    %87 = tpu.matmul %86, %9, %cst_38 {dimension_numbers = #tpu.dot_dimension_numbers<[1], [0], [0], [1], [0, 0, 1, 1], [], []>} : vector<8x32xf32>, vector<32x128xf32>, vector<8x128xf32> -> vector<8x128xf32>
    %88 = vector.broadcast %10 : vector<1x128xf32> to vector<8x128xf32>
    %89 = arith.addf %87, %88 : vector<8x128xf32>
    %c16_39 = arith.constant 16 : index
    %c0_40 = arith.constant 0 : index
    %90 = vector.load %arg13[%c16_39, %c0_40] : memref<128x128xf32, #tpu.memory_space<vmem>>, vector<8x128xf32>
    tpu.vector_store %arg13[%c16_39, %c0_40], %89 {strides = array<i32>} : memref<128x128xf32, #tpu.memory_space<vmem>>, vector<8x128xf32>,
    %c24 = arith.constant 24 : index
    %c0_41 = arith.constant 0 : index
    %91 = vector.load %arg12[%c24, %c0_41] : memref<128x128xf32, #tpu.memory_space<vmem>>, vector<8x128xf32>
    %92 = arith.truncf %84 : vector<8x32xf32> to vector<8x32xbf16>
    %cst_42 = arith.constant dense<0.000000e+00> : vector<8x128xf32>
    %93 = tpu.matmul %92, %8, %cst_42 {dimension_numbers = #tpu.dot_dimension_numbers<[1], [0], [0], [1], [0, 0, 1, 1], [], []>} : vector<8x32xbf16>, vector<32x128xbf16>, vector<8x128xf32> -> vector<8x128xf32>
    %94 = arith.addf %91, %93 : vector<8x128xf32>
    %95 = vector.extract_strided_slice %94 {offsets = [0, 0], sizes = [8, 96], strides = [1, 1]} : vector<8x128xf32> to vector<8x96xf32>
    %96 = arith.negf %95 : vector<8x96xf32>
    %97 = math.exp %96 : vector<8x96xf32>
    %cst_43 = arith.constant 1.000000e+00 : f32
    %98 = vector.broadcast %cst_43 : f32 to vector<8x96xf32>
    %99 = arith.addf %98, %97 : vector<8x96xf32>
    %100 = arith.divf %98, %99 : vector<8x96xf32>
    %101 = vector.extract_strided_slice %94 {offsets = [0, 96], sizes = [8, 32], strides = [1, 1]} : vector<8x128xf32> to vector<8x32xf32>
    %102 = math.tanh %101 : vector<8x32xf32>
    %103 = vector.extract_strided_slice %100 {offsets = [0, 0], sizes = [8, 32], strides = [1, 1]} : vector<8x96xf32> to vector<8x32xf32>
    %104 = vector.extract_strided_slice %100 {offsets = [0, 32], sizes = [8, 32], strides = [1, 1]} : vector<8x96xf32> to vector<8x32xf32>
    %105 = vector.extract_strided_slice %100 {offsets = [0, 64], sizes = [8, 32], strides = [1, 1]} : vector<8x96xf32> to vector<8x32xf32>
    %106 = arith.mulf %104, %82 : vector<8x32xf32>
    %107 = arith.mulf %103, %102 : vector<8x32xf32>
    %108 = arith.addf %106, %107 : vector<8x32xf32>
    %109 = math.tanh %108 : vector<8x32xf32>
    %110 = arith.mulf %105, %109 : vector<8x32xf32>
    %c24_44 = arith.constant 24 : index
    %c0_45 = arith.constant 0 : index
    %111 = vector.load %arg1[%c24_44, %c0_45] : memref<128x32xf32, #tpu.memory_space<vmem>>, vector<8x32xf32>
    %112 = arith.mulf %110, %111 : vector<8x32xf32>
    %cst_46 = arith.constant dense<0.000000e+00> : vector<8x128xf32>
    %113 = tpu.matmul %112, %9, %cst_46 {dimension_numbers = #tpu.dot_dimension_numbers<[1], [0], [0], [1], [0, 0, 1, 1], [], []>} : vector<8x32xf32>, vector<32x128xf32>, vector<8x128xf32> -> vector<8x128xf32>
    %114 = vector.broadcast %10 : vector<1x128xf32> to vector<8x128xf32>
    %115 = arith.addf %113, %114 : vector<8x128xf32>
    %c24_47 = arith.constant 24 : index
    %c0_48 = arith.constant 0 : index
    %116 = vector.load %arg13[%c24_47, %c0_48] : memref<128x128xf32, #tpu.memory_space<vmem>>, vector<8x128xf32>
    tpu.vector_store %arg13[%c24_47, %c0_48], %115 {strides = array<i32>} : memref<128x128xf32, #tpu.memory_space<vmem>>, vector<8x128xf32>,
    %c32 = arith.constant 32 : index
    %c0_49 = arith.constant 0 : index
    %117 = vector.load %arg12[%c32, %c0_49] : memref<128x128xf32, #tpu.memory_space<vmem>>, vector<8x128xf32>
    %118 = arith.truncf %110 : vector<8x32xf32> to vector<8x32xbf16>
    %cst_50 = arith.constant dense<0.000000e+00> : vector<8x128xf32>
    %119 = tpu.matmul %118, %8, %cst_50 {dimension_numbers = #tpu.dot_dimension_numbers<[1], [0], [0], [1], [0, 0, 1, 1], [], []>} : vector<8x32xbf16>, vector<32x128xbf16>, vector<8x128xf32> -> vector<8x128xf32>
    %120 = arith.addf %117, %119 : vector<8x128xf32>
    %121 = vector.extract_strided_slice %120 {offsets = [0, 0], sizes = [8, 96], strides = [1, 1]} : vector<8x128xf32> to vector<8x96xf32>
    %122 = arith.negf %121 : vector<8x96xf32>
    %123 = math.exp %122 : vector<8x96xf32>
    %cst_51 = arith.constant 1.000000e+00 : f32
    %124 = vector.broadcast %cst_51 : f32 to vector<8x96xf32>
    %125 = arith.addf %124, %123 : vector<8x96xf32>
    %126 = arith.divf %124, %125 : vector<8x96xf32>
    %127 = vector.extract_strided_slice %120 {offsets = [0, 96], sizes = [8, 32], strides = [1, 1]} : vector<8x128xf32> to vector<8x32xf32>
    %128 = math.tanh %127 : vector<8x32xf32>
    %129 = vector.extract_strided_slice %126 {offsets = [0, 0], sizes = [8, 32], strides = [1, 1]} : vector<8x96xf32> to vector<8x32xf32>
    %130 = vector.extract_strided_slice %126 {offsets = [0, 32], sizes = [8, 32], strides = [1, 1]} : vector<8x96xf32> to vector<8x32xf32>
    %131 = vector.extract_strided_slice %126 {offsets = [0, 64], sizes = [8, 32], strides = [1, 1]} : vector<8x96xf32> to vector<8x32xf32>
    %132 = arith.mulf %130, %108 : vector<8x32xf32>
    %133 = arith.mulf %129, %128 : vector<8x32xf32>
    %134 = arith.addf %132, %133 : vector<8x32xf32>
    %135 = math.tanh %134 : vector<8x32xf32>
    %136 = arith.mulf %131, %135 : vector<8x32xf32>
    %c32_52 = arith.constant 32 : index
    %c0_53 = arith.constant 0 : index
    %137 = vector.load %arg1[%c32_52, %c0_53] : memref<128x32xf32, #tpu.memory_space<vmem>>, vector<8x32xf32>
    %138 = arith.mulf %136, %137 : vector<8x32xf32>
    %cst_54 = arith.constant dense<0.000000e+00> : vector<8x128xf32>
    %139 = tpu.matmul %138, %9, %cst_54 {dimension_numbers = #tpu.dot_dimension_numbers<[1], [0], [0], [1], [0, 0, 1, 1], [], []>} : vector<8x32xf32>, vector<32x128xf32>, vector<8x128xf32> -> vector<8x128xf32>
    %140 = vector.broadcast %10 : vector<1x128xf32> to vector<8x128xf32>
    %141 = arith.addf %139, %140 : vector<8x128xf32>
    %c32_55 = arith.constant 32 : index
    %c0_56 = arith.constant 0 : index
    %142 = vector.load %arg13[%c32_55, %c0_56] : memref<128x128xf32, #tpu.memory_space<vmem>>, vector<8x128xf32>
    tpu.vector_store %arg13[%c32_55, %c0_56], %141 {strides = array<i32>} : memref<128x128xf32, #tpu.memory_space<vmem>>, vector<8x128xf32>,
    %c40 = arith.constant 40 : index
    %c0_57 = arith.constant 0 : index
    %143 = vector.load %arg12[%c40, %c0_57] : memref<128x128xf32, #tpu.memory_space<vmem>>, vector<8x128xf32>
    %144 = arith.truncf %136 : vector<8x32xf32> to vector<8x32xbf16>
    %cst_58 = arith.constant dense<0.000000e+00> : vector<8x128xf32>
    %145 = tpu.matmul %144, %8, %cst_58 {dimension_numbers = #tpu.dot_dimension_numbers<[1], [0], [0], [1], [0, 0, 1, 1], [], []>} : vector<8x32xbf16>, vector<32x128xbf16>, vector<8x128xf32> -> vector<8x128xf32>
    %146 = arith.addf %143, %145 : vector<8x128xf32>
    %147 = vector.extract_strided_slice %146 {offsets = [0, 0], sizes = [8, 96], strides = [1, 1]} : vector<8x128xf32> to vector<8x96xf32>
    %148 = arith.negf %147 : vector<8x96xf32>
    %149 = math.exp %148 : vector<8x96xf32>
    %cst_59 = arith.constant 1.000000e+00 : f32
    %150 = vector.broadcast %cst_59 : f32 to vector<8x96xf32>
    %151 = arith.addf %150, %149 : vector<8x96xf32>
    %152 = arith.divf %150, %151 : vector<8x96xf32>
    %153 = vector.extract_strided_slice %146 {offsets = [0, 96], sizes = [8, 32], strides = [1, 1]} : vector<8x128xf32> to vector<8x32xf32>
    %154 = math.tanh %153 : vector<8x32xf32>
    %155 = vector.extract_strided_slice %152 {offsets = [0, 0], sizes = [8, 32], strides = [1, 1]} : vector<8x96xf32> to vector<8x32xf32>
    %156 = vector.extract_strided_slice %152 {offsets = [0, 32], sizes = [8, 32], strides = [1, 1]} : vector<8x96xf32> to vector<8x32xf32>
    %157 = vector.extract_strided_slice %152 {offsets = [0, 64], sizes = [8, 32], strides = [1, 1]} : vector<8x96xf32> to vector<8x32xf32>
    %158 = arith.mulf %156, %134 : vector<8x32xf32>
    %159 = arith.mulf %155, %154 : vector<8x32xf32>
    %160 = arith.addf %158, %159 : vector<8x32xf32>
    %161 = math.tanh %160 : vector<8x32xf32>
    %162 = arith.mulf %157, %161 : vector<8x32xf32>
    %c40_60 = arith.constant 40 : index
    %c0_61 = arith.constant 0 : index
    %163 = vector.load %arg1[%c40_60, %c0_61] : memref<128x32xf32, #tpu.memory_space<vmem>>, vector<8x32xf32>
    %164 = arith.mulf %162, %163 : vector<8x32xf32>
    %cst_62 = arith.constant dense<0.000000e+00> : vector<8x128xf32>
    %165 = tpu.matmul %164, %9, %cst_62 {dimension_numbers = #tpu.dot_dimension_numbers<[1], [0], [0], [1], [0, 0, 1, 1], [], []>} : vector<8x32xf32>, vector<32x128xf32>, vector<8x128xf32> -> vector<8x128xf32>
    %166 = vector.broadcast %10 : vector<1x128xf32> to vector<8x128xf32>
    %167 = arith.addf %165, %166 : vector<8x128xf32>
    %c40_63 = arith.constant 40 : index
    %c0_64 = arith.constant 0 : index
    %168 = vector.load %arg13[%c40_63, %c0_64] : memref<128x128xf32, #tpu.memory_space<vmem>>, vector<8x128xf32>
    tpu.vector_store %arg13[%c40_63, %c0_64], %167 {strides = array<i32>} : memref<128x128xf32, #tpu.memory_space<vmem>>, vector<8x128xf32>,
    %c48 = arith.constant 48 : index
    %c0_65 = arith.constant 0 : index
    %169 = vector.load %arg12[%c48, %c0_65] : memref<128x128xf32, #tpu.memory_space<vmem>>, vector<8x128xf32>
    %170 = arith.truncf %162 : vector<8x32xf32> to vector<8x32xbf16>
    %cst_66 = arith.constant dense<0.000000e+00> : vector<8x128xf32>
    %171 = tpu.matmul %170, %8, %cst_66 {dimension_numbers = #tpu.dot_dimension_numbers<[1], [0], [0], [1], [0, 0, 1, 1], [], []>} : vector<8x32xbf16>, vector<32x128xbf16>, vector<8x128xf32> -> vector<8x128xf32>
    %172 = arith.addf %169, %171 : vector<8x128xf32>
    %173 = vector.extract_strided_slice %172 {offsets = [0, 0], sizes = [8, 96], strides = [1, 1]} : vector<8x128xf32> to vector<8x96xf32>
    %174 = arith.negf %173 : vector<8x96xf32>
    %175 = math.exp %174 : vector<8x96xf32>
    %cst_67 = arith.constant 1.000000e+00 : f32
    %176 = vector.broadcast %cst_67 : f32 to vector<8x96xf32>
    %177 = arith.addf %176, %175 : vector<8x96xf32>
    %178 = arith.divf %176, %177 : vector<8x96xf32>
    %179 = vector.extract_strided_slice %172 {offsets = [0, 96], sizes = [8, 32], strides = [1, 1]} : vector<8x128xf32> to vector<8x32xf32>
    %180 = math.tanh %179 : vector<8x32xf32>
    %181 = vector.extract_strided_slice %178 {offsets = [0, 0], sizes = [8, 32], strides = [1, 1]} : vector<8x96xf32> to vector<8x32xf32>
    %182 = vector.extract_strided_slice %178 {offsets = [0, 32], sizes = [8, 32], strides = [1, 1]} : vector<8x96xf32> to vector<8x32xf32>
    %183 = vector.extract_strided_slice %178 {offsets = [0, 64], sizes = [8, 32], strides = [1, 1]} : vector<8x96xf32> to vector<8x32xf32>
    %184 = arith.mulf %182, %160 : vector<8x32xf32>
    %185 = arith.mulf %181, %180 : vector<8x32xf32>
    %186 = arith.addf %184, %185 : vector<8x32xf32>
    %187 = math.tanh %186 : vector<8x32xf32>
    %188 = arith.mulf %183, %187 : vector<8x32xf32>
    %c48_68 = arith.constant 48 : index
    %c0_69 = arith.constant 0 : index
    %189 = vector.load %arg1[%c48_68, %c0_69] : memref<128x32xf32, #tpu.memory_space<vmem>>, vector<8x32xf32>
    %190 = arith.mulf %188, %189 : vector<8x32xf32>
    %cst_70 = arith.constant dense<0.000000e+00> : vector<8x128xf32>
    %191 = tpu.matmul %190, %9, %cst_70 {dimension_numbers = #tpu.dot_dimension_numbers<[1], [0], [0], [1], [0, 0, 1, 1], [], []>} : vector<8x32xf32>, vector<32x128xf32>, vector<8x128xf32> -> vector<8x128xf32>
    %192 = vector.broadcast %10 : vector<1x128xf32> to vector<8x128xf32>
    %193 = arith.addf %191, %192 : vector<8x128xf32>
    %c48_71 = arith.constant 48 : index
    %c0_72 = arith.constant 0 : index
    %194 = vector.load %arg13[%c48_71, %c0_72] : memref<128x128xf32, #tpu.memory_space<vmem>>, vector<8x128xf32>
    tpu.vector_store %arg13[%c48_71, %c0_72], %193 {strides = array<i32>} : memref<128x128xf32, #tpu.memory_space<vmem>>, vector<8x128xf32>,
    %c56 = arith.constant 56 : index
    %c0_73 = arith.constant 0 : index
    %195 = vector.load %arg12[%c56, %c0_73] : memref<128x128xf32, #tpu.memory_space<vmem>>, vector<8x128xf32>
    %196 = arith.truncf %188 : vector<8x32xf32> to vector<8x32xbf16>
    %cst_74 = arith.constant dense<0.000000e+00> : vector<8x128xf32>
    %197 = tpu.matmul %196, %8, %cst_74 {dimension_numbers = #tpu.dot_dimension_numbers<[1], [0], [0], [1], [0, 0, 1, 1], [], []>} : vector<8x32xbf16>, vector<32x128xbf16>, vector<8x128xf32> -> vector<8x128xf32>
    %198 = arith.addf %195, %197 : vector<8x128xf32>
    %199 = vector.extract_strided_slice %198 {offsets = [0, 0], sizes = [8, 96], strides = [1, 1]} : vector<8x128xf32> to vector<8x96xf32>
    %200 = arith.negf %199 : vector<8x96xf32>
    %201 = math.exp %200 : vector<8x96xf32>
    %cst_75 = arith.constant 1.000000e+00 : f32
    %202 = vector.broadcast %cst_75 : f32 to vector<8x96xf32>
    %203 = arith.addf %202, %201 : vector<8x96xf32>
    %204 = arith.divf %202, %203 : vector<8x96xf32>
    %205 = vector.extract_strided_slice %198 {offsets = [0, 96], sizes = [8, 32], strides = [1, 1]} : vector<8x128xf32> to vector<8x32xf32>
    %206 = math.tanh %205 : vector<8x32xf32>
    %207 = vector.extract_strided_slice %204 {offsets = [0, 0], sizes = [8, 32], strides = [1, 1]} : vector<8x96xf32> to vector<8x32xf32>
    %208 = vector.extract_strided_slice %204 {offsets = [0, 32], sizes = [8, 32], strides = [1, 1]} : vector<8x96xf32> to vector<8x32xf32>
    %209 = vector.extract_strided_slice %204 {offsets = [0, 64], sizes = [8, 32], strides = [1, 1]} : vector<8x96xf32> to vector<8x32xf32>
    %210 = arith.mulf %208, %186 : vector<8x32xf32>
    %211 = arith.mulf %207, %206 : vector<8x32xf32>
    %212 = arith.addf %210, %211 : vector<8x32xf32>
    %213 = math.tanh %212 : vector<8x32xf32>
    %214 = arith.mulf %209, %213 : vector<8x32xf32>
    %c56_76 = arith.constant 56 : index
    %c0_77 = arith.constant 0 : index
    %215 = vector.load %arg1[%c56_76, %c0_77] : memref<128x32xf32, #tpu.memory_space<vmem>>, vector<8x32xf32>
    %216 = arith.mulf %214, %215 : vector<8x32xf32>
    %cst_78 = arith.constant dense<0.000000e+00> : vector<8x128xf32>
    %217 = tpu.matmul %216, %9, %cst_78 {dimension_numbers = #tpu.dot_dimension_numbers<[1], [0], [0], [1], [0, 0, 1, 1], [], []>} : vector<8x32xf32>, vector<32x128xf32>, vector<8x128xf32> -> vector<8x128xf32>
    %218 = vector.broadcast %10 : vector<1x128xf32> to vector<8x128xf32>
    %219 = arith.addf %217, %218 : vector<8x128xf32>
    %c56_79 = arith.constant 56 : index
    %c0_80 = arith.constant 0 : index
    %220 = vector.load %arg13[%c56_79, %c0_80] : memref<128x128xf32, #tpu.memory_space<vmem>>, vector<8x128xf32>
    tpu.vector_store %arg13[%c56_79, %c0_80], %219 {strides = array<i32>} : memref<128x128xf32, #tpu.memory_space<vmem>>, vector<8x128xf32>,
    %c64 = arith.constant 64 : index
    %c0_81 = arith.constant 0 : index
    %221 = vector.load %arg12[%c64, %c0_81] : memref<128x128xf32, #tpu.memory_space<vmem>>, vector<8x128xf32>
    %222 = arith.truncf %214 : vector<8x32xf32> to vector<8x32xbf16>
    %cst_82 = arith.constant dense<0.000000e+00> : vector<8x128xf32>
    %223 = tpu.matmul %222, %8, %cst_82 {dimension_numbers = #tpu.dot_dimension_numbers<[1], [0], [0], [1], [0, 0, 1, 1], [], []>} : vector<8x32xbf16>, vector<32x128xbf16>, vector<8x128xf32> -> vector<8x128xf32>
    %224 = arith.addf %221, %223 : vector<8x128xf32>
    %225 = vector.extract_strided_slice %224 {offsets = [0, 0], sizes = [8, 96], strides = [1, 1]} : vector<8x128xf32> to vector<8x96xf32>
    %226 = arith.negf %225 : vector<8x96xf32>
    %227 = math.exp %226 : vector<8x96xf32>
    %cst_83 = arith.constant 1.000000e+00 : f32
    %228 = vector.broadcast %cst_83 : f32 to vector<8x96xf32>
    %229 = arith.addf %228, %227 : vector<8x96xf32>
    %230 = arith.divf %228, %229 : vector<8x96xf32>
    %231 = vector.extract_strided_slice %224 {offsets = [0, 96], sizes = [8, 32], strides = [1, 1]} : vector<8x128xf32> to vector<8x32xf32>
    %232 = math.tanh %231 : vector<8x32xf32>
    %233 = vector.extract_strided_slice %230 {offsets = [0, 0], sizes = [8, 32], strides = [1, 1]} : vector<8x96xf32> to vector<8x32xf32>
    %234 = vector.extract_strided_slice %230 {offsets = [0, 32], sizes = [8, 32], strides = [1, 1]} : vector<8x96xf32> to vector<8x32xf32>
    %235 = vector.extract_strided_slice %230 {offsets = [0, 64], sizes = [8, 32], strides = [1, 1]} : vector<8x96xf32> to vector<8x32xf32>
    %236 = arith.mulf %234, %212 : vector<8x32xf32>
    %237 = arith.mulf %233, %232 : vector<8x32xf32>
    %238 = arith.addf %236, %237 : vector<8x32xf32>
    %239 = math.tanh %238 : vector<8x32xf32>
    %240 = arith.mulf %235, %239 : vector<8x32xf32>
    %c64_84 = arith.constant 64 : index
    %c0_85 = arith.constant 0 : index
    %241 = vector.load %arg1[%c64_84, %c0_85] : memref<128x32xf32, #tpu.memory_space<vmem>>, vector<8x32xf32>
    %242 = arith.mulf %240, %241 : vector<8x32xf32>
    %cst_86 = arith.constant dense<0.000000e+00> : vector<8x128xf32>
    %243 = tpu.matmul %242, %9, %cst_86 {dimension_numbers = #tpu.dot_dimension_numbers<[1], [0], [0], [1], [0, 0, 1, 1], [], []>} : vector<8x32xf32>, vector<32x128xf32>, vector<8x128xf32> -> vector<8x128xf32>
    %244 = vector.broadcast %10 : vector<1x128xf32> to vector<8x128xf32>
    %245 = arith.addf %243, %244 : vector<8x128xf32>
    %c64_87 = arith.constant 64 : index
    %c0_88 = arith.constant 0 : index
    %246 = vector.load %arg13[%c64_87, %c0_88] : memref<128x128xf32, #tpu.memory_space<vmem>>, vector<8x128xf32>
    tpu.vector_store %arg13[%c64_87, %c0_88], %245 {strides = array<i32>} : memref<128x128xf32, #tpu.memory_space<vmem>>, vector<8x128xf32>,
    %c72 = arith.constant 72 : index
    %c0_89 = arith.constant 0 : index
    %247 = vector.load %arg12[%c72, %c0_89] : memref<128x128xf32, #tpu.memory_space<vmem>>, vector<8x128xf32>
    %248 = arith.truncf %240 : vector<8x32xf32> to vector<8x32xbf16>
    %cst_90 = arith.constant dense<0.000000e+00> : vector<8x128xf32>
    %249 = tpu.matmul %248, %8, %cst_90 {dimension_numbers = #tpu.dot_dimension_numbers<[1], [0], [0], [1], [0, 0, 1, 1], [], []>} : vector<8x32xbf16>, vector<32x128xbf16>, vector<8x128xf32> -> vector<8x128xf32>
    %250 = arith.addf %247, %249 : vector<8x128xf32>
    %251 = vector.extract_strided_slice %250 {offsets = [0, 0], sizes = [8, 96], strides = [1, 1]} : vector<8x128xf32> to vector<8x96xf32>
    %252 = arith.negf %251 : vector<8x96xf32>
    %253 = math.exp %252 : vector<8x96xf32>
    %cst_91 = arith.constant 1.000000e+00 : f32
    %254 = vector.broadcast %cst_91 : f32 to vector<8x96xf32>
    %255 = arith.addf %254, %253 : vector<8x96xf32>
    %256 = arith.divf %254, %255 : vector<8x96xf32>
    %257 = vector.extract_strided_slice %250 {offsets = [0, 96], sizes = [8, 32], strides = [1, 1]} : vector<8x128xf32> to vector<8x32xf32>
    %258 = math.tanh %257 : vector<8x32xf32>
    %259 = vector.extract_strided_slice %256 {offsets = [0, 0], sizes = [8, 32], strides = [1, 1]} : vector<8x96xf32> to vector<8x32xf32>
    %260 = vector.extract_strided_slice %256 {offsets = [0, 32], sizes = [8, 32], strides = [1, 1]} : vector<8x96xf32> to vector<8x32xf32>
    %261 = vector.extract_strided_slice %256 {offsets = [0, 64], sizes = [8, 32], strides = [1, 1]} : vector<8x96xf32> to vector<8x32xf32>
    %262 = arith.mulf %260, %238 : vector<8x32xf32>
    %263 = arith.mulf %259, %258 : vector<8x32xf32>
    %264 = arith.addf %262, %263 : vector<8x32xf32>
    %265 = math.tanh %264 : vector<8x32xf32>
    %266 = arith.mulf %261, %265 : vector<8x32xf32>
    %c72_92 = arith.constant 72 : index
    %c0_93 = arith.constant 0 : index
    %267 = vector.load %arg1[%c72_92, %c0_93] : memref<128x32xf32, #tpu.memory_space<vmem>>, vector<8x32xf32>
    %268 = arith.mulf %266, %267 : vector<8x32xf32>
    %cst_94 = arith.constant dense<0.000000e+00> : vector<8x128xf32>
    %269 = tpu.matmul %268, %9, %cst_94 {dimension_numbers = #tpu.dot_dimension_numbers<[1], [0], [0], [1], [0, 0, 1, 1], [], []>} : vector<8x32xf32>, vector<32x128xf32>, vector<8x128xf32> -> vector<8x128xf32>
    %270 = vector.broadcast %10 : vector<1x128xf32> to vector<8x128xf32>
    %271 = arith.addf %269, %270 : vector<8x128xf32>
    %c72_95 = arith.constant 72 : index
    %c0_96 = arith.constant 0 : index
    %272 = vector.load %arg13[%c72_95, %c0_96] : memref<128x128xf32, #tpu.memory_space<vmem>>, vector<8x128xf32>
    tpu.vector_store %arg13[%c72_95, %c0_96], %271 {strides = array<i32>} : memref<128x128xf32, #tpu.memory_space<vmem>>, vector<8x128xf32>,
    %c80 = arith.constant 80 : index
    %c0_97 = arith.constant 0 : index
    %273 = vector.load %arg12[%c80, %c0_97] : memref<128x128xf32, #tpu.memory_space<vmem>>, vector<8x128xf32>
    %274 = arith.truncf %266 : vector<8x32xf32> to vector<8x32xbf16>
    %cst_98 = arith.constant dense<0.000000e+00> : vector<8x128xf32>
    %275 = tpu.matmul %274, %8, %cst_98 {dimension_numbers = #tpu.dot_dimension_numbers<[1], [0], [0], [1], [0, 0, 1, 1], [], []>} : vector<8x32xbf16>, vector<32x128xbf16>, vector<8x128xf32> -> vector<8x128xf32>
    %276 = arith.addf %273, %275 : vector<8x128xf32>
    %277 = vector.extract_strided_slice %276 {offsets = [0, 0], sizes = [8, 96], strides = [1, 1]} : vector<8x128xf32> to vector<8x96xf32>
    %278 = arith.negf %277 : vector<8x96xf32>
    %279 = math.exp %278 : vector<8x96xf32>
    %cst_99 = arith.constant 1.000000e+00 : f32
    %280 = vector.broadcast %cst_99 : f32 to vector<8x96xf32>
    %281 = arith.addf %280, %279 : vector<8x96xf32>
    %282 = arith.divf %280, %281 : vector<8x96xf32>
    %283 = vector.extract_strided_slice %276 {offsets = [0, 96], sizes = [8, 32], strides = [1, 1]} : vector<8x128xf32> to vector<8x32xf32>
    %284 = math.tanh %283 : vector<8x32xf32>
    %285 = vector.extract_strided_slice %282 {offsets = [0, 0], sizes = [8, 32], strides = [1, 1]} : vector<8x96xf32> to vector<8x32xf32>
    %286 = vector.extract_strided_slice %282 {offsets = [0, 32], sizes = [8, 32], strides = [1, 1]} : vector<8x96xf32> to vector<8x32xf32>
    %287 = vector.extract_strided_slice %282 {offsets = [0, 64], sizes = [8, 32], strides = [1, 1]} : vector<8x96xf32> to vector<8x32xf32>
    %288 = arith.mulf %286, %264 : vector<8x32xf32>
    %289 = arith.mulf %285, %284 : vector<8x32xf32>
    %290 = arith.addf %288, %289 : vector<8x32xf32>
    %291 = math.tanh %290 : vector<8x32xf32>
    %292 = arith.mulf %287, %291 : vector<8x32xf32>
    %c80_100 = arith.constant 80 : index
    %c0_101 = arith.constant 0 : index
    %293 = vector.load %arg1[%c80_100, %c0_101] : memref<128x32xf32, #tpu.memory_space<vmem>>, vector<8x32xf32>
    %294 = arith.mulf %292, %293 : vector<8x32xf32>
    %cst_102 = arith.constant dense<0.000000e+00> : vector<8x128xf32>
    %295 = tpu.matmul %294, %9, %cst_102 {dimension_numbers = #tpu.dot_dimension_numbers<[1], [0], [0], [1], [0, 0, 1, 1], [], []>} : vector<8x32xf32>, vector<32x128xf32>, vector<8x128xf32> -> vector<8x128xf32>
    %296 = vector.broadcast %10 : vector<1x128xf32> to vector<8x128xf32>
    %297 = arith.addf %295, %296 : vector<8x128xf32>
    %c80_103 = arith.constant 80 : index
    %c0_104 = arith.constant 0 : index
    %298 = vector.load %arg13[%c80_103, %c0_104] : memref<128x128xf32, #tpu.memory_space<vmem>>, vector<8x128xf32>
    tpu.vector_store %arg13[%c80_103, %c0_104], %297 {strides = array<i32>} : memref<128x128xf32, #tpu.memory_space<vmem>>, vector<8x128xf32>,
    %c88 = arith.constant 88 : index
    %c0_105 = arith.constant 0 : index
    %299 = vector.load %arg12[%c88, %c0_105] : memref<128x128xf32, #tpu.memory_space<vmem>>, vector<8x128xf32>
    %300 = arith.truncf %292 : vector<8x32xf32> to vector<8x32xbf16>
    %cst_106 = arith.constant dense<0.000000e+00> : vector<8x128xf32>
    %301 = tpu.matmul %300, %8, %cst_106 {dimension_numbers = #tpu.dot_dimension_numbers<[1], [0], [0], [1], [0, 0, 1, 1], [], []>} : vector<8x32xbf16>, vector<32x128xbf16>, vector<8x128xf32> -> vector<8x128xf32>
    %302 = arith.addf %299, %301 : vector<8x128xf32>
    %303 = vector.extract_strided_slice %302 {offsets = [0, 0], sizes = [8, 96], strides = [1, 1]} : vector<8x128xf32> to vector<8x96xf32>
    %304 = arith.negf %303 : vector<8x96xf32>
    %305 = math.exp %304 : vector<8x96xf32>
    %cst_107 = arith.constant 1.000000e+00 : f32
    %306 = vector.broadcast %cst_107 : f32 to vector<8x96xf32>
    %307 = arith.addf %306, %305 : vector<8x96xf32>
    %308 = arith.divf %306, %307 : vector<8x96xf32>
    %309 = vector.extract_strided_slice %302 {offsets = [0, 96], sizes = [8, 32], strides = [1, 1]} : vector<8x128xf32> to vector<8x32xf32>
    %310 = math.tanh %309 : vector<8x32xf32>
    %311 = vector.extract_strided_slice %308 {offsets = [0, 0], sizes = [8, 32], strides = [1, 1]} : vector<8x96xf32> to vector<8x32xf32>
    %312 = vector.extract_strided_slice %308 {offsets = [0, 32], sizes = [8, 32], strides = [1, 1]} : vector<8x96xf32> to vector<8x32xf32>
    %313 = vector.extract_strided_slice %308 {offsets = [0, 64], sizes = [8, 32], strides = [1, 1]} : vector<8x96xf32> to vector<8x32xf32>
    %314 = arith.mulf %312, %290 : vector<8x32xf32>
    %315 = arith.mulf %311, %310 : vector<8x32xf32>
    %316 = arith.addf %314, %315 : vector<8x32xf32>
    %317 = math.tanh %316 : vector<8x32xf32>
    %318 = arith.mulf %313, %317 : vector<8x32xf32>
    %c88_108 = arith.constant 88 : index
    %c0_109 = arith.constant 0 : index
    %319 = vector.load %arg1[%c88_108, %c0_109] : memref<128x32xf32, #tpu.memory_space<vmem>>, vector<8x32xf32>
    %320 = arith.mulf %318, %319 : vector<8x32xf32>
    %cst_110 = arith.constant dense<0.000000e+00> : vector<8x128xf32>
    %321 = tpu.matmul %320, %9, %cst_110 {dimension_numbers = #tpu.dot_dimension_numbers<[1], [0], [0], [1], [0, 0, 1, 1], [], []>} : vector<8x32xf32>, vector<32x128xf32>, vector<8x128xf32> -> vector<8x128xf32>
    %322 = vector.broadcast %10 : vector<1x128xf32> to vector<8x128xf32>
    %323 = arith.addf %321, %322 : vector<8x128xf32>
    %c88_111 = arith.constant 88 : index
    %c0_112 = arith.constant 0 : index
    %324 = vector.load %arg13[%c88_111, %c0_112] : memref<128x128xf32, #tpu.memory_space<vmem>>, vector<8x128xf32>
    tpu.vector_store %arg13[%c88_111, %c0_112], %323 {strides = array<i32>} : memref<128x128xf32, #tpu.memory_space<vmem>>, vector<8x128xf32>,
    %c96 = arith.constant 96 : index
    %c0_113 = arith.constant 0 : index
    %325 = vector.load %arg12[%c96, %c0_113] : memref<128x128xf32, #tpu.memory_space<vmem>>, vector<8x128xf32>
    %326 = arith.truncf %318 : vector<8x32xf32> to vector<8x32xbf16>
    %cst_114 = arith.constant dense<0.000000e+00> : vector<8x128xf32>
    %327 = tpu.matmul %326, %8, %cst_114 {dimension_numbers = #tpu.dot_dimension_numbers<[1], [0], [0], [1], [0, 0, 1, 1], [], []>} : vector<8x32xbf16>, vector<32x128xbf16>, vector<8x128xf32> -> vector<8x128xf32>
    %328 = arith.addf %325, %327 : vector<8x128xf32>
    %329 = vector.extract_strided_slice %328 {offsets = [0, 0], sizes = [8, 96], strides = [1, 1]} : vector<8x128xf32> to vector<8x96xf32>
    %330 = arith.negf %329 : vector<8x96xf32>
    %331 = math.exp %330 : vector<8x96xf32>
    %cst_115 = arith.constant 1.000000e+00 : f32
    %332 = vector.broadcast %cst_115 : f32 to vector<8x96xf32>
    %333 = arith.addf %332, %331 : vector<8x96xf32>
    %334 = arith.divf %332, %333 : vector<8x96xf32>
    %335 = vector.extract_strided_slice %328 {offsets = [0, 96], sizes = [8, 32], strides = [1, 1]} : vector<8x128xf32> to vector<8x32xf32>
    %336 = math.tanh %335 : vector<8x32xf32>
    %337 = vector.extract_strided_slice %334 {offsets = [0, 0], sizes = [8, 32], strides = [1, 1]} : vector<8x96xf32> to vector<8x32xf32>
    %338 = vector.extract_strided_slice %334 {offsets = [0, 32], sizes = [8, 32], strides = [1, 1]} : vector<8x96xf32> to vector<8x32xf32>
    %339 = vector.extract_strided_slice %334 {offsets = [0, 64], sizes = [8, 32], strides = [1, 1]} : vector<8x96xf32> to vector<8x32xf32>
    %340 = arith.mulf %338, %316 : vector<8x32xf32>
    %341 = arith.mulf %337, %336 : vector<8x32xf32>
    %342 = arith.addf %340, %341 : vector<8x32xf32>
    %343 = math.tanh %342 : vector<8x32xf32>
    %344 = arith.mulf %339, %343 : vector<8x32xf32>
    %c96_116 = arith.constant 96 : index
    %c0_117 = arith.constant 0 : index
    %345 = vector.load %arg1[%c96_116, %c0_117] : memref<128x32xf32, #tpu.memory_space<vmem>>, vector<8x32xf32>
    %346 = arith.mulf %344, %345 : vector<8x32xf32>
    %cst_118 = arith.constant dense<0.000000e+00> : vector<8x128xf32>
    %347 = tpu.matmul %346, %9, %cst_118 {dimension_numbers = #tpu.dot_dimension_numbers<[1], [0], [0], [1], [0, 0, 1, 1], [], []>} : vector<8x32xf32>, vector<32x128xf32>, vector<8x128xf32> -> vector<8x128xf32>
    %348 = vector.broadcast %10 : vector<1x128xf32> to vector<8x128xf32>
    %349 = arith.addf %347, %348 : vector<8x128xf32>
    %c96_119 = arith.constant 96 : index
    %c0_120 = arith.constant 0 : index
    %350 = vector.load %arg13[%c96_119, %c0_120] : memref<128x128xf32, #tpu.memory_space<vmem>>, vector<8x128xf32>
    tpu.vector_store %arg13[%c96_119, %c0_120], %349 {strides = array<i32>} : memref<128x128xf32, #tpu.memory_space<vmem>>, vector<8x128xf32>,
    %c104 = arith.constant 104 : index
    %c0_121 = arith.constant 0 : index
    %351 = vector.load %arg12[%c104, %c0_121] : memref<128x128xf32, #tpu.memory_space<vmem>>, vector<8x128xf32>
    %352 = arith.truncf %344 : vector<8x32xf32> to vector<8x32xbf16>
    %cst_122 = arith.constant dense<0.000000e+00> : vector<8x128xf32>
    %353 = tpu.matmul %352, %8, %cst_122 {dimension_numbers = #tpu.dot_dimension_numbers<[1], [0], [0], [1], [0, 0, 1, 1], [], []>} : vector<8x32xbf16>, vector<32x128xbf16>, vector<8x128xf32> -> vector<8x128xf32>
    %354 = arith.addf %351, %353 : vector<8x128xf32>
    %355 = vector.extract_strided_slice %354 {offsets = [0, 0], sizes = [8, 96], strides = [1, 1]} : vector<8x128xf32> to vector<8x96xf32>
    %356 = arith.negf %355 : vector<8x96xf32>
    %357 = math.exp %356 : vector<8x96xf32>
    %cst_123 = arith.constant 1.000000e+00 : f32
    %358 = vector.broadcast %cst_123 : f32 to vector<8x96xf32>
    %359 = arith.addf %358, %357 : vector<8x96xf32>
    %360 = arith.divf %358, %359 : vector<8x96xf32>
    %361 = vector.extract_strided_slice %354 {offsets = [0, 96], sizes = [8, 32], strides = [1, 1]} : vector<8x128xf32> to vector<8x32xf32>
    %362 = math.tanh %361 : vector<8x32xf32>
    %363 = vector.extract_strided_slice %360 {offsets = [0, 0], sizes = [8, 32], strides = [1, 1]} : vector<8x96xf32> to vector<8x32xf32>
    %364 = vector.extract_strided_slice %360 {offsets = [0, 32], sizes = [8, 32], strides = [1, 1]} : vector<8x96xf32> to vector<8x32xf32>
    %365 = vector.extract_strided_slice %360 {offsets = [0, 64], sizes = [8, 32], strides = [1, 1]} : vector<8x96xf32> to vector<8x32xf32>
    %366 = arith.mulf %364, %342 : vector<8x32xf32>
    %367 = arith.mulf %363, %362 : vector<8x32xf32>
    %368 = arith.addf %366, %367 : vector<8x32xf32>
    %369 = math.tanh %368 : vector<8x32xf32>
    %370 = arith.mulf %365, %369 : vector<8x32xf32>
    %c104_124 = arith.constant 104 : index
    %c0_125 = arith.constant 0 : index
    %371 = vector.load %arg1[%c104_124, %c0_125] : memref<128x32xf32, #tpu.memory_space<vmem>>, vector<8x32xf32>
    %372 = arith.mulf %370, %371 : vector<8x32xf32>
    %cst_126 = arith.constant dense<0.000000e+00> : vector<8x128xf32>
    %373 = tpu.matmul %372, %9, %cst_126 {dimension_numbers = #tpu.dot_dimension_numbers<[1], [0], [0], [1], [0, 0, 1, 1], [], []>} : vector<8x32xf32>, vector<32x128xf32>, vector<8x128xf32> -> vector<8x128xf32>
    %374 = vector.broadcast %10 : vector<1x128xf32> to vector<8x128xf32>
    %375 = arith.addf %373, %374 : vector<8x128xf32>
    %c104_127 = arith.constant 104 : index
    %c0_128 = arith.constant 0 : index
    %376 = vector.load %arg13[%c104_127, %c0_128] : memref<128x128xf32, #tpu.memory_space<vmem>>, vector<8x128xf32>
    tpu.vector_store %arg13[%c104_127, %c0_128], %375 {strides = array<i32>} : memref<128x128xf32, #tpu.memory_space<vmem>>, vector<8x128xf32>,
    %c112 = arith.constant 112 : index
    %c0_129 = arith.constant 0 : index
    %377 = vector.load %arg12[%c112, %c0_129] : memref<128x128xf32, #tpu.memory_space<vmem>>, vector<8x128xf32>
    %378 = arith.truncf %370 : vector<8x32xf32> to vector<8x32xbf16>
    %cst_130 = arith.constant dense<0.000000e+00> : vector<8x128xf32>
    %379 = tpu.matmul %378, %8, %cst_130 {dimension_numbers = #tpu.dot_dimension_numbers<[1], [0], [0], [1], [0, 0, 1, 1], [], []>} : vector<8x32xbf16>, vector<32x128xbf16>, vector<8x128xf32> -> vector<8x128xf32>
    %380 = arith.addf %377, %379 : vector<8x128xf32>
    %381 = vector.extract_strided_slice %380 {offsets = [0, 0], sizes = [8, 96], strides = [1, 1]} : vector<8x128xf32> to vector<8x96xf32>
    %382 = arith.negf %381 : vector<8x96xf32>
    %383 = math.exp %382 : vector<8x96xf32>
    %cst_131 = arith.constant 1.000000e+00 : f32
    %384 = vector.broadcast %cst_131 : f32 to vector<8x96xf32>
    %385 = arith.addf %384, %383 : vector<8x96xf32>
    %386 = arith.divf %384, %385 : vector<8x96xf32>
    %387 = vector.extract_strided_slice %380 {offsets = [0, 96], sizes = [8, 32], strides = [1, 1]} : vector<8x128xf32> to vector<8x32xf32>
    %388 = math.tanh %387 : vector<8x32xf32>
    %389 = vector.extract_strided_slice %386 {offsets = [0, 0], sizes = [8, 32], strides = [1, 1]} : vector<8x96xf32> to vector<8x32xf32>
    %390 = vector.extract_strided_slice %386 {offsets = [0, 32], sizes = [8, 32], strides = [1, 1]} : vector<8x96xf32> to vector<8x32xf32>
    %391 = vector.extract_strided_slice %386 {offsets = [0, 64], sizes = [8, 32], strides = [1, 1]} : vector<8x96xf32> to vector<8x32xf32>
    %392 = arith.mulf %390, %368 : vector<8x32xf32>
    %393 = arith.mulf %389, %388 : vector<8x32xf32>
    %394 = arith.addf %392, %393 : vector<8x32xf32>
    %395 = math.tanh %394 : vector<8x32xf32>
    %396 = arith.mulf %391, %395 : vector<8x32xf32>
    %c112_132 = arith.constant 112 : index
    %c0_133 = arith.constant 0 : index
    %397 = vector.load %arg1[%c112_132, %c0_133] : memref<128x32xf32, #tpu.memory_space<vmem>>, vector<8x32xf32>
    %398 = arith.mulf %396, %397 : vector<8x32xf32>
    %cst_134 = arith.constant dense<0.000000e+00> : vector<8x128xf32>
    %399 = tpu.matmul %398, %9, %cst_134 {dimension_numbers = #tpu.dot_dimension_numbers<[1], [0], [0], [1], [0, 0, 1, 1], [], []>} : vector<8x32xf32>, vector<32x128xf32>, vector<8x128xf32> -> vector<8x128xf32>
    %400 = vector.broadcast %10 : vector<1x128xf32> to vector<8x128xf32>
    %401 = arith.addf %399, %400 : vector<8x128xf32>
    %c112_135 = arith.constant 112 : index
    %c0_136 = arith.constant 0 : index
    %402 = vector.load %arg13[%c112_135, %c0_136] : memref<128x128xf32, #tpu.memory_space<vmem>>, vector<8x128xf32>
    tpu.vector_store %arg13[%c112_135, %c0_136], %401 {strides = array<i32>} : memref<128x128xf32, #tpu.memory_space<vmem>>, vector<8x128xf32>,
    %c120 = arith.constant 120 : index
    %c0_137 = arith.constant 0 : index
    %403 = vector.load %arg12[%c120, %c0_137] : memref<128x128xf32, #tpu.memory_space<vmem>>, vector<8x128xf32>
    %404 = arith.truncf %396 : vector<8x32xf32> to vector<8x32xbf16>
    %cst_138 = arith.constant dense<0.000000e+00> : vector<8x128xf32>
    %405 = tpu.matmul %404, %8, %cst_138 {dimension_numbers = #tpu.dot_dimension_numbers<[1], [0], [0], [1], [0, 0, 1, 1], [], []>} : vector<8x32xbf16>, vector<32x128xbf16>, vector<8x128xf32> -> vector<8x128xf32>
    %406 = arith.addf %403, %405 : vector<8x128xf32>
    %407 = vector.extract_strided_slice %406 {offsets = [0, 0], sizes = [8, 96], strides = [1, 1]} : vector<8x128xf32> to vector<8x96xf32>
    %408 = arith.negf %407 : vector<8x96xf32>
    %409 = math.exp %408 : vector<8x96xf32>
    %cst_139 = arith.constant 1.000000e+00 : f32
    %410 = vector.broadcast %cst_139 : f32 to vector<8x96xf32>
    %411 = arith.addf %410, %409 : vector<8x96xf32>
    %412 = arith.divf %410, %411 : vector<8x96xf32>
    %413 = vector.extract_strided_slice %406 {offsets = [0, 96], sizes = [8, 32], strides = [1, 1]} : vector<8x128xf32> to vector<8x32xf32>
    %414 = math.tanh %413 : vector<8x32xf32>
    %415 = vector.extract_strided_slice %412 {offsets = [0, 0], sizes = [8, 32], strides = [1, 1]} : vector<8x96xf32> to vector<8x32xf32>
    %416 = vector.extract_strided_slice %412 {offsets = [0, 32], sizes = [8, 32], strides = [1, 1]} : vector<8x96xf32> to vector<8x32xf32>
    %417 = vector.extract_strided_slice %412 {offsets = [0, 64], sizes = [8, 32], strides = [1, 1]} : vector<8x96xf32> to vector<8x32xf32>
    %418 = arith.mulf %416, %394 : vector<8x32xf32>
    %419 = arith.mulf %415, %414 : vector<8x32xf32>
    %420 = arith.addf %418, %419 : vector<8x32xf32>
    %421 = math.tanh %420 : vector<8x32xf32>
    %422 = arith.mulf %417, %421 : vector<8x32xf32>
    %c120_140 = arith.constant 120 : index
    %c0_141 = arith.constant 0 : index
    %423 = vector.load %arg1[%c120_140, %c0_141] : memref<128x32xf32, #tpu.memory_space<vmem>>, vector<8x32xf32>
    %424 = arith.mulf %422, %423 : vector<8x32xf32>
    %cst_142 = arith.constant dense<0.000000e+00> : vector<8x128xf32>
    %425 = tpu.matmul %424, %9, %cst_142 {dimension_numbers = #tpu.dot_dimension_numbers<[1], [0], [0], [1], [0, 0, 1, 1], [], []>} : vector<8x32xf32>, vector<32x128xf32>, vector<8x128xf32> -> vector<8x128xf32>
    %426 = vector.broadcast %10 : vector<1x128xf32> to vector<8x128xf32>
    %427 = arith.addf %425, %426 : vector<8x128xf32>
    %c120_143 = arith.constant 120 : index
    %c0_144 = arith.constant 0 : index
    %428 = vector.load %arg13[%c120_143, %c0_144] : memref<128x128xf32, #tpu.memory_space<vmem>>, vector<8x128xf32>
    tpu.vector_store %arg13[%c120_143, %c0_144], %427 {strides = array<i32>} : memref<128x128xf32, #tpu.memory_space<vmem>>, vector<8x128xf32>,
    %c0_145 = arith.constant 0 : index
    %c0_146 = arith.constant 0 : index
    %429 = vector.load %arg8[%c0_145, %c0_146] : memref<32x128xbf16, #tpu.memory_space<vmem>>, vector<32x128xbf16>
    %cst_147 = arith.constant 0.000000e+00 : f32
    %430 = vector.broadcast %cst_147 : f32 to vector<8x32xf32>
    %cst_148 = arith.constant 0.000000e+00 : f32
    %431 = vector.broadcast %cst_148 : f32 to vector<8x32xf32>
    %c0_149 = arith.constant 0 : index
    %c0_150 = arith.constant 0 : index
    %432 = vector.load %arg13[%c0_149, %c0_150] : memref<128x128xf32, #tpu.memory_space<vmem>>, vector<8x128xf32>
    %433 = arith.truncf %430 : vector<8x32xf32> to vector<8x32xbf16>
    %cst_151 = arith.constant dense<0.000000e+00> : vector<8x128xf32>
    %434 = tpu.matmul %433, %429, %cst_151 {dimension_numbers = #tpu.dot_dimension_numbers<[1], [0], [0], [1], [0, 0, 1, 1], [], []>} : vector<8x32xbf16>, vector<32x128xbf16>, vector<8x128xf32> -> vector<8x128xf32>
    %435 = arith.addf %432, %434 : vector<8x128xf32>
    %436 = vector.extract_strided_slice %435 {offsets = [0, 0], sizes = [8, 96], strides = [1, 1]} : vector<8x128xf32> to vector<8x96xf32>
    %437 = arith.negf %436 : vector<8x96xf32>
    %438 = math.exp %437 : vector<8x96xf32>
    %cst_152 = arith.constant 1.000000e+00 : f32
    %439 = vector.broadcast %cst_152 : f32 to vector<8x96xf32>
    %440 = arith.addf %439, %438 : vector<8x96xf32>
    %441 = arith.divf %439, %440 : vector<8x96xf32>
    %442 = vector.extract_strided_slice %435 {offsets = [0, 96], sizes = [8, 32], strides = [1, 1]} : vector<8x128xf32> to vector<8x32xf32>
    %443 = math.tanh %442 : vector<8x32xf32>
    %444 = vector.extract_strided_slice %441 {offsets = [0, 0], sizes = [8, 32], strides = [1, 1]} : vector<8x96xf32> to vector<8x32xf32>
    %445 = vector.extract_strided_slice %441 {offsets = [0, 32], sizes = [8, 32], strides = [1, 1]} : vector<8x96xf32> to vector<8x32xf32>
    %446 = vector.extract_strided_slice %441 {offsets = [0, 64], sizes = [8, 32], strides = [1, 1]} : vector<8x96xf32> to vector<8x32xf32>
    %447 = arith.mulf %445, %431 : vector<8x32xf32>
    %448 = arith.mulf %444, %443 : vector<8x32xf32>
    %449 = arith.addf %447, %448 : vector<8x32xf32>
    %450 = math.tanh %449 : vector<8x32xf32>
    %451 = arith.mulf %446, %450 : vector<8x32xf32>
    %c0_153 = arith.constant 0 : index
    %c0_154 = arith.constant 0 : index
    %452 = vector.load %arg1[%c0_153, %c0_154] : memref<128x32xf32, #tpu.memory_space<vmem>>, vector<8x32xf32>
    %453 = arith.mulf %451, %452 : vector<8x32xf32>
    %454 = arith.addf %7, %453 : vector<8x32xf32>
    %c8_155 = arith.constant 8 : index
    %c0_156 = arith.constant 0 : index
    %455 = vector.load %arg13[%c8_155, %c0_156] : memref<128x128xf32, #tpu.memory_space<vmem>>, vector<8x128xf32>
    %456 = arith.truncf %451 : vector<8x32xf32> to vector<8x32xbf16>
    %cst_157 = arith.constant dense<0.000000e+00> : vector<8x128xf32>
    %457 = tpu.matmul %456, %429, %cst_157 {dimension_numbers = #tpu.dot_dimension_numbers<[1], [0], [0], [1], [0, 0, 1, 1], [], []>} : vector<8x32xbf16>, vector<32x128xbf16>, vector<8x128xf32> -> vector<8x128xf32>
    %458 = arith.addf %455, %457 : vector<8x128xf32>
    %459 = vector.extract_strided_slice %458 {offsets = [0, 0], sizes = [8, 96], strides = [1, 1]} : vector<8x128xf32> to vector<8x96xf32>
    %460 = arith.negf %459 : vector<8x96xf32>
    %461 = math.exp %460 : vector<8x96xf32>
    %cst_158 = arith.constant 1.000000e+00 : f32
    %462 = vector.broadcast %cst_158 : f32 to vector<8x96xf32>
    %463 = arith.addf %462, %461 : vector<8x96xf32>
    %464 = arith.divf %462, %463 : vector<8x96xf32>
    %465 = vector.extract_strided_slice %458 {offsets = [0, 96], sizes = [8, 32], strides = [1, 1]} : vector<8x128xf32> to vector<8x32xf32>
    %466 = math.tanh %465 : vector<8x32xf32>
    %467 = vector.extract_strided_slice %464 {offsets = [0, 0], sizes = [8, 32], strides = [1, 1]} : vector<8x96xf32> to vector<8x32xf32>
    %468 = vector.extract_strided_slice %464 {offsets = [0, 32], sizes = [8, 32], strides = [1, 1]} : vector<8x96xf32> to vector<8x32xf32>
    %469 = vector.extract_strided_slice %464 {offsets = [0, 64], sizes = [8, 32], strides = [1, 1]} : vector<8x96xf32> to vector<8x32xf32>
    %470 = arith.mulf %468, %449 : vector<8x32xf32>
    %471 = arith.mulf %467, %466 : vector<8x32xf32>
    %472 = arith.addf %470, %471 : vector<8x32xf32>
    %473 = math.tanh %472 : vector<8x32xf32>
    %474 = arith.mulf %469, %473 : vector<8x32xf32>
    %c8_159 = arith.constant 8 : index
    %c0_160 = arith.constant 0 : index
    %475 = vector.load %arg1[%c8_159, %c0_160] : memref<128x32xf32, #tpu.memory_space<vmem>>, vector<8x32xf32>
    %476 = arith.mulf %474, %475 : vector<8x32xf32>
    %477 = arith.addf %454, %476 : vector<8x32xf32>
    %c16_161 = arith.constant 16 : index
    %c0_162 = arith.constant 0 : index
    %478 = vector.load %arg13[%c16_161, %c0_162] : memref<128x128xf32, #tpu.memory_space<vmem>>, vector<8x128xf32>
    %479 = arith.truncf %474 : vector<8x32xf32> to vector<8x32xbf16>
    %cst_163 = arith.constant dense<0.000000e+00> : vector<8x128xf32>
    %480 = tpu.matmul %479, %429, %cst_163 {dimension_numbers = #tpu.dot_dimension_numbers<[1], [0], [0], [1], [0, 0, 1, 1], [], []>} : vector<8x32xbf16>, vector<32x128xbf16>, vector<8x128xf32> -> vector<8x128xf32>
    %481 = arith.addf %478, %480 : vector<8x128xf32>
    %482 = vector.extract_strided_slice %481 {offsets = [0, 0], sizes = [8, 96], strides = [1, 1]} : vector<8x128xf32> to vector<8x96xf32>
    %483 = arith.negf %482 : vector<8x96xf32>
    %484 = math.exp %483 : vector<8x96xf32>
    %cst_164 = arith.constant 1.000000e+00 : f32
    %485 = vector.broadcast %cst_164 : f32 to vector<8x96xf32>
    %486 = arith.addf %485, %484 : vector<8x96xf32>
    %487 = arith.divf %485, %486 : vector<8x96xf32>
    %488 = vector.extract_strided_slice %481 {offsets = [0, 96], sizes = [8, 32], strides = [1, 1]} : vector<8x128xf32> to vector<8x32xf32>
    %489 = math.tanh %488 : vector<8x32xf32>
    %490 = vector.extract_strided_slice %487 {offsets = [0, 0], sizes = [8, 32], strides = [1, 1]} : vector<8x96xf32> to vector<8x32xf32>
    %491 = vector.extract_strided_slice %487 {offsets = [0, 32], sizes = [8, 32], strides = [1, 1]} : vector<8x96xf32> to vector<8x32xf32>
    %492 = vector.extract_strided_slice %487 {offsets = [0, 64], sizes = [8, 32], strides = [1, 1]} : vector<8x96xf32> to vector<8x32xf32>
    %493 = arith.mulf %491, %472 : vector<8x32xf32>
    %494 = arith.mulf %490, %489 : vector<8x32xf32>
    %495 = arith.addf %493, %494 : vector<8x32xf32>
    %496 = math.tanh %495 : vector<8x32xf32>
    %497 = arith.mulf %492, %496 : vector<8x32xf32>
    %c16_165 = arith.constant 16 : index
    %c0_166 = arith.constant 0 : index
    %498 = vector.load %arg1[%c16_165, %c0_166] : memref<128x32xf32, #tpu.memory_space<vmem>>, vector<8x32xf32>
    %499 = arith.mulf %497, %498 : vector<8x32xf32>
    %500 = arith.addf %477, %499 : vector<8x32xf32>
    %c24_167 = arith.constant 24 : index
    %c0_168 = arith.constant 0 : index
    %501 = vector.load %arg13[%c24_167, %c0_168] : memref<128x128xf32, #tpu.memory_space<vmem>>, vector<8x128xf32>
    %502 = arith.truncf %497 : vector<8x32xf32> to vector<8x32xbf16>
    %cst_169 = arith.constant dense<0.000000e+00> : vector<8x128xf32>
    %503 = tpu.matmul %502, %429, %cst_169 {dimension_numbers = #tpu.dot_dimension_numbers<[1], [0], [0], [1], [0, 0, 1, 1], [], []>} : vector<8x32xbf16>, vector<32x128xbf16>, vector<8x128xf32> -> vector<8x128xf32>
    %504 = arith.addf %501, %503 : vector<8x128xf32>
    %505 = vector.extract_strided_slice %504 {offsets = [0, 0], sizes = [8, 96], strides = [1, 1]} : vector<8x128xf32> to vector<8x96xf32>
    %506 = arith.negf %505 : vector<8x96xf32>
    %507 = math.exp %506 : vector<8x96xf32>
    %cst_170 = arith.constant 1.000000e+00 : f32
    %508 = vector.broadcast %cst_170 : f32 to vector<8x96xf32>
    %509 = arith.addf %508, %507 : vector<8x96xf32>
    %510 = arith.divf %508, %509 : vector<8x96xf32>
    %511 = vector.extract_strided_slice %504 {offsets = [0, 96], sizes = [8, 32], strides = [1, 1]} : vector<8x128xf32> to vector<8x32xf32>
    %512 = math.tanh %511 : vector<8x32xf32>
    %513 = vector.extract_strided_slice %510 {offsets = [0, 0], sizes = [8, 32], strides = [1, 1]} : vector<8x96xf32> to vector<8x32xf32>
    %514 = vector.extract_strided_slice %510 {offsets = [0, 32], sizes = [8, 32], strides = [1, 1]} : vector<8x96xf32> to vector<8x32xf32>
    %515 = vector.extract_strided_slice %510 {offsets = [0, 64], sizes = [8, 32], strides = [1, 1]} : vector<8x96xf32> to vector<8x32xf32>
    %516 = arith.mulf %514, %495 : vector<8x32xf32>
    %517 = arith.mulf %513, %512 : vector<8x32xf32>
    %518 = arith.addf %516, %517 : vector<8x32xf32>
    %519 = math.tanh %518 : vector<8x32xf32>
    %520 = arith.mulf %515, %519 : vector<8x32xf32>
    %c24_171 = arith.constant 24 : index
    %c0_172 = arith.constant 0 : index
    %521 = vector.load %arg1[%c24_171, %c0_172] : memref<128x32xf32, #tpu.memory_space<vmem>>, vector<8x32xf32>
    %522 = arith.mulf %520, %521 : vector<8x32xf32>
    %523 = arith.addf %500, %522 : vector<8x32xf32>
    %c32_173 = arith.constant 32 : index
    %c0_174 = arith.constant 0 : index
    %524 = vector.load %arg13[%c32_173, %c0_174] : memref<128x128xf32, #tpu.memory_space<vmem>>, vector<8x128xf32>
    %525 = arith.truncf %520 : vector<8x32xf32> to vector<8x32xbf16>
    %cst_175 = arith.constant dense<0.000000e+00> : vector<8x128xf32>
    %526 = tpu.matmul %525, %429, %cst_175 {dimension_numbers = #tpu.dot_dimension_numbers<[1], [0], [0], [1], [0, 0, 1, 1], [], []>} : vector<8x32xbf16>, vector<32x128xbf16>, vector<8x128xf32> -> vector<8x128xf32>
    %527 = arith.addf %524, %526 : vector<8x128xf32>
    %528 = vector.extract_strided_slice %527 {offsets = [0, 0], sizes = [8, 96], strides = [1, 1]} : vector<8x128xf32> to vector<8x96xf32>
    %529 = arith.negf %528 : vector<8x96xf32>
    %530 = math.exp %529 : vector<8x96xf32>
    %cst_176 = arith.constant 1.000000e+00 : f32
    %531 = vector.broadcast %cst_176 : f32 to vector<8x96xf32>
    %532 = arith.addf %531, %530 : vector<8x96xf32>
    %533 = arith.divf %531, %532 : vector<8x96xf32>
    %534 = vector.extract_strided_slice %527 {offsets = [0, 96], sizes = [8, 32], strides = [1, 1]} : vector<8x128xf32> to vector<8x32xf32>
    %535 = math.tanh %534 : vector<8x32xf32>
    %536 = vector.extract_strided_slice %533 {offsets = [0, 0], sizes = [8, 32], strides = [1, 1]} : vector<8x96xf32> to vector<8x32xf32>
    %537 = vector.extract_strided_slice %533 {offsets = [0, 32], sizes = [8, 32], strides = [1, 1]} : vector<8x96xf32> to vector<8x32xf32>
    %538 = vector.extract_strided_slice %533 {offsets = [0, 64], sizes = [8, 32], strides = [1, 1]} : vector<8x96xf32> to vector<8x32xf32>
    %539 = arith.mulf %537, %518 : vector<8x32xf32>
    %540 = arith.mulf %536, %535 : vector<8x32xf32>
    %541 = arith.addf %539, %540 : vector<8x32xf32>
    %542 = math.tanh %541 : vector<8x32xf32>
    %543 = arith.mulf %538, %542 : vector<8x32xf32>
    %c32_177 = arith.constant 32 : index
    %c0_178 = arith.constant 0 : index
    %544 = vector.load %arg1[%c32_177, %c0_178] : memref<128x32xf32, #tpu.memory_space<vmem>>, vector<8x32xf32>
    %545 = arith.mulf %543, %544 : vector<8x32xf32>
    %546 = arith.addf %523, %545 : vector<8x32xf32>
    %c40_179 = arith.constant 40 : index
    %c0_180 = arith.constant 0 : index
    %547 = vector.load %arg13[%c40_179, %c0_180] : memref<128x128xf32, #tpu.memory_space<vmem>>, vector<8x128xf32>
    %548 = arith.truncf %543 : vector<8x32xf32> to vector<8x32xbf16>
    %cst_181 = arith.constant dense<0.000000e+00> : vector<8x128xf32>
    %549 = tpu.matmul %548, %429, %cst_181 {dimension_numbers = #tpu.dot_dimension_numbers<[1], [0], [0], [1], [0, 0, 1, 1], [], []>} : vector<8x32xbf16>, vector<32x128xbf16>, vector<8x128xf32> -> vector<8x128xf32>
    %550 = arith.addf %547, %549 : vector<8x128xf32>
    %551 = vector.extract_strided_slice %550 {offsets = [0, 0], sizes = [8, 96], strides = [1, 1]} : vector<8x128xf32> to vector<8x96xf32>
    %552 = arith.negf %551 : vector<8x96xf32>
    %553 = math.exp %552 : vector<8x96xf32>
    %cst_182 = arith.constant 1.000000e+00 : f32
    %554 = vector.broadcast %cst_182 : f32 to vector<8x96xf32>
    %555 = arith.addf %554, %553 : vector<8x96xf32>
    %556 = arith.divf %554, %555 : vector<8x96xf32>
    %557 = vector.extract_strided_slice %550 {offsets = [0, 96], sizes = [8, 32], strides = [1, 1]} : vector<8x128xf32> to vector<8x32xf32>
    %558 = math.tanh %557 : vector<8x32xf32>
    %559 = vector.extract_strided_slice %556 {offsets = [0, 0], sizes = [8, 32], strides = [1, 1]} : vector<8x96xf32> to vector<8x32xf32>
    %560 = vector.extract_strided_slice %556 {offsets = [0, 32], sizes = [8, 32], strides = [1, 1]} : vector<8x96xf32> to vector<8x32xf32>
    %561 = vector.extract_strided_slice %556 {offsets = [0, 64], sizes = [8, 32], strides = [1, 1]} : vector<8x96xf32> to vector<8x32xf32>
    %562 = arith.mulf %560, %541 : vector<8x32xf32>
    %563 = arith.mulf %559, %558 : vector<8x32xf32>
    %564 = arith.addf %562, %563 : vector<8x32xf32>
    %565 = math.tanh %564 : vector<8x32xf32>
    %566 = arith.mulf %561, %565 : vector<8x32xf32>
    %c40_183 = arith.constant 40 : index
    %c0_184 = arith.constant 0 : index
    %567 = vector.load %arg1[%c40_183, %c0_184] : memref<128x32xf32, #tpu.memory_space<vmem>>, vector<8x32xf32>
    %568 = arith.mulf %566, %567 : vector<8x32xf32>
    %569 = arith.addf %546, %568 : vector<8x32xf32>
    %c48_185 = arith.constant 48 : index
    %c0_186 = arith.constant 0 : index
    %570 = vector.load %arg13[%c48_185, %c0_186] : memref<128x128xf32, #tpu.memory_space<vmem>>, vector<8x128xf32>
    %571 = arith.truncf %566 : vector<8x32xf32> to vector<8x32xbf16>
    %cst_187 = arith.constant dense<0.000000e+00> : vector<8x128xf32>
    %572 = tpu.matmul %571, %429, %cst_187 {dimension_numbers = #tpu.dot_dimension_numbers<[1], [0], [0], [1], [0, 0, 1, 1], [], []>} : vector<8x32xbf16>, vector<32x128xbf16>, vector<8x128xf32> -> vector<8x128xf32>
    %573 = arith.addf %570, %572 : vector<8x128xf32>
    %574 = vector.extract_strided_slice %573 {offsets = [0, 0], sizes = [8, 96], strides = [1, 1]} : vector<8x128xf32> to vector<8x96xf32>
    %575 = arith.negf %574 : vector<8x96xf32>
    %576 = math.exp %575 : vector<8x96xf32>
    %cst_188 = arith.constant 1.000000e+00 : f32
    %577 = vector.broadcast %cst_188 : f32 to vector<8x96xf32>
    %578 = arith.addf %577, %576 : vector<8x96xf32>
    %579 = arith.divf %577, %578 : vector<8x96xf32>
    %580 = vector.extract_strided_slice %573 {offsets = [0, 96], sizes = [8, 32], strides = [1, 1]} : vector<8x128xf32> to vector<8x32xf32>
    %581 = math.tanh %580 : vector<8x32xf32>
    %582 = vector.extract_strided_slice %579 {offsets = [0, 0], sizes = [8, 32], strides = [1, 1]} : vector<8x96xf32> to vector<8x32xf32>
    %583 = vector.extract_strided_slice %579 {offsets = [0, 32], sizes = [8, 32], strides = [1, 1]} : vector<8x96xf32> to vector<8x32xf32>
    %584 = vector.extract_strided_slice %579 {offsets = [0, 64], sizes = [8, 32], strides = [1, 1]} : vector<8x96xf32> to vector<8x32xf32>
    %585 = arith.mulf %583, %564 : vector<8x32xf32>
    %586 = arith.mulf %582, %581 : vector<8x32xf32>
    %587 = arith.addf %585, %586 : vector<8x32xf32>
    %588 = math.tanh %587 : vector<8x32xf32>
    %589 = arith.mulf %584, %588 : vector<8x32xf32>
    %c48_189 = arith.constant 48 : index
    %c0_190 = arith.constant 0 : index
    %590 = vector.load %arg1[%c48_189, %c0_190] : memref<128x32xf32, #tpu.memory_space<vmem>>, vector<8x32xf32>
    %591 = arith.mulf %589, %590 : vector<8x32xf32>
    %592 = arith.addf %569, %591 : vector<8x32xf32>
    %c56_191 = arith.constant 56 : index
    %c0_192 = arith.constant 0 : index
    %593 = vector.load %arg13[%c56_191, %c0_192] : memref<128x128xf32, #tpu.memory_space<vmem>>, vector<8x128xf32>
    %594 = arith.truncf %589 : vector<8x32xf32> to vector<8x32xbf16>
    %cst_193 = arith.constant dense<0.000000e+00> : vector<8x128xf32>
    %595 = tpu.matmul %594, %429, %cst_193 {dimension_numbers = #tpu.dot_dimension_numbers<[1], [0], [0], [1], [0, 0, 1, 1], [], []>} : vector<8x32xbf16>, vector<32x128xbf16>, vector<8x128xf32> -> vector<8x128xf32>
    %596 = arith.addf %593, %595 : vector<8x128xf32>
    %597 = vector.extract_strided_slice %596 {offsets = [0, 0], sizes = [8, 96], strides = [1, 1]} : vector<8x128xf32> to vector<8x96xf32>
    %598 = arith.negf %597 : vector<8x96xf32>
    %599 = math.exp %598 : vector<8x96xf32>
    %cst_194 = arith.constant 1.000000e+00 : f32
    %600 = vector.broadcast %cst_194 : f32 to vector<8x96xf32>
    %601 = arith.addf %600, %599 : vector<8x96xf32>
    %602 = arith.divf %600, %601 : vector<8x96xf32>
    %603 = vector.extract_strided_slice %596 {offsets = [0, 96], sizes = [8, 32], strides = [1, 1]} : vector<8x128xf32> to vector<8x32xf32>
    %604 = math.tanh %603 : vector<8x32xf32>
    %605 = vector.extract_strided_slice %602 {offsets = [0, 0], sizes = [8, 32], strides = [1, 1]} : vector<8x96xf32> to vector<8x32xf32>
    %606 = vector.extract_strided_slice %602 {offsets = [0, 32], sizes = [8, 32], strides = [1, 1]} : vector<8x96xf32> to vector<8x32xf32>
    %607 = vector.extract_strided_slice %602 {offsets = [0, 64], sizes = [8, 32], strides = [1, 1]} : vector<8x96xf32> to vector<8x32xf32>
    %608 = arith.mulf %606, %587 : vector<8x32xf32>
    %609 = arith.mulf %605, %604 : vector<8x32xf32>
    %610 = arith.addf %608, %609 : vector<8x32xf32>
    %611 = math.tanh %610 : vector<8x32xf32>
    %612 = arith.mulf %607, %611 : vector<8x32xf32>
    %c56_195 = arith.constant 56 : index
    %c0_196 = arith.constant 0 : index
    %613 = vector.load %arg1[%c56_195, %c0_196] : memref<128x32xf32, #tpu.memory_space<vmem>>, vector<8x32xf32>
    %614 = arith.mulf %612, %613 : vector<8x32xf32>
    %615 = arith.addf %592, %614 : vector<8x32xf32>
    %c64_197 = arith.constant 64 : index
    %c0_198 = arith.constant 0 : index
    %616 = vector.load %arg13[%c64_197, %c0_198] : memref<128x128xf32, #tpu.memory_space<vmem>>, vector<8x128xf32>
    %617 = arith.truncf %612 : vector<8x32xf32> to vector<8x32xbf16>
    %cst_199 = arith.constant dense<0.000000e+00> : vector<8x128xf32>
    %618 = tpu.matmul %617, %429, %cst_199 {dimension_numbers = #tpu.dot_dimension_numbers<[1], [0], [0], [1], [0, 0, 1, 1], [], []>} : vector<8x32xbf16>, vector<32x128xbf16>, vector<8x128xf32> -> vector<8x128xf32>
    %619 = arith.addf %616, %618 : vector<8x128xf32>
    %620 = vector.extract_strided_slice %619 {offsets = [0, 0], sizes = [8, 96], strides = [1, 1]} : vector<8x128xf32> to vector<8x96xf32>
    %621 = arith.negf %620 : vector<8x96xf32>
    %622 = math.exp %621 : vector<8x96xf32>
    %cst_200 = arith.constant 1.000000e+00 : f32
    %623 = vector.broadcast %cst_200 : f32 to vector<8x96xf32>
    %624 = arith.addf %623, %622 : vector<8x96xf32>
    %625 = arith.divf %623, %624 : vector<8x96xf32>
    %626 = vector.extract_strided_slice %619 {offsets = [0, 96], sizes = [8, 32], strides = [1, 1]} : vector<8x128xf32> to vector<8x32xf32>
    %627 = math.tanh %626 : vector<8x32xf32>
    %628 = vector.extract_strided_slice %625 {offsets = [0, 0], sizes = [8, 32], strides = [1, 1]} : vector<8x96xf32> to vector<8x32xf32>
    %629 = vector.extract_strided_slice %625 {offsets = [0, 32], sizes = [8, 32], strides = [1, 1]} : vector<8x96xf32> to vector<8x32xf32>
    %630 = vector.extract_strided_slice %625 {offsets = [0, 64], sizes = [8, 32], strides = [1, 1]} : vector<8x96xf32> to vector<8x32xf32>
    %631 = arith.mulf %629, %610 : vector<8x32xf32>
    %632 = arith.mulf %628, %627 : vector<8x32xf32>
    %633 = arith.addf %631, %632 : vector<8x32xf32>
    %634 = math.tanh %633 : vector<8x32xf32>
    %635 = arith.mulf %630, %634 : vector<8x32xf32>
    %c64_201 = arith.constant 64 : index
    %c0_202 = arith.constant 0 : index
    %636 = vector.load %arg1[%c64_201, %c0_202] : memref<128x32xf32, #tpu.memory_space<vmem>>, vector<8x32xf32>
    %637 = arith.mulf %635, %636 : vector<8x32xf32>
    %638 = arith.addf %615, %637 : vector<8x32xf32>
    %c72_203 = arith.constant 72 : index
    %c0_204 = arith.constant 0 : index
    %639 = vector.load %arg13[%c72_203, %c0_204] : memref<128x128xf32, #tpu.memory_space<vmem>>, vector<8x128xf32>
    %640 = arith.truncf %635 : vector<8x32xf32> to vector<8x32xbf16>
    %cst_205 = arith.constant dense<0.000000e+00> : vector<8x128xf32>
    %641 = tpu.matmul %640, %429, %cst_205 {dimension_numbers = #tpu.dot_dimension_numbers<[1], [0], [0], [1], [0, 0, 1, 1], [], []>} : vector<8x32xbf16>, vector<32x128xbf16>, vector<8x128xf32> -> vector<8x128xf32>
    %642 = arith.addf %639, %641 : vector<8x128xf32>
    %643 = vector.extract_strided_slice %642 {offsets = [0, 0], sizes = [8, 96], strides = [1, 1]} : vector<8x128xf32> to vector<8x96xf32>
    %644 = arith.negf %643 : vector<8x96xf32>
    %645 = math.exp %644 : vector<8x96xf32>
    %cst_206 = arith.constant 1.000000e+00 : f32
    %646 = vector.broadcast %cst_206 : f32 to vector<8x96xf32>
    %647 = arith.addf %646, %645 : vector<8x96xf32>
    %648 = arith.divf %646, %647 : vector<8x96xf32>
    %649 = vector.extract_strided_slice %642 {offsets = [0, 96], sizes = [8, 32], strides = [1, 1]} : vector<8x128xf32> to vector<8x32xf32>
    %650 = math.tanh %649 : vector<8x32xf32>
    %651 = vector.extract_strided_slice %648 {offsets = [0, 0], sizes = [8, 32], strides = [1, 1]} : vector<8x96xf32> to vector<8x32xf32>
    %652 = vector.extract_strided_slice %648 {offsets = [0, 32], sizes = [8, 32], strides = [1, 1]} : vector<8x96xf32> to vector<8x32xf32>
    %653 = vector.extract_strided_slice %648 {offsets = [0, 64], sizes = [8, 32], strides = [1, 1]} : vector<8x96xf32> to vector<8x32xf32>
    %654 = arith.mulf %652, %633 : vector<8x32xf32>
    %655 = arith.mulf %651, %650 : vector<8x32xf32>
    %656 = arith.addf %654, %655 : vector<8x32xf32>
    %657 = math.tanh %656 : vector<8x32xf32>
    %658 = arith.mulf %653, %657 : vector<8x32xf32>
    %c72_207 = arith.constant 72 : index
    %c0_208 = arith.constant 0 : index
    %659 = vector.load %arg1[%c72_207, %c0_208] : memref<128x32xf32, #tpu.memory_space<vmem>>, vector<8x32xf32>
    %660 = arith.mulf %658, %659 : vector<8x32xf32>
    %661 = arith.addf %638, %660 : vector<8x32xf32>
    %c80_209 = arith.constant 80 : index
    %c0_210 = arith.constant 0 : index
    %662 = vector.load %arg13[%c80_209, %c0_210] : memref<128x128xf32, #tpu.memory_space<vmem>>, vector<8x128xf32>
    %663 = arith.truncf %658 : vector<8x32xf32> to vector<8x32xbf16>
    %cst_211 = arith.constant dense<0.000000e+00> : vector<8x128xf32>
    %664 = tpu.matmul %663, %429, %cst_211 {dimension_numbers = #tpu.dot_dimension_numbers<[1], [0], [0], [1], [0, 0, 1, 1], [], []>} : vector<8x32xbf16>, vector<32x128xbf16>, vector<8x128xf32> -> vector<8x128xf32>
    %665 = arith.addf %662, %664 : vector<8x128xf32>
    %666 = vector.extract_strided_slice %665 {offsets = [0, 0], sizes = [8, 96], strides = [1, 1]} : vector<8x128xf32> to vector<8x96xf32>
    %667 = arith.negf %666 : vector<8x96xf32>
    %668 = math.exp %667 : vector<8x96xf32>
    %cst_212 = arith.constant 1.000000e+00 : f32
    %669 = vector.broadcast %cst_212 : f32 to vector<8x96xf32>
    %670 = arith.addf %669, %668 : vector<8x96xf32>
    %671 = arith.divf %669, %670 : vector<8x96xf32>
    %672 = vector.extract_strided_slice %665 {offsets = [0, 96], sizes = [8, 32], strides = [1, 1]} : vector<8x128xf32> to vector<8x32xf32>
    %673 = math.tanh %672 : vector<8x32xf32>
    %674 = vector.extract_strided_slice %671 {offsets = [0, 0], sizes = [8, 32], strides = [1, 1]} : vector<8x96xf32> to vector<8x32xf32>
    %675 = vector.extract_strided_slice %671 {offsets = [0, 32], sizes = [8, 32], strides = [1, 1]} : vector<8x96xf32> to vector<8x32xf32>
    %676 = vector.extract_strided_slice %671 {offsets = [0, 64], sizes = [8, 32], strides = [1, 1]} : vector<8x96xf32> to vector<8x32xf32>
    %677 = arith.mulf %675, %656 : vector<8x32xf32>
    %678 = arith.mulf %674, %673 : vector<8x32xf32>
    %679 = arith.addf %677, %678 : vector<8x32xf32>
    %680 = math.tanh %679 : vector<8x32xf32>
    %681 = arith.mulf %676, %680 : vector<8x32xf32>
    %c80_213 = arith.constant 80 : index
    %c0_214 = arith.constant 0 : index
    %682 = vector.load %arg1[%c80_213, %c0_214] : memref<128x32xf32, #tpu.memory_space<vmem>>, vector<8x32xf32>
    %683 = arith.mulf %681, %682 : vector<8x32xf32>
    %684 = arith.addf %661, %683 : vector<8x32xf32>
    %c88_215 = arith.constant 88 : index
    %c0_216 = arith.constant 0 : index
    %685 = vector.load %arg13[%c88_215, %c0_216] : memref<128x128xf32, #tpu.memory_space<vmem>>, vector<8x128xf32>
    %686 = arith.truncf %681 : vector<8x32xf32> to vector<8x32xbf16>
    %cst_217 = arith.constant dense<0.000000e+00> : vector<8x128xf32>
    %687 = tpu.matmul %686, %429, %cst_217 {dimension_numbers = #tpu.dot_dimension_numbers<[1], [0], [0], [1], [0, 0, 1, 1], [], []>} : vector<8x32xbf16>, vector<32x128xbf16>, vector<8x128xf32> -> vector<8x128xf32>
    %688 = arith.addf %685, %687 : vector<8x128xf32>
    %689 = vector.extract_strided_slice %688 {offsets = [0, 0], sizes = [8, 96], strides = [1, 1]} : vector<8x128xf32> to vector<8x96xf32>
    %690 = arith.negf %689 : vector<8x96xf32>
    %691 = math.exp %690 : vector<8x96xf32>
    %cst_218 = arith.constant 1.000000e+00 : f32
    %692 = vector.broadcast %cst_218 : f32 to vector<8x96xf32>
    %693 = arith.addf %692, %691 : vector<8x96xf32>
    %694 = arith.divf %692, %693 : vector<8x96xf32>
    %695 = vector.extract_strided_slice %688 {offsets = [0, 96], sizes = [8, 32], strides = [1, 1]} : vector<8x128xf32> to vector<8x32xf32>
    %696 = math.tanh %695 : vector<8x32xf32>
    %697 = vector.extract_strided_slice %694 {offsets = [0, 0], sizes = [8, 32], strides = [1, 1]} : vector<8x96xf32> to vector<8x32xf32>
    %698 = vector.extract_strided_slice %694 {offsets = [0, 32], sizes = [8, 32], strides = [1, 1]} : vector<8x96xf32> to vector<8x32xf32>
    %699 = vector.extract_strided_slice %694 {offsets = [0, 64], sizes = [8, 32], strides = [1, 1]} : vector<8x96xf32> to vector<8x32xf32>
    %700 = arith.mulf %698, %679 : vector<8x32xf32>
    %701 = arith.mulf %697, %696 : vector<8x32xf32>
    %702 = arith.addf %700, %701 : vector<8x32xf32>
    %703 = math.tanh %702 : vector<8x32xf32>
    %704 = arith.mulf %699, %703 : vector<8x32xf32>
    %c88_219 = arith.constant 88 : index
    %c0_220 = arith.constant 0 : index
    %705 = vector.load %arg1[%c88_219, %c0_220] : memref<128x32xf32, #tpu.memory_space<vmem>>, vector<8x32xf32>
    %706 = arith.mulf %704, %705 : vector<8x32xf32>
    %707 = arith.addf %684, %706 : vector<8x32xf32>
    %c96_221 = arith.constant 96 : index
    %c0_222 = arith.constant 0 : index
    %708 = vector.load %arg13[%c96_221, %c0_222] : memref<128x128xf32, #tpu.memory_space<vmem>>, vector<8x128xf32>
    %709 = arith.truncf %704 : vector<8x32xf32> to vector<8x32xbf16>
    %cst_223 = arith.constant dense<0.000000e+00> : vector<8x128xf32>
    %710 = tpu.matmul %709, %429, %cst_223 {dimension_numbers = #tpu.dot_dimension_numbers<[1], [0], [0], [1], [0, 0, 1, 1], [], []>} : vector<8x32xbf16>, vector<32x128xbf16>, vector<8x128xf32> -> vector<8x128xf32>
    %711 = arith.addf %708, %710 : vector<8x128xf32>
    %712 = vector.extract_strided_slice %711 {offsets = [0, 0], sizes = [8, 96], strides = [1, 1]} : vector<8x128xf32> to vector<8x96xf32>
    %713 = arith.negf %712 : vector<8x96xf32>
    %714 = math.exp %713 : vector<8x96xf32>
    %cst_224 = arith.constant 1.000000e+00 : f32
    %715 = vector.broadcast %cst_224 : f32 to vector<8x96xf32>
    %716 = arith.addf %715, %714 : vector<8x96xf32>
    %717 = arith.divf %715, %716 : vector<8x96xf32>
    %718 = vector.extract_strided_slice %711 {offsets = [0, 96], sizes = [8, 32], strides = [1, 1]} : vector<8x128xf32> to vector<8x32xf32>
    %719 = math.tanh %718 : vector<8x32xf32>
    %720 = vector.extract_strided_slice %717 {offsets = [0, 0], sizes = [8, 32], strides = [1, 1]} : vector<8x96xf32> to vector<8x32xf32>
    %721 = vector.extract_strided_slice %717 {offsets = [0, 32], sizes = [8, 32], strides = [1, 1]} : vector<8x96xf32> to vector<8x32xf32>
    %722 = vector.extract_strided_slice %717 {offsets = [0, 64], sizes = [8, 32], strides = [1, 1]} : vector<8x96xf32> to vector<8x32xf32>
    %723 = arith.mulf %721, %702 : vector<8x32xf32>
    %724 = arith.mulf %720, %719 : vector<8x32xf32>
    %725 = arith.addf %723, %724 : vector<8x32xf32>
    %726 = math.tanh %725 : vector<8x32xf32>
    %727 = arith.mulf %722, %726 : vector<8x32xf32>
    %c96_225 = arith.constant 96 : index
    %c0_226 = arith.constant 0 : index
    %728 = vector.load %arg1[%c96_225, %c0_226] : memref<128x32xf32, #tpu.memory_space<vmem>>, vector<8x32xf32>
    %729 = arith.mulf %727, %728 : vector<8x32xf32>
    %730 = arith.addf %707, %729 : vector<8x32xf32>
    %c104_227 = arith.constant 104 : index
    %c0_228 = arith.constant 0 : index
    %731 = vector.load %arg13[%c104_227, %c0_228] : memref<128x128xf32, #tpu.memory_space<vmem>>, vector<8x128xf32>
    %732 = arith.truncf %727 : vector<8x32xf32> to vector<8x32xbf16>
    %cst_229 = arith.constant dense<0.000000e+00> : vector<8x128xf32>
    %733 = tpu.matmul %732, %429, %cst_229 {dimension_numbers = #tpu.dot_dimension_numbers<[1], [0], [0], [1], [0, 0, 1, 1], [], []>} : vector<8x32xbf16>, vector<32x128xbf16>, vector<8x128xf32> -> vector<8x128xf32>
    %734 = arith.addf %731, %733 : vector<8x128xf32>
    %735 = vector.extract_strided_slice %734 {offsets = [0, 0], sizes = [8, 96], strides = [1, 1]} : vector<8x128xf32> to vector<8x96xf32>
    %736 = arith.negf %735 : vector<8x96xf32>
    %737 = math.exp %736 : vector<8x96xf32>
    %cst_230 = arith.constant 1.000000e+00 : f32
    %738 = vector.broadcast %cst_230 : f32 to vector<8x96xf32>
    %739 = arith.addf %738, %737 : vector<8x96xf32>
    %740 = arith.divf %738, %739 : vector<8x96xf32>
    %741 = vector.extract_strided_slice %734 {offsets = [0, 96], sizes = [8, 32], strides = [1, 1]} : vector<8x128xf32> to vector<8x32xf32>
    %742 = math.tanh %741 : vector<8x32xf32>
    %743 = vector.extract_strided_slice %740 {offsets = [0, 0], sizes = [8, 32], strides = [1, 1]} : vector<8x96xf32> to vector<8x32xf32>
    %744 = vector.extract_strided_slice %740 {offsets = [0, 32], sizes = [8, 32], strides = [1, 1]} : vector<8x96xf32> to vector<8x32xf32>
    %745 = vector.extract_strided_slice %740 {offsets = [0, 64], sizes = [8, 32], strides = [1, 1]} : vector<8x96xf32> to vector<8x32xf32>
    %746 = arith.mulf %744, %725 : vector<8x32xf32>
    %747 = arith.mulf %743, %742 : vector<8x32xf32>
    %748 = arith.addf %746, %747 : vector<8x32xf32>
    %749 = math.tanh %748 : vector<8x32xf32>
    %750 = arith.mulf %745, %749 : vector<8x32xf32>
    %c104_231 = arith.constant 104 : index
    %c0_232 = arith.constant 0 : index
    %751 = vector.load %arg1[%c104_231, %c0_232] : memref<128x32xf32, #tpu.memory_space<vmem>>, vector<8x32xf32>
    %752 = arith.mulf %750, %751 : vector<8x32xf32>
    %753 = arith.addf %730, %752 : vector<8x32xf32>
    %c112_233 = arith.constant 112 : index
    %c0_234 = arith.constant 0 : index
    %754 = vector.load %arg13[%c112_233, %c0_234] : memref<128x128xf32, #tpu.memory_space<vmem>>, vector<8x128xf32>
    %755 = arith.truncf %750 : vector<8x32xf32> to vector<8x32xbf16>
    %cst_235 = arith.constant dense<0.000000e+00> : vector<8x128xf32>
    %756 = tpu.matmul %755, %429, %cst_235 {dimension_numbers = #tpu.dot_dimension_numbers<[1], [0], [0], [1], [0, 0, 1, 1], [], []>} : vector<8x32xbf16>, vector<32x128xbf16>, vector<8x128xf32> -> vector<8x128xf32>
    %757 = arith.addf %754, %756 : vector<8x128xf32>
    %758 = vector.extract_strided_slice %757 {offsets = [0, 0], sizes = [8, 96], strides = [1, 1]} : vector<8x128xf32> to vector<8x96xf32>
    %759 = arith.negf %758 : vector<8x96xf32>
    %760 = math.exp %759 : vector<8x96xf32>
    %cst_236 = arith.constant 1.000000e+00 : f32
    %761 = vector.broadcast %cst_236 : f32 to vector<8x96xf32>
    %762 = arith.addf %761, %760 : vector<8x96xf32>
    %763 = arith.divf %761, %762 : vector<8x96xf32>
    %764 = vector.extract_strided_slice %757 {offsets = [0, 96], sizes = [8, 32], strides = [1, 1]} : vector<8x128xf32> to vector<8x32xf32>
    %765 = math.tanh %764 : vector<8x32xf32>
    %766 = vector.extract_strided_slice %763 {offsets = [0, 0], sizes = [8, 32], strides = [1, 1]} : vector<8x96xf32> to vector<8x32xf32>
    %767 = vector.extract_strided_slice %763 {offsets = [0, 32], sizes = [8, 32], strides = [1, 1]} : vector<8x96xf32> to vector<8x32xf32>
    %768 = vector.extract_strided_slice %763 {offsets = [0, 64], sizes = [8, 32], strides = [1, 1]} : vector<8x96xf32> to vector<8x32xf32>
    %769 = arith.mulf %767, %748 : vector<8x32xf32>
    %770 = arith.mulf %766, %765 : vector<8x32xf32>
    %771 = arith.addf %769, %770 : vector<8x32xf32>
    %772 = math.tanh %771 : vector<8x32xf32>
    %773 = arith.mulf %768, %772 : vector<8x32xf32>
    %c112_237 = arith.constant 112 : index
    %c0_238 = arith.constant 0 : index
    %774 = vector.load %arg1[%c112_237, %c0_238] : memref<128x32xf32, #tpu.memory_space<vmem>>, vector<8x32xf32>
    %775 = arith.mulf %773, %774 : vector<8x32xf32>
    %776 = arith.addf %753, %775 : vector<8x32xf32>
    %c120_239 = arith.constant 120 : index
    %c0_240 = arith.constant 0 : index
    %777 = vector.load %arg13[%c120_239, %c0_240] : memref<128x128xf32, #tpu.memory_space<vmem>>, vector<8x128xf32>
    %778 = arith.truncf %773 : vector<8x32xf32> to vector<8x32xbf16>
    %cst_241 = arith.constant dense<0.000000e+00> : vector<8x128xf32>
    %779 = tpu.matmul %778, %429, %cst_241 {dimension_numbers = #tpu.dot_dimension_numbers<[1], [0], [0], [1], [0, 0, 1, 1], [], []>} : vector<8x32xbf16>, vector<32x128xbf16>, vector<8x128xf32> -> vector<8x128xf32>
    %780 = arith.addf %777, %779 : vector<8x128xf32>
    %781 = vector.extract_strided_slice %780 {offsets = [0, 0], sizes = [8, 96], strides = [1, 1]} : vector<8x128xf32> to vector<8x96xf32>
    %782 = arith.negf %781 : vector<8x96xf32>
    %783 = math.exp %782 : vector<8x96xf32>
    %cst_242 = arith.constant 1.000000e+00 : f32
    %784 = vector.broadcast %cst_242 : f32 to vector<8x96xf32>
    %785 = arith.addf %784, %783 : vector<8x96xf32>
    %786 = arith.divf %784, %785 : vector<8x96xf32>
    %787 = vector.extract_strided_slice %780 {offsets = [0, 96], sizes = [8, 32], strides = [1, 1]} : vector<8x128xf32> to vector<8x32xf32>
    %788 = math.tanh %787 : vector<8x32xf32>
    %789 = vector.extract_strided_slice %786 {offsets = [0, 0], sizes = [8, 32], strides = [1, 1]} : vector<8x96xf32> to vector<8x32xf32>
    %790 = vector.extract_strided_slice %786 {offsets = [0, 32], sizes = [8, 32], strides = [1, 1]} : vector<8x96xf32> to vector<8x32xf32>
    %791 = vector.extract_strided_slice %786 {offsets = [0, 64], sizes = [8, 32], strides = [1, 1]} : vector<8x96xf32> to vector<8x32xf32>
    %792 = arith.mulf %790, %771 : vector<8x32xf32>
    %793 = arith.mulf %789, %788 : vector<8x32xf32>
    %794 = arith.addf %792, %793 : vector<8x32xf32>
    %795 = math.tanh %794 : vector<8x32xf32>
    %796 = arith.mulf %791, %795 : vector<8x32xf32>
    %c120_243 = arith.constant 120 : index
    %c0_244 = arith.constant 0 : index
    %797 = vector.load %arg1[%c120_243, %c0_244] : memref<128x32xf32, #tpu.memory_space<vmem>>, vector<8x32xf32>
    %798 = arith.mulf %796, %797 : vector<8x32xf32>
    %799 = arith.addf %776, %798 : vector<8x32xf32>
    %c0_245 = arith.constant 0 : index
    %c0_246 = arith.constant 0 : index
    %800 = memref.load %arg2[%c0_245, %c0_246] : memref<1x1xf32, #tpu.memory_space<smem>>
    %801 = vector.broadcast %800 : f32 to vector<8x32xf32>
    %802 = arith.mulf %799, %801 : vector<8x32xf32>
    %c0_247 = arith.constant 0 : index
    %c0_248 = arith.constant 0 : index
    %803 = vector.load %arg9[%c0_247, %c0_248] : memref<32x2xf32, #tpu.memory_space<vmem>>, vector<32x2xf32>
    %cst_249 = arith.constant dense<0.000000e+00> : vector<8x2xf32>
    %804 = tpu.matmul %802, %803, %cst_249 {dimension_numbers = #tpu.dot_dimension_numbers<[1], [0], [0], [1], [0, 0, 1, 1], [], []>} : vector<8x32xf32>, vector<32x2xf32>, vector<8x2xf32> -> vector<8x2xf32>
    %c0_250 = arith.constant 0 : index
    %c0_251 = arith.constant 0 : index
    %805 = vector.load %arg10[%c0_250, %c0_251] : memref<1x2xf32, #tpu.memory_space<vmem>>, vector<1x2xf32>
    %806 = vector.broadcast %805 : vector<1x2xf32> to vector<8x2xf32>
    %807 = arith.addf %804, %806 : vector<8x2xf32>
    %c0_252 = arith.constant 0 : index
    %c0_253 = arith.constant 0 : index
    %808 = vector.load %arg11[%c0_252, %c0_253] : memref<8x2xf32, #tpu.memory_space<vmem>>, vector<8x2xf32>
    tpu.vector_store %arg11[%c0_252, %c0_253], %807 {strides = array<i32>} : memref<8x2xf32, #tpu.memory_space<vmem>>, vector<8x2xf32>,
    return
  }
}

</mosaic_0001>

<llo_original>
// kernel: tpu_custom_call.1
$region0: #{tpu_custom_call.1}
  #allocation0 [shape = 'u32[]', space=smem, size = 0x4, offset = 0x4, fixed_abs, tag = 'smem constant byte address 0x4 - core index']
  #allocation1 [shape = 'u32[144,128]{1,0:T(1,128)}', space=vmem, size = 0x12000, scoped, tag = 'internal scratch']
  #allocation2 [shape = 'f32[128,128]{1,0:T(8,128)}', space=vmem, size = 0x10000, scoped, tag = 'scratch operand']
  #allocation3 [shape = 'f32[128,128]{1,0:T(8,128)}', space=vmem, size = 0x10000, scoped, tag = 'scratch operand']
  #allocation4 [shape = 'f32[1,1]{1,0:T(1,128)S(6)}', space=smem, size = 0x200, scoped, tag = 'scoped memory for tpu_custom_call.1']
  %s0 = inlined_call_operand.vmem [shape: f32[128,12], index: 0, kind: input, shape index: {}]
  %s1 = inlined_call_operand.vmem [shape: f32[128,32], index: 1, kind: input, shape index: {}]
  %s2 = inlined_call_operand.<no memory space> [shape: f32[1,1], index: 2, kind: input, shape index: {}]
  %s3 = inlined_call_operand.vmem [shape: f32[12,128], index: 3, kind: input, shape index: {}]
  %s4 = inlined_call_operand.vmem [shape: f32[1,128], index: 4, kind: input, shape index: {}]
  %s5 = inlined_call_operand.vmem [shape: bf16[32,128], index: 5, kind: input, shape index: {}]
  %s6 = inlined_call_operand.vmem [shape: f32[32,128], index: 6, kind: input, shape index: {}]
  %s7 = inlined_call_operand.vmem [shape: f32[1,128], index: 7, kind: input, shape index: {}]
  %s8 = inlined_call_operand.vmem [shape: bf16[32,128], index: 8, kind: input, shape index: {}]
  %s9 = inlined_call_operand.vmem [shape: f32[32,2], index: 9, kind: input, shape index: {}]
  %s10 = inlined_call_operand.vmem [shape: f32[1,2], index: 10, kind: input, shape index: {}]
  %s11 = inlined_call_operand.vmem [shape: f32[8,2], index: 11, kind: output, shape index: {}]
  %s12 = sld [smem:[#allocation0]]
  $region54: #{tpu_custom_call.1} parent=0
    _
  %s14 = ssub.s32 1, %s12
  %s15 = scalar_select 0, %s14, %s12
  %16 = sst [smem:[#allocation4]] %s2
  // Predicated region
  $region2: #{tpu_custom_call.1} parent=0 // pred_check
    _
  $region3: #{tpu_custom_call.1} parent=0 // pred_check_branch
    %18 = sbr.rel (0) target = $region5
  $region4: #{tpu_custom_call.1} parent=0 // pred_region
    _
  $region5: #{tpu_custom_call.1} parent=0 // pred_fallthru
    _
  // Predicated region
  $region6: #{tpu_custom_call.1} parent=0 // pred_check
    _
  $region7: #{tpu_custom_call.1} parent=0 // pred_check_branch
    %20 = sbr.rel (0) target = $region9
  $region8: #{tpu_custom_call.1} parent=0 // pred_region
    _
  $region9: #{tpu_custom_call.1} parent=0 // pred_fallthru
    _
  // Predicated region
  $region10: #{tpu_custom_call.1} parent=0 // pred_check
    _
  $region11: #{tpu_custom_call.1} parent=0 // pred_check_branch
    %22 = sbr.rel (0) target = $region13
  $region12: #{tpu_custom_call.1} parent=0 // pred_region
    _
  $region13: #{tpu_custom_call.1} parent=0 // pred_fallthru
    _
  // Predicated region
  $region14: #{tpu_custom_call.1} parent=0 // pred_check
    _
  $region15: #{tpu_custom_call.1} parent=0 // pred_check_branch
    %24 = sbr.rel (0) target = $region17
  $region16: #{tpu_custom_call.1} parent=0 // pred_region
    _
  $region17: #{tpu_custom_call.1} parent=0 // pred_fallthru
    _
  // Predicated region
  $region18: #{tpu_custom_call.1} parent=0 // pred_check
    _
  $region19: #{tpu_custom_call.1} parent=0 // pred_check_branch
    %26 = sbr.rel (0) target = $region21
  $region20: #{tpu_custom_call.1} parent=0 // pred_region
    _
  $region21: #{tpu_custom_call.1} parent=0 // pred_fallthru
    _
  // Predicated region
  $region22: #{tpu_custom_call.1} parent=0 // pred_check
    _
  $region23: #{tpu_custom_call.1} parent=0 // pred_check_branch
    %28 = sbr.rel (0) target = $region25
  $region24: #{tpu_custom_call.1} parent=0 // pred_region
    _
  $region25: #{tpu_custom_call.1} parent=0 // pred_fallthru
    _
  // Predicated region
  $region26: #{tpu_custom_call.1} parent=0 // pred_check
    _
  $region27: #{tpu_custom_call.1} parent=0 // pred_check_branch
    %30 = sbr.rel (0) target = $region29
  $region28: #{tpu_custom_call.1} parent=0 // pred_region
    _
  $region29: #{tpu_custom_call.1} parent=0 // pred_fallthru
    _
  // Predicated region
  $region30: #{tpu_custom_call.1} parent=0 // pred_check
    _
  $region31: #{tpu_custom_call.1} parent=0 // pred_check_branch
    %32 = sbr.rel (0) target = $region33
  $region32: #{tpu_custom_call.1} parent=0 // pred_region
    _
  $region33: #{tpu_custom_call.1} parent=0 // pred_fallthru
    _
  // Predicated region
  $region34: #{tpu_custom_call.1} parent=0 // pred_check
    _
  $region35: #{tpu_custom_call.1} parent=0 // pred_check_branch
    %34 = sbr.rel (0) target = $region37
  $region36: #{tpu_custom_call.1} parent=0 // pred_region
    _
  $region37: #{tpu_custom_call.1} parent=0 // pred_fallthru
    _
  // Predicated region
  $region38: #{tpu_custom_call.1} parent=0 // pred_check
    _
  $region39: #{tpu_custom_call.1} parent=0 // pred_check_branch
    %36 = sbr.rel (0) target = $region41
  $region40: #{tpu_custom_call.1} parent=0 // pred_region
    _
  $region41: #{tpu_custom_call.1} parent=0 // pred_fallthru
    _
  // Predicated region
  $region42: #{tpu_custom_call.1} parent=0 // pred_check
    _
  $region43: #{tpu_custom_call.1} parent=0 // pred_check_branch
    %38 = sbr.rel (0) target = $region45
  $region44: #{tpu_custom_call.1} parent=0 // pred_region
    _
  $region45: #{tpu_custom_call.1} parent=0 // pred_fallthru
    _
  %v40 = vld [vmem:[%s0] sm:$0xff]
  %v41 = vld [vmem:[%s0 + $0x8] sm:$0xff]
  %v42 = vld [vmem:[%s0 + $0x10] sm:$0xff]
  %v43 = vld [vmem:[%s0 + $0x18] sm:$0xff]
  %v44 = vld [vmem:[%s0 + $0x20] sm:$0xff]
  %v45 = vld [vmem:[%s0 + $0x28] sm:$0xff]
  %v46 = vld [vmem:[%s0 + $0x30] sm:$0xff]
  %v47 = vld [vmem:[%s0 + $0x38] sm:$0xff]
  %v48 = vld [vmem:[%s0 + $0x40] sm:$0xff]
  %v49 = vld [vmem:[%s0 + $0x48] sm:$0xff]
  %v50 = vld [vmem:[%s0 + $0x50] sm:$0xff]
  %v51 = vld [vmem:[%s0 + $0x58] sm:$0xff]
  %v52 = vld [vmem:[%s0 + $0x60] sm:$0xff]
  %v53 = vld [vmem:[%s0 + $0x68] sm:$0xff]
  %v54 = vld [vmem:[%s0 + $0x70] sm:$0xff]
  %v55 = vld [vmem:[%s0 + $0x78] sm:$0xff]
  %v56 = vld [vmem:[%s3] sm:$0xff]
  %v57 = vld [vmem:[%s3 + $0x8] sm:$0xf]
  %v58 = vld [vmem:[%s4] sm:$0x1]
  %v60 = vlaneseq
  %v61 = vshrl.u32 %v60, 7
  %v62 = vsub.s32 0, %v61
  %v63 = vrot.slane %v58, %v62
  %vm65 = vcmask 97280
  %v67 = vsel %vm65, %v40, 0
  %v70 = vsel %vm65, %v41, 0
  %v73 = vsel %vm65, %v42, 0
  %v76 = vsel %vm65, %v43, 0
  %v79 = vsel %vm65, %v44, 0
  %v82 = vsel %vm65, %v45, 0
  %v85 = vsel %vm65, %v46, 0
  %v88 = vsel %vm65, %v47, 0
  %v91 = vsel %vm65, %v48, 0
  %v94 = vsel %vm65, %v49, 0
  %v97 = vsel %vm65, %v50, 0
  %v100 = vsel %vm65, %v51, 0
  %v103 = vsel %vm65, %v52, 0
  %v106 = vsel %vm65, %v53, 0
  %v109 = vsel %vm65, %v54, 0
  %v112 = vsel %vm65, %v55, 0
  %vm114 = vcmask 1043456
  %v116 = vsel %vm114, %v57, 0
  %118 = vmatprep.subr.mxu0 0.0
  %119 = vmatpush1.msra.mxu0 %v56
  %120 = vmatprep.subr.mxu0 0.0
  %121 = vmatpush1.msra.mxu0 %v116
  %122 = vmatprep.subr.mxu0 0.0
  %123 = vmatpush1.msra.mxu0 0.0
  %124 = vmatprep.subr.mxu0 0.0
  %125 = vmatpush1.msra.mxu0 0.0
  %126 = vmatprep.subr.mxu0 0.0
  %127 = vmatpush1.msra.mxu0 0.0
  %128 = vmatprep.subr.mxu0 0.0
  %129 = vmatpush1.msra.mxu0 0.0
  %130 = vmatprep.subr.mxu0 0.0
  %131 = vmatpush1.msra.mxu0 0.0
  %132 = vmatprep.subr.mxu0 0.0
  %133 = vmatpush1.msra.mxu0 0.0
  %134 = vmatprep.subr.mxu0 0.0
  %135 = vmatpush1.msra.mxu0 0.0
  %136 = vmatprep.subr.mxu0 0.0
  %137 = vmatpush1.msra.mxu0 0.0
  %138 = vmatprep.subr.mxu0 0.0
  %139 = vmatpush1.msra.mxu0 0.0
  %140 = vmatprep.subr.mxu0 0.0
  %141 = vmatpush1.msra.mxu0 0.0
  %142 = vmatprep.subr.mxu0 0.0
  %143 = vmatpush1.msra.mxu0 0.0
  %144 = vmatprep.subr.mxu0 0.0
  %145 = vmatpush1.msra.mxu0 0.0
  %146 = vmatprep.subr.mxu0 0.0
  %147 = vmatpush1.msra.mxu0 0.0
  %148 = vmatprep.subr.mxu0 0.0
  %149 = vmatpush1.msra.mxu0 0.0
  %150 = vmatprep.subr.mxu0 0.0
  %151 = vmatpush1.msra.mxu0 0.0
  %152 = vmatprep.subr.mxu0 0.0
  %153 = vmatpush1.msra.mxu0 0.0
  %154 = vmatprep.subr.mxu0 0.0
  %155 = vmatpush1.msra.mxu0 0.0
  %156 = vmatprep.subr.mxu0 0.0
  %157 = vmatpush1.msra.mxu0 0.0
  %158 = vmatprep.subr.mxu0 0.0
  %159 = vmatpush1.msra.mxu0 0.0
  %160 = vmatprep.subr.mxu0 0.0
  %161 = vmatpush1.msra.mxu0 0.0
  %162 = vmatprep.subr.mxu0 0.0
  %163 = vmatpush1.msra.mxu0 0.0
  %164 = vmatprep.subr.mxu0 0.0
  %165 = vmatpush1.msra.mxu0 0.0
  %166 = vmatprep.subr.mxu0 0.0
  %167 = vmatpush1.msra.mxu0 0.0
  %168 = vmatprep.subr.mxu0 0.0
  %169 = vmatpush1.msra.mxu0 0.0
  %170 = vmatprep.subr.mxu0 0.0
  %171 = vmatpush1.msra.mxu0 0.0
  %172 = vmatprep.subr.mxu0 0.0
  %173 = vmatpush1.msra.mxu0 0.0
  %174 = vmatprep.subr.mxu0 0.0
  %175 = vmatpush1.msra.mxu0 0.0
  %176 = vmatprep.subr.mxu0 0.0
  %177 = vmatpush1.msra.mxu0 0.0
  %178 = vmatprep.subr.mxu0 0.0
  %179 = vmatpush1.msra.mxu0 0.0
  %180 = vmatprep.subr.mxu0 0.0
  %181 = vmatpush1.msra.mxu0 0.0
  %182 = vmatprep.mubr.f32.mxu0 0.0
  %183 = vmatmul.mubr.f32.gmra.mrb[0].mxu0 %v67
  %v184 = vpop.f32.mrb[0].mxu0
  %v185 = vadd.f32 %v63, %v184
  %v186 = vpop.f32.mrb[0].mxu0
  %187 = vmatprep.mubr.f32.mxu0 0.0
  %188 = vmatmul.mubr.f32.gmra.mrb[0].mxu0 %v70
  %v189 = vpop.f32.mrb[0].mxu0
  %v190 = vadd.f32 %v63, %v189
  %v191 = vpop.f32.mrb[0].mxu0
  %192 = vmatprep.mubr.f32.mxu0 0.0
  %193 = vmatmul.mubr.f32.gmra.mrb[0].mxu0 %v73
  %v194 = vpop.f32.mrb[0].mxu0
  %v195 = vadd.f32 %v63, %v194
  %v196 = vpop.f32.mrb[0].mxu0
  %197 = vmatprep.mubr.f32.mxu0 0.0
  %198 = vmatmul.mubr.f32.gmra.mrb[0].mxu0 %v76
  %v199 = vpop.f32.mrb[0].mxu0
  %v200 = vadd.f32 %v63, %v199
  %v201 = vpop.f32.mrb[0].mxu0
  %202 = vmatprep.mubr.f32.mxu0 0.0
  %203 = vmatmul.mubr.f32.gmra.mrb[0].mxu0 %v79
  %v204 = vpop.f32.mrb[0].mxu0
  %v205 = vadd.f32 %v63, %v204
  %v206 = vpop.f32.mrb[0].mxu0
  %207 = vmatprep.mubr.f32.mxu0 0.0
  %208 = vmatmul.mubr.f32.gmra.mrb[0].mxu0 %v82
  %v209 = vpop.f32.mrb[0].mxu0
  %v210 = vadd.f32 %v63, %v209
  %v211 = vpop.f32.mrb[0].mxu0
  %212 = vmatprep.mubr.f32.mxu0 0.0
  %213 = vmatmul.mubr.f32.gmra.mrb[0].mxu0 %v85
  %v214 = vpop.f32.mrb[0].mxu0
  %v215 = vadd.f32 %v63, %v214
  %v216 = vpop.f32.mrb[0].mxu0
  %217 = vmatprep.mubr.f32.mxu0 0.0
  %218 = vmatmul.mubr.f32.gmra.mrb[0].mxu0 %v88
  %v219 = vpop.f32.mrb[0].mxu0
  %v220 = vadd.f32 %v63, %v219
  %v221 = vpop.f32.mrb[0].mxu0
  %222 = vmatprep.mubr.f32.mxu0 0.0
  %223 = vmatmul.mubr.f32.gmra.mrb[0].mxu0 %v91
  %v224 = vpop.f32.mrb[0].mxu0
  %v225 = vadd.f32 %v63, %v224
  %v226 = vpop.f32.mrb[0].mxu0
  %227 = vmatprep.mubr.f32.mxu0 0.0
  %228 = vmatmul.mubr.f32.gmra.mrb[0].mxu0 %v94
  %v229 = vpop.f32.mrb[0].mxu0
  %v230 = vadd.f32 %v63, %v229
  %v231 = vpop.f32.mrb[0].mxu0
  %232 = vmatprep.mubr.f32.mxu0 0.0
  %233 = vmatmul.mubr.f32.gmra.mrb[0].mxu0 %v97
  %v234 = vpop.f32.mrb[0].mxu0
  %v235 = vadd.f32 %v63, %v234
  %v236 = vpop.f32.mrb[0].mxu0
  %237 = vmatprep.mubr.f32.mxu0 0.0
  %238 = vmatmul.mubr.f32.gmra.mrb[0].mxu0 %v100
  %v239 = vpop.f32.mrb[0].mxu0
  %v240 = vadd.f32 %v63, %v239
  %v241 = vpop.f32.mrb[0].mxu0
  %242 = vmatprep.mubr.f32.mxu0 0.0
  %243 = vmatmul.mubr.f32.gmra.mrb[0].mxu0 %v103
  %v244 = vpop.f32.mrb[0].mxu0
  %v245 = vadd.f32 %v63, %v244
  %v246 = vpop.f32.mrb[0].mxu0
  %247 = vmatprep.mubr.f32.mxu0 0.0
  %248 = vmatmul.mubr.f32.gmra.mrb[0].mxu0 %v106
  %v249 = vpop.f32.mrb[0].mxu0
  %v250 = vadd.f32 %v63, %v249
  %v251 = vpop.f32.mrb[0].mxu0
  %252 = vmatprep.mubr.f32.mxu0 0.0
  %253 = vmatmul.mubr.f32.gmra.mrb[0].mxu0 %v109
  %v254 = vpop.f32.mrb[0].mxu0
  %v255 = vadd.f32 %v63, %v254
  %v256 = vpop.f32.mrb[0].mxu0
  %257 = vmatprep.mubr.f32.mxu0 0.0
  %258 = vmatmul.mubr.f32.gmra.mrb[0].mxu0 %v112
  %v259 = vpop.f32.mrb[0].mxu0
  %v260 = vadd.f32 %v63, %v259
  %v261 = vpop.f32.mrb[0].mxu0
  %262 = vdwg.mxu0
  %263 = vst [vmem:[#allocation2] sm:$0xff] %v185
  %264 = vst [vmem:[#allocation2 + $0x8] sm:$0xff] %v190
  %265 = vst [vmem:[#allocation2 + $0x10] sm:$0xff] %v195
  %266 = vst [vmem:[#allocation2 + $0x18] sm:$0xff] %v200
  %267 = vst [vmem:[#allocation2 + $0x20] sm:$0xff] %v205
  %268 = vst [vmem:[#allocation2 + $0x28] sm:$0xff] %v210
  %269 = vst [vmem:[#allocation2 + $0x30] sm:$0xff] %v215
  %270 = vst [vmem:[#allocation2 + $0x38] sm:$0xff] %v220
  %271 = vst [vmem:[#allocation2 + $0x40] sm:$0xff] %v225
  %272 = vst [vmem:[#allocation2 + $0x48] sm:$0xff] %v230
  %273 = vst [vmem:[#allocation2 + $0x50] sm:$0xff] %v235
  %274 = vst [vmem:[#allocation2 + $0x58] sm:$0xff] %v240
  %275 = vst [vmem:[#allocation2 + $0x60] sm:$0xff] %v245
  %276 = vst [vmem:[#allocation2 + $0x68] sm:$0xff] %v250
  %277 = vst [vmem:[#allocation2 + $0x70] sm:$0xff] %v255
  %278 = vst [vmem:[#allocation2 + $0x78] sm:$0xff] %v260
  %v279 = vld [vmem:[%s5] sm:$0xf]
  %v280 = vld [vmem:[%s5 + $0x4] sm:$0xf]
  %v281 = vld [vmem:[%s5 + $0x8] sm:$0xf]
  %v282 = vld [vmem:[%s5 + $0xc] sm:$0xf]
  %v283 = vld [vmem:[%s6] sm:$0xff]
  %v284 = vld [vmem:[%s6 + $0x8] sm:$0xff]
  %v285 = vld [vmem:[%s6 + $0x10] sm:$0xff]
  %v286 = vld [vmem:[%s6 + $0x18] sm:$0xff]
  %v287 = vld [vmem:[%s7] sm:$0x1]
  %v288 = vld [vmem:[#allocation2] sm:$0xff]
  %v293 = vunpack.c.l.b16 %v279
  %v294 = vunpack.c.l.b16 %v280
  %v295 = vunpack.c.l.b16 %v281
  %v296 = vunpack.c.l.b16 %v282
  %v297 = vpack.c.b16 %v294, %v293
  %v298 = vpack.c.b16 %v296, %v295
  %vm301 = vcmask 261120
  %v303 = vsel %vm301, 0, 0
  %305 = vmatprep.subr.bf16.mxu0 0
  %306 = vmatpush1.bf16.msra.mxu0 %v297
  %307 = vmatprep.subr.bf16.mxu0 0
  %308 = vmatpush1.bf16.msra.mxu0 %v298
  %309 = vmatprep.subr.bf16.mxu0 0
  %310 = vmatpush1.bf16.msra.mxu0 0
  %311 = vmatprep.subr.bf16.mxu0 0
  %312 = vmatpush1.bf16.msra.mxu0 0
  %313 = vmatprep.subr.bf16.mxu0 0
  %314 = vmatpush1.bf16.msra.mxu0 0
  %315 = vmatprep.subr.bf16.mxu0 0
  %316 = vmatpush1.bf16.msra.mxu0 0
  %317 = vmatprep.subr.bf16.mxu0 0
  %318 = vmatpush1.bf16.msra.mxu0 0
  %319 = vmatprep.subr.bf16.mxu0 0
  %320 = vmatpush1.bf16.msra.mxu0 0
  %321 = vmatprep.subr.bf16.mxu0 0
  %322 = vmatpush1.bf16.msra.mxu0 0
  %323 = vmatprep.subr.bf16.mxu0 0
  %324 = vmatpush1.bf16.msra.mxu0 0
  %325 = vmatprep.subr.bf16.mxu0 0
  %326 = vmatpush1.bf16.msra.mxu0 0
  %327 = vmatprep.subr.bf16.mxu0 0
  %328 = vmatpush1.bf16.msra.mxu0 0
  %329 = vmatprep.subr.bf16.mxu0 0
  %330 = vmatpush1.bf16.msra.mxu0 0
  %331 = vmatprep.subr.bf16.mxu0 0
  %332 = vmatpush1.bf16.msra.mxu0 0
  %333 = vmatprep.subr.bf16.mxu0 0
  %334 = vmatpush1.bf16.msra.mxu0 0
  %335 = vmatprep.subr.bf16.mxu0 0
  %336 = vmatpush1.bf16.msra.mxu0 0
  %337 = vmatprep.mubr.bf16.mxu0 0
  %338 = vmatmul.mubr.bf16.gmra.mrb[0].mxu0 %v303
  %v339 = vpop.f32.mrb[0].mxu0
  %v340 = vadd.f32 0.0, %v339
  %v341 = vpop.f32.mrb[0].mxu0
  %v342 = vpop.f32.mrb[0].mxu0
  %v343 = vpop.f32.mrb[0].mxu0
  %344 = vdwg.mxu0
  %v345 = vadd.f32 %v288, %v340
  %v346 = vxor.u32 %v345, 2147483648
  %v347 = vmul.f32 %v346, 1.442695
  %v348 = vpow.pop %v347
  %v349 = vadd.f32 %v348, 1.0
  %v350 = vrcp.pop %v349
  %v351 = vmul.f32 1.0, %v350
  %v352 = vtanh.pop %v345
  %v353 = vmul.f32 %v351, 0.0
  %355 = vrot.lane.b32.xlu0 %v352, 32
  %v356 = vpop.permute.xlu0 %355
  %v358 = vmul.f32 %v351, %v356
  %360 = vrot.lane.b32.xlu0 %v358, 32
  %v361 = vpop.permute.xlu0 %360
  %v363 = vadd.f32 %v353, %v361
  %v364 = vtanh.pop %v363
  %366 = vrot.lane.b32.xlu0 %v364, 32
  %v367 = vpop.permute.xlu0 %366
  %v369 = vmul.f32 %v351, %v367
  %v370 = vld [vmem:[%s1] sm:$0xff]
  %372 = vrot.lane.b32.xlu0 %v370, 64
  %v373 = vpop.permute.xlu0 %372
  %v375 = vmul.f32 %v369, %v373
  %v377 = vlaneseq
  %v378 = vshrl.u32 %v377, 7
  %v379 = vsub.s32 0, %v378
  %v380 = vrot.slane %v287, %v379
  %383 = vrot.lane.b32.xlu0 %v375, 64
  %v384 = vpop.permute.xlu0 %383
  %v385 = vsel %vm301, %v384, 0
  %387 = vmatprep.subr.mxu0 0.0
  %388 = vmatpush1.msra.mxu0 %v283
  %389 = vmatprep.subr.mxu0 0.0
  %390 = vmatpush1.msra.mxu0 %v284
  %391 = vmatprep.subr.mxu0 0.0
  %392 = vmatpush1.msra.mxu0 %v285
  %393 = vmatprep.subr.mxu0 0.0
  %394 = vmatpush1.msra.mxu0 %v286
  %395 = vmatprep.subr.mxu0 0.0
  %396 = vmatpush1.msra.mxu0 0.0
  %397 = vmatprep.subr.mxu0 0.0
  %398 = vmatpush1.msra.mxu0 0.0
  %399 = vmatprep.subr.mxu0 0.0
  %400 = vmatpush1.msra.mxu0 0.0
  %401 = vmatprep.subr.mxu0 0.0
  %402 = vmatpush1.msra.mxu0 0.0
  %403 = vmatprep.subr.mxu0 0.0
  %404 = vmatpush1.msra.mxu0 0.0
  %405 = vmatprep.subr.mxu0 0.0
  %406 = vmatpush1.msra.mxu0 0.0
  %407 = vmatprep.subr.mxu0 0.0
  %408 = vmatpush1.msra.mxu0 0.0
  %409 = vmatprep.subr.mxu0 0.0
  %410 = vmatpush1.msra.mxu0 0.0
  %411 = vmatprep.subr.mxu0 0.0
  %412 = vmatpush1.msra.mxu0 0.0
  %413 = vmatprep.subr.mxu0 0.0
  %414 = vmatpush1.msra.mxu0 0.0
  %415 = vmatprep.subr.mxu0 0.0
  %416 = vmatpush1.msra.mxu0 0.0
  %417 = vmatprep.subr.mxu0 0.0
  %418 = vmatpush1.msra.mxu0 0.0
  %419 = vmatprep.subr.mxu0 0.0
  %420 = vmatpush1.msra.mxu0 0.0
  %421 = vmatprep.subr.mxu0 0.0
  %422 = vmatpush1.msra.mxu0 0.0
  %423 = vmatprep.subr.mxu0 0.0
  %424 = vmatpush1.msra.mxu0 0.0
  %425 = vmatprep.subr.mxu0 0.0
  %426 = vmatpush1.msra.mxu0 0.0
  %427 = vmatprep.subr.mxu0 0.0
  %428 = vmatpush1.msra.mxu0 0.0
  %429 = vmatprep.subr.mxu0 0.0
  %430 = vmatpush1.msra.mxu0 0.0
  %431 = vmatprep.subr.mxu0 0.0
  %432 = vmatpush1.msra.mxu0 0.0
  %433 = vmatprep.subr.mxu0 0.0
  %434 = vmatpush1.msra.mxu0 0.0
  %435 = vmatprep.subr.mxu0 0.0
  %436 = vmatpush1.msra.mxu0 0.0
  %437 = vmatprep.subr.mxu0 0.0
  %438 = vmatpush1.msra.mxu0 0.0
  %439 = vmatprep.subr.mxu0 0.0
  %440 = vmatpush1.msra.mxu0 0.0
  %441 = vmatprep.subr.mxu0 0.0
  %442 = vmatpush1.msra.mxu0 0.0
  %443 = vmatprep.subr.mxu0 0.0
  %444 = vmatpush1.msra.mxu0 0.0
  %445 = vmatprep.subr.mxu0 0.0
  %446 = vmatpush1.msra.mxu0 0.0
  %447 = vmatprep.subr.mxu0 0.0
  %448 = vmatpush1.msra.mxu0 0.0
  %449 = vmatprep.subr.mxu0 0.0
  %450 = vmatpush1.msra.mxu0 0.0
  %451 = vmatprep.mubr.f32.mxu0 0.0
  %452 = vmatmul.mubr.f32.gmra.mrb[0].mxu0 %v385
  %v453 = vpop.f32.mrb[0].mxu0
  %v454 = vadd.f32 %v380, %v453
  %v455 = vpop.f32.mrb[0].mxu0
  %456 = vdwg.mxu0
  %457 = vst [vmem:[#allocation3] sm:$0xff] %v454
  %v458 = vld [vmem:[#allocation2 + $0x8] sm:$0xff]
  %v459 = vpack.c.bf16 %v369, %v369
  %461 = vrot.lane.b32.xlu0 %v459, 64
  %v462 = vpop.permute.xlu0 %461
  %v464 = vsel %vm301, %v462, 0
  %466 = vmatprep.subr.bf16.mxu0 0
  %467 = vmatpush1.bf16.msra.mxu0 %v297
  %468 = vmatprep.subr.bf16.mxu0 0
  %469 = vmatpush1.bf16.msra.mxu0 %v298
  %470 = vmatprep.subr.bf16.mxu0 0
  %471 = vmatpush1.bf16.msra.mxu0 0
  %472 = vmatprep.subr.bf16.mxu0 0
  %473 = vmatpush1.bf16.msra.mxu0 0
  %474 = vmatprep.subr.bf16.mxu0 0
  %475 = vmatpush1.bf16.msra.mxu0 0
  %476 = vmatprep.subr.bf16.mxu0 0
  %477 = vmatpush1.bf16.msra.mxu0 0
  %478 = vmatprep.subr.bf16.mxu0 0
  %479 = vmatpush1.bf16.msra.mxu0 0
  %480 = vmatprep.subr.bf16.mxu0 0
  %481 = vmatpush1.bf16.msra.mxu0 0
  %482 = vmatprep.subr.bf16.mxu0 0
  %483 = vmatpush1.bf16.msra.mxu0 0
  %484 = vmatprep.subr.bf16.mxu0 0
  %485 = vmatpush1.bf16.msra.mxu0 0
  %486 = vmatprep.subr.bf16.mxu0 0
  %487 = vmatpush1.bf16.msra.mxu0 0
  %488 = vmatprep.subr.bf16.mxu0 0
  %489 = vmatpush1.bf16.msra.mxu0 0
  %490 = vmatprep.subr.bf16.mxu0 0
  %491 = vmatpush1.bf16.msra.mxu0 0
  %492 = vmatprep.subr.bf16.mxu0 0
  %493 = vmatpush1.bf16.msra.mxu0 0
  %494 = vmatprep.subr.bf16.mxu0 0
  %495 = vmatpush1.bf16.msra.mxu0 0
  %496 = vmatprep.subr.bf16.mxu0 0
  %497 = vmatpush1.bf16.msra.mxu0 0
  %498 = vmatprep.mubr.bf16.mxu0 0
  %499 = vmatmul.mubr.bf16.gmra.mrb[0].mxu0 %v464
  %v500 = vpop.f32.mrb[0].mxu0
  %v501 = vadd.f32 0.0, %v500
  %v502 = vpop.f32.mrb[0].mxu0
  %v503 = vpop.f32.mrb[0].mxu0
  %v504 = vpop.f32.mrb[0].mxu0
  %505 = vdwg.mxu0
  %v506 = vadd.f32 %v458, %v501
  %v507 = vxor.u32 %v506, 2147483648
  %v508 = vmul.f32 %v507, 1.442695
  %v509 = vpow.pop %v508
  %v510 = vadd.f32 %v509, 1.0
  %v511 = vrcp.pop %v510
  %v512 = vmul.f32 1.0, %v511
  %v513 = vtanh.pop %v506
  %v514 = vmul.f32 %v512, %v363
  %516 = vrot.lane.b32.xlu0 %v513, 32
  %v517 = vpop.permute.xlu0 %516
  %v519 = vmul.f32 %v512, %v517
  %521 = vrot.lane.b32.xlu0 %v519, 32
  %v522 = vpop.permute.xlu0 %521
  %v524 = vadd.f32 %v514, %v522
  %v525 = vtanh.pop %v524
  %527 = vrot.lane.b32.xlu0 %v525, 32
  %v528 = vpop.permute.xlu0 %527
  %v530 = vmul.f32 %v512, %v528
  %v531 = vld [vmem:[%s1 + $0x8] sm:$0xff]
  %533 = vrot.lane.b32.xlu0 %v531, 64
  %v534 = vpop.permute.xlu0 %533
  %v536 = vmul.f32 %v530, %v534
  %538 = vrot.lane.b32.xlu0 %v536, 64
  %v539 = vpop.permute.xlu0 %538
  %v540 = vsel %vm301, %v539, 0
  %542 = vmatprep.subr.mxu0 0.0
  %543 = vmatpush1.msra.mxu0 %v283
  %544 = vmatprep.subr.mxu0 0.0
  %545 = vmatpush1.msra.mxu0 %v284
  %546 = vmatprep.subr.mxu0 0.0
  %547 = vmatpush1.msra.mxu0 %v285
  %548 = vmatprep.subr.mxu0 0.0
  %549 = vmatpush1.msra.mxu0 %v286
  %550 = vmatprep.subr.mxu0 0.0
  %551 = vmatpush1.msra.mxu0 0.0
  %552 = vmatprep.subr.mxu0 0.0
  %553 = vmatpush1.msra.mxu0 0.0
  %554 = vmatprep.subr.mxu0 0.0
  %555 = vmatpush1.msra.mxu0 0.0
  %556 = vmatprep.subr.mxu0 0.0
  %557 = vmatpush1.msra.mxu0 0.0
  %558 = vmatprep.subr.mxu0 0.0
  %559 = vmatpush1.msra.mxu0 0.0
  %560 = vmatprep.subr.mxu0 0.0
  %561 = vmatpush1.msra.mxu0 0.0
  %562 = vmatprep.subr.mxu0 0.0
  %563 = vmatpush1.msra.mxu0 0.0
  %564 = vmatprep.subr.mxu0 0.0
  %565 = vmatpush1.msra.mxu0 0.0
  %566 = vmatprep.subr.mxu0 0.0
  %567 = vmatpush1.msra.mxu0 0.0
  %568 = vmatprep.subr.mxu0 0.0
  %569 = vmatpush1.msra.mxu0 0.0
  %570 = vmatprep.subr.mxu0 0.0
  %571 = vmatpush1.msra.mxu0 0.0
  %572 = vmatprep.subr.mxu0 0.0
  %573 = vmatpush1.msra.mxu0 0.0
  %574 = vmatprep.subr.mxu0 0.0
  %575 = vmatpush1.msra.mxu0 0.0
  %576 = vmatprep.subr.mxu0 0.0
  %577 = vmatpush1.msra.mxu0 0.0
  %578 = vmatprep.subr.mxu0 0.0
  %579 = vmatpush1.msra.mxu0 0.0
  %580 = vmatprep.subr.mxu0 0.0
  %581 = vmatpush1.msra.mxu0 0.0
  %582 = vmatprep.subr.mxu0 0.0
  %583 = vmatpush1.msra.mxu0 0.0
  %584 = vmatprep.subr.mxu0 0.0
  %585 = vmatpush1.msra.mxu0 0.0
  %586 = vmatprep.subr.mxu0 0.0
  %587 = vmatpush1.msra.mxu0 0.0
  %588 = vmatprep.subr.mxu0 0.0
  %589 = vmatpush1.msra.mxu0 0.0
  %590 = vmatprep.subr.mxu0 0.0
  %591 = vmatpush1.msra.mxu0 0.0
  %592 = vmatprep.subr.mxu0 0.0
  %593 = vmatpush1.msra.mxu0 0.0
  %594 = vmatprep.subr.mxu0 0.0
  %595 = vmatpush1.msra.mxu0 0.0
  %596 = vmatprep.subr.mxu0 0.0
  %597 = vmatpush1.msra.mxu0 0.0
  %598 = vmatprep.subr.mxu0 0.0
  %599 = vmatpush1.msra.mxu0 0.0
  %600 = vmatprep.subr.mxu0 0.0
  %601 = vmatpush1.msra.mxu0 0.0
  %602 = vmatprep.subr.mxu0 0.0
  %603 = vmatpush1.msra.mxu0 0.0
  %604 = vmatprep.subr.mxu0 0.0
  %605 = vmatpush1.msra.mxu0 0.0
  %606 = vmatprep.mubr.f32.mxu0 0.0
  %607 = vmatmul.mubr.f32.gmra.mrb[0].mxu0 %v540
  %v608 = vpop.f32.mrb[0].mxu0
  %v609 = vadd.f32 %v380, %v608
  %v610 = vpop.f32.mrb[0].mxu0
  %611 = vdwg.mxu0
  %612 = vst [vmem:[#allocation3 + $0x8] sm:$0xff] %v609
  %v613 = vld [vmem:[#allocation2 + $0x10] sm:$0xff]
  %v614 = vpack.c.bf16 %v530, %v530
  %616 = vrot.lane.b32.xlu0 %v614, 64
  %v617 = vpop.permute.xlu0 %616
  %v619 = vsel %vm301, %v617, 0
  %621 = vmatprep.subr.bf16.mxu0 0
  %622 = vmatpush1.bf16.msra.mxu0 %v297
  %623 = vmatprep.subr.bf16.mxu0 0
  %624 = vmatpush1.bf16.msra.mxu0 %v298
  %625 = vmatprep.subr.bf16.mxu0 0
  %626 = vmatpush1.bf16.msra.mxu0 0
  %627 = vmatprep.subr.bf16.mxu0 0
  %628 = vmatpush1.bf16.msra.mxu0 0
  %629 = vmatprep.subr.bf16.mxu0 0
  %630 = vmatpush1.bf16.msra.mxu0 0
  %631 = vmatprep.subr.bf16.mxu0 0
  %632 = vmatpush1.bf16.msra.mxu0 0
  %633 = vmatprep.subr.bf16.mxu0 0
  %634 = vmatpush1.bf16.msra.mxu0 0
  %635 = vmatprep.subr.bf16.mxu0 0
  %636 = vmatpush1.bf16.msra.mxu0 0
  %637 = vmatprep.subr.bf16.mxu0 0
  %638 = vmatpush1.bf16.msra.mxu0 0
  %639 = vmatprep.subr.bf16.mxu0 0
  %640 = vmatpush1.bf16.msra.mxu0 0
  %641 = vmatprep.subr.bf16.mxu0 0
  %642 = vmatpush1.bf16.msra.mxu0 0
  %643 = vmatprep.subr.bf16.mxu0 0
  %644 = vmatpush1.bf16.msra.mxu0 0
  %645 = vmatprep.subr.bf16.mxu0 0
  %646 = vmatpush1.bf16.msra.mxu0 0
  %647 = vmatprep.subr.bf16.mxu0 0
  %648 = vmatpush1.bf16.msra.mxu0 0
  %649 = vmatprep.subr.bf16.mxu0 0
  %650 = vmatpush1.bf16.msra.mxu0 0
  %651 = vmatprep.subr.bf16.mxu0 0
  %652 = vmatpush1.bf16.msra.mxu0 0
  %653 = vmatprep.mubr.bf16.mxu0 0
  %654 = vmatmul.mubr.bf16.gmra.mrb[0].mxu0 %v619
  %v655 = vpop.f32.mrb[0].mxu0
  %v656 = vadd.f32 0.0, %v655
  %v657 = vpop.f32.mrb[0].mxu0
  %v658 = vpop.f32.mrb[0].mxu0
  %v659 = vpop.f32.mrb[0].mxu0
  %660 = vdwg.mxu0
  %v661 = vadd.f32 %v613, %v656
  %v662 = vxor.u32 %v661, 2147483648
  %v663 = vmul.f32 %v662, 1.442695
  %v664 = vpow.pop %v663
  %v665 = vadd.f32 %v664, 1.0
  %v666 = vrcp.pop %v665
  %v667 = vmul.f32 1.0, %v666
  %v668 = vtanh.pop %v661
  %v669 = vmul.f32 %v667, %v524
  %671 = vrot.lane.b32.xlu0 %v668, 32
  %v672 = vpop.permute.xlu0 %671
  %v674 = vmul.f32 %v667, %v672
  %676 = vrot.lane.b32.xlu0 %v674, 32
  %v677 = vpop.permute.xlu0 %676
  %v679 = vadd.f32 %v669, %v677
  %v680 = vtanh.pop %v679
  %682 = vrot.lane.b32.xlu0 %v680, 32
  %v683 = vpop.permute.xlu0 %682
  %v685 = vmul.f32 %v667, %v683
  %v686 = vld [vmem:[%s1 + $0x10] sm:$0xff]
  %688 = vrot.lane.b32.xlu0 %v686, 64
  %v689 = vpop.permute.xlu0 %688
  %v691 = vmul.f32 %v685, %v689
  %693 = vrot.lane.b32.xlu0 %v691, 64
  %v694 = vpop.permute.xlu0 %693
  %v695 = vsel %vm301, %v694, 0
  %697 = vmatprep.subr.mxu0 0.0
  %698 = vmatpush1.msra.mxu0 %v283
  %699 = vmatprep.subr.mxu0 0.0
  %700 = vmatpush1.msra.mxu0 %v284
  %701 = vmatprep.subr.mxu0 0.0
  %702 = vmatpush1.msra.mxu0 %v285
  %703 = vmatprep.subr.mxu0 0.0
  %704 = vmatpush1.msra.mxu0 %v286
  %705 = vmatprep.subr.mxu0 0.0
  %706 = vmatpush1.msra.mxu0 0.0
  %707 = vmatprep.subr.mxu0 0.0
  %708 = vmatpush1.msra.mxu0 0.0
  %709 = vmatprep.subr.mxu0 0.0
  %710 = vmatpush1.msra.mxu0 0.0
  %711 = vmatprep.subr.mxu0 0.0
  %712 = vmatpush1.msra.mxu0 0.0
  %713 = vmatprep.subr.mxu0 0.0
  %714 = vmatpush1.msra.mxu0 0.0
  %715 = vmatprep.subr.mxu0 0.0
  %716 = vmatpush1.msra.mxu0 0.0
  %717 = vmatprep.subr.mxu0 0.0
  %718 = vmatpush1.msra.mxu0 0.0
  %719 = vmatprep.subr.mxu0 0.0
  %720 = vmatpush1.msra.mxu0 0.0
  %721 = vmatprep.subr.mxu0 0.0
  %722 = vmatpush1.msra.mxu0 0.0
  %723 = vmatprep.subr.mxu0 0.0
  %724 = vmatpush1.msra.mxu0 0.0
  %725 = vmatprep.subr.mxu0 0.0
  %726 = vmatpush1.msra.mxu0 0.0
  %727 = vmatprep.subr.mxu0 0.0
  %728 = vmatpush1.msra.mxu0 0.0
  %729 = vmatprep.subr.mxu0 0.0
  %730 = vmatpush1.msra.mxu0 0.0
  %731 = vmatprep.subr.mxu0 0.0
  %732 = vmatpush1.msra.mxu0 0.0
  %733 = vmatprep.subr.mxu0 0.0
  %734 = vmatpush1.msra.mxu0 0.0
  %735 = vmatprep.subr.mxu0 0.0
  %736 = vmatpush1.msra.mxu0 0.0
  %737 = vmatprep.subr.mxu0 0.0
  %738 = vmatpush1.msra.mxu0 0.0
  %739 = vmatprep.subr.mxu0 0.0
  %740 = vmatpush1.msra.mxu0 0.0
  %741 = vmatprep.subr.mxu0 0.0
  %742 = vmatpush1.msra.mxu0 0.0
  %743 = vmatprep.subr.mxu0 0.0
  %744 = vmatpush1.msra.mxu0 0.0
  %745 = vmatprep.subr.mxu0 0.0
  %746 = vmatpush1.msra.mxu0 0.0
  %747 = vmatprep.subr.mxu0 0.0
  %748 = vmatpush1.msra.mxu0 0.0
  %749 = vmatprep.subr.mxu0 0.0
  %750 = vmatpush1.msra.mxu0 0.0
  %751 = vmatprep.subr.mxu0 0.0
  %752 = vmatpush1.msra.mxu0 0.0
  %753 = vmatprep.subr.mxu0 0.0
  %754 = vmatpush1.msra.mxu0 0.0
  %755 = vmatprep.subr.mxu0 0.0
  %756 = vmatpush1.msra.mxu0 0.0
  %757 = vmatprep.subr.mxu0 0.0
  %758 = vmatpush1.msra.mxu0 0.0
  %759 = vmatprep.subr.mxu0 0.0
  %760 = vmatpush1.msra.mxu0 0.0
  %761 = vmatprep.mubr.f32.mxu0 0.0
  %762 = vmatmul.mubr.f32.gmra.mrb[0].mxu0 %v695
  %v763 = vpop.f32.mrb[0].mxu0
  %v764 = vadd.f32 %v380, %v763
  %v765 = vpop.f32.mrb[0].mxu0
  %766 = vdwg.mxu0
  %767 = vst [vmem:[#allocation3 + $0x10] sm:$0xff] %v764
  %v768 = vld [vmem:[#allocation2 + $0x18] sm:$0xff]
  %v769 = vpack.c.bf16 %v685, %v685
  %771 = vrot.lane.b32.xlu0 %v769, 64
  %v772 = vpop.permute.xlu0 %771
  %v774 = vsel %vm301, %v772, 0
  %776 = vmatprep.subr.bf16.mxu0 0
  %777 = vmatpush1.bf16.msra.mxu0 %v297
  %778 = vmatprep.subr.bf16.mxu0 0
  %779 = vmatpush1.bf16.msra.mxu0 %v298
  %780 = vmatprep.subr.bf16.mxu0 0
  %781 = vmatpush1.bf16.msra.mxu0 0
  %782 = vmatprep.subr.bf16.mxu0 0
  %783 = vmatpush1.bf16.msra.mxu0 0
  %784 = vmatprep.subr.bf16.mxu0 0
  %785 = vmatpush1.bf16.msra.mxu0 0
  %786 = vmatprep.subr.bf16.mxu0 0
  %787 = vmatpush1.bf16.msra.mxu0 0
  %788 = vmatprep.subr.bf16.mxu0 0
  %789 = vmatpush1.bf16.msra.mxu0 0
  %790 = vmatprep.subr.bf16.mxu0 0
  %791 = vmatpush1.bf16.msra.mxu0 0
  %792 = vmatprep.subr.bf16.mxu0 0
  %793 = vmatpush1.bf16.msra.mxu0 0
  %794 = vmatprep.subr.bf16.mxu0 0
  %795 = vmatpush1.bf16.msra.mxu0 0
  %796 = vmatprep.subr.bf16.mxu0 0
  %797 = vmatpush1.bf16.msra.mxu0 0
  %798 = vmatprep.subr.bf16.mxu0 0
  %799 = vmatpush1.bf16.msra.mxu0 0
  %800 = vmatprep.subr.bf16.mxu0 0
  %801 = vmatpush1.bf16.msra.mxu0 0
  %802 = vmatprep.subr.bf16.mxu0 0
  %803 = vmatpush1.bf16.msra.mxu0 0
  %804 = vmatprep.subr.bf16.mxu0 0
  %805 = vmatpush1.bf16.msra.mxu0 0
  %806 = vmatprep.subr.bf16.mxu0 0
  %807 = vmatpush1.bf16.msra.mxu0 0
  %808 = vmatprep.mubr.bf16.mxu0 0
  %809 = vmatmul.mubr.bf16.gmra.mrb[0].mxu0 %v774
  %v810 = vpop.f32.mrb[0].mxu0
  %v811 = vadd.f32 0.0, %v810
  %v812 = vpop.f32.mrb[0].mxu0
  %v813 = vpop.f32.mrb[0].mxu0
  %v814 = vpop.f32.mrb[0].mxu0
  %815 = vdwg.mxu0
  %v816 = vadd.f32 %v768, %v811
  %v817 = vxor.u32 %v816, 2147483648
  %v818 = vmul.f32 %v817, 1.442695
  %v819 = vpow.pop %v818
  %v820 = vadd.f32 %v819, 1.0
  %v821 = vrcp.pop %v820
  %v822 = vmul.f32 1.0, %v821
  %v823 = vtanh.pop %v816
  %v824 = vmul.f32 %v822, %v679
  %826 = vrot.lane.b32.xlu0 %v823, 32
  %v827 = vpop.permute.xlu0 %826
  %v829 = vmul.f32 %v822, %v827
  %831 = vrot.lane.b32.xlu0 %v829, 32
  %v832 = vpop.permute.xlu0 %831
  %v834 = vadd.f32 %v824, %v832
  %v835 = vtanh.pop %v834
  %837 = vrot.lane.b32.xlu0 %v835, 32
  %v838 = vpop.permute.xlu0 %837
  %v840 = vmul.f32 %v822, %v838
  %v841 = vld [vmem:[%s1 + $0x18] sm:$0xff]
  %843 = vrot.lane.b32.xlu0 %v841, 64
  %v844 = vpop.permute.xlu0 %843
  %v846 = vmul.f32 %v840, %v844
  %848 = vrot.lane.b32.xlu0 %v846, 64
  %v849 = vpop.permute.xlu0 %848
  %v850 = vsel %vm301, %v849, 0
  %852 = vmatprep.subr.mxu0 0.0
  %853 = vmatpush1.msra.mxu0 %v283
  %854 = vmatprep.subr.mxu0 0.0
  %855 = vmatpush1.msra.mxu0 %v284
  %856 = vmatprep.subr.mxu0 0.0
  %857 = vmatpush1.msra.mxu0 %v285
  %858 = vmatprep.subr.mxu0 0.0
  %859 = vmatpush1.msra.mxu0 %v286
  %860 = vmatprep.subr.mxu0 0.0
  %861 = vmatpush1.msra.mxu0 0.0
  %862 = vmatprep.subr.mxu0 0.0
  %863 = vmatpush1.msra.mxu0 0.0
  %864 = vmatprep.subr.mxu0 0.0
  %865 = vmatpush1.msra.mxu0 0.0
  %866 = vmatprep.subr.mxu0 0.0
  %867 = vmatpush1.msra.mxu0 0.0
  %868 = vmatprep.subr.mxu0 0.0
  %869 = vmatpush1.msra.mxu0 0.0
  %870 = vmatprep.subr.mxu0 0.0
  %871 = vmatpush1.msra.mxu0 0.0
  %872 = vmatprep.subr.mxu0 0.0
  %873 = vmatpush1.msra.mxu0 0.0
  %874 = vmatprep.subr.mxu0 0.0
  %875 = vmatpush1.msra.mxu0 0.0
  %876 = vmatprep.subr.mxu0 0.0
  %877 = vmatpush1.msra.mxu0 0.0
  %878 = vmatprep.subr.mxu0 0.0
  %879 = vmatpush1.msra.mxu0 0.0
  %880 = vmatprep.subr.mxu0 0.0
  %881 = vmatpush1.msra.mxu0 0.0
  %882 = vmatprep.subr.mxu0 0.0
  %883 = vmatpush1.msra.mxu0 0.0
  %884 = vmatprep.subr.mxu0 0.0
  %885 = vmatpush1.msra.mxu0 0.0
  %886 = vmatprep.subr.mxu0 0.0
  %887 = vmatpush1.msra.mxu0 0.0
  %888 = vmatprep.subr.mxu0 0.0
  %889 = vmatpush1.msra.mxu0 0.0
  %890 = vmatprep.subr.mxu0 0.0
  %891 = vmatpush1.msra.mxu0 0.0
  %892 = vmatprep.subr.mxu0 0.0
  %893 = vmatpush1.msra.mxu0 0.0
  %894 = vmatprep.subr.mxu0 0.0
  %895 = vmatpush1.msra.mxu0 0.0
  %896 = vmatprep.subr.mxu0 0.0
  %897 = vmatpush1.msra.mxu0 0.0
  %898 = vmatprep.subr.mxu0 0.0
  %899 = vmatpush1.msra.mxu0 0.0
  %900 = vmatprep.subr.mxu0 0.0
  %901 = vmatpush1.msra.mxu0 0.0
  %902 = vmatprep.subr.mxu0 0.0
  %903 = vmatpush1.msra.mxu0 0.0
  %904 = vmatprep.subr.mxu0 0.0
  %905 = vmatpush1.msra.mxu0 0.0
  %906 = vmatprep.subr.mxu0 0.0
  %907 = vmatpush1.msra.mxu0 0.0
  %908 = vmatprep.subr.mxu0 0.0
  %909 = vmatpush1.msra.mxu0 0.0
  %910 = vmatprep.subr.mxu0 0.0
  %911 = vmatpush1.msra.mxu0 0.0
  %912 = vmatprep.subr.mxu0 0.0
  %913 = vmatpush1.msra.mxu0 0.0
  %914 = vmatprep.subr.mxu0 0.0
  %915 = vmatpush1.msra.mxu0 0.0
  %916 = vmatprep.mubr.f32.mxu0 0.0
  %917 = vmatmul.mubr.f32.gmra.mrb[0].mxu0 %v850
  %v918 = vpop.f32.mrb[0].mxu0
  %v919 = vadd.f32 %v380, %v918
  %v920 = vpop.f32.mrb[0].mxu0
  %921 = vdwg.mxu0
  %922 = vst [vmem:[#allocation3 + $0x18] sm:$0xff] %v919
  %v923 = vld [vmem:[#allocation2 + $0x20] sm:$0xff]
  %v924 = vpack.c.bf16 %v840, %v840
  %926 = vrot.lane.b32.xlu0 %v924, 64
  %v927 = vpop.permute.xlu0 %926
  %v929 = vsel %vm301, %v927, 0
  %931 = vmatprep.subr.bf16.mxu0 0
  %932 = vmatpush1.bf16.msra.mxu0 %v297
  %933 = vmatprep.subr.bf16.mxu0 0
  %934 = vmatpush1.bf16.msra.mxu0 %v298
  %935 = vmatprep.subr.bf16.mxu0 0
  %936 = vmatpush1.bf16.msra.mxu0 0
  %937 = vmatprep.subr.bf16.mxu0 0
  %938 = vmatpush1.bf16.msra.mxu0 0
  %939 = vmatprep.subr.bf16.mxu0 0
  %940 = vmatpush1.bf16.msra.mxu0 0
  %941 = vmatprep.subr.bf16.mxu0 0
  %942 = vmatpush1.bf16.msra.mxu0 0
  %943 = vmatprep.subr.bf16.mxu0 0
  %944 = vmatpush1.bf16.msra.mxu0 0
  %945 = vmatprep.subr.bf16.mxu0 0
  %946 = vmatpush1.bf16.msra.mxu0 0
  %947 = vmatprep.subr.bf16.mxu0 0
  %948 = vmatpush1.bf16.msra.mxu0 0
  %949 = vmatprep.subr.bf16.mxu0 0
  %950 = vmatpush1.bf16.msra.mxu0 0
  %951 = vmatprep.subr.bf16.mxu0 0
  %952 = vmatpush1.bf16.msra.mxu0 0
  %953 = vmatprep.subr.bf16.mxu0 0
  %954 = vmatpush1.bf16.msra.mxu0 0
  %955 = vmatprep.subr.bf16.mxu0 0
  %956 = vmatpush1.bf16.msra.mxu0 0
  %957 = vmatprep.subr.bf16.mxu0 0
  %958 = vmatpush1.bf16.msra.mxu0 0
  %959 = vmatprep.subr.bf16.mxu0 0
  %960 = vmatpush1.bf16.msra.mxu0 0
  %961 = vmatprep.subr.bf16.mxu0 0
  %962 = vmatpush1.bf16.msra.mxu0 0
  %963 = vmatprep.mubr.bf16.mxu0 0
  %964 = vmatmul.mubr.bf16.gmra.mrb[0].mxu0 %v929
  %v965 = vpop.f32.mrb[0].mxu0
  %v966 = vadd.f32 0.0, %v965
  %v967 = vpop.f32.mrb[0].mxu0
  %v968 = vpop.f32.mrb[0].mxu0
  %v969 = vpop.f32.mrb[0].mxu0
  %970 = vdwg.mxu0
  %v971 = vadd.f32 %v923, %v966
  %v972 = vxor.u32 %v971, 2147483648
  %v973 = vmul.f32 %v972, 1.442695
  %v974 = vpow.pop %v973
  %v975 = vadd.f32 %v974, 1.0
  %v976 = vrcp.pop %v975
  %v977 = vmul.f32 1.0, %v976
  %v978 = vtanh.pop %v971
  %v979 = vmul.f32 %v977, %v834
  %981 = vrot.lane.b32.xlu0 %v978, 32
  %v982 = vpop.permute.xlu0 %981
  %v984 = vmul.f32 %v977, %v982
  %986 = vrot.lane.b32.xlu0 %v984, 32
  %v987 = vpop.permute.xlu0 %986
  %v989 = vadd.f32 %v979, %v987
  %v990 = vtanh.pop %v989
  %992 = vrot.lane.b32.xlu0 %v990, 32
  %v993 = vpop.permute.xlu0 %992
  %v995 = vmul.f32 %v977, %v993
  %v996 = vld [vmem:[%s1 + $0x20] sm:$0xff]
  %998 = vrot.lane.b32.xlu0 %v996, 64
  %v999 = vpop.permute.xlu0 %998
  %v1001 = vmul.f32 %v995, %v999
  %1003 = vrot.lane.b32.xlu0 %v1001, 64
  %v1004 = vpop.permute.xlu0 %1003
  %v1005 = vsel %vm301, %v1004, 0
  %1007 = vmatprep.subr.mxu0 0.0
  %1008 = vmatpush1.msra.mxu0 %v283
  %1009 = vmatprep.subr.mxu0 0.0
  %1010 = vmatpush1.msra.mxu0 %v284
  %1011 = vmatprep.subr.mxu0 0.0
  %1012 = vmatpush1.msra.mxu0 %v285
  %1013 = vmatprep.subr.mxu0 0.0
  %1014 = vmatpush1.msra.mxu0 %v286
  %1015 = vmatprep.subr.mxu0 0.0
  %1016 = vmatpush1.msra.mxu0 0.0
  %1017 = vmatprep.subr.mxu0 0.0
  %1018 = vmatpush1.msra.mxu0 0.0
  %1019 = vmatprep.subr.mxu0 0.0
  %1020 = vmatpush1.msra.mxu0 0.0
  %1021 = vmatprep.subr.mxu0 0.0
  %1022 = vmatpush1.msra.mxu0 0.0
  %1023 = vmatprep.subr.mxu0 0.0
  %1024 = vmatpush1.msra.mxu0 0.0
  %1025 = vmatprep.subr.mxu0 0.0
  %1026 = vmatpush1.msra.mxu0 0.0
  %1027 = vmatprep.subr.mxu0 0.0
  %1028 = vmatpush1.msra.mxu0 0.0
  %1029 = vmatprep.subr.mxu0 0.0
  %1030 = vmatpush1.msra.mxu0 0.0
  %1031 = vmatprep.subr.mxu0 0.0
  %1032 = vmatpush1.msra.mxu0 0.0
  %1033 = vmatprep.subr.mxu0 0.0
  %1034 = vmatpush1.msra.mxu0 0.0
  %1035 = vmatprep.subr.mxu0 0.0
  %1036 = vmatpush1.msra.mxu0 0.0
  %1037 = vmatprep.subr.mxu0 0.0
  %1038 = vmatpush1.msra.mxu0 0.0
  %1039 = vmatprep.subr.mxu0 0.0
  %1040 = vmatpush1.msra.mxu0 0.0
  %1041 = vmatprep.subr.mxu0 0.0
  %1042 = vmatpush1.msra.mxu0 0.0
  %1043 = vmatprep.subr.mxu0 0.0
  %1044 = vmatpush1.msra.mxu0 0.0
  %1045 = vmatprep.subr.mxu0 0.0
  %1046 = vmatpush1.msra.mxu0 0.0
  %1047 = vmatprep.subr.mxu0 0.0
  %1048 = vmatpush1.msra.mxu0 0.0
  %1049 = vmatprep.subr.mxu0 0.0
  %1050 = vmatpush1.msra.mxu0 0.0
  %1051 = vmatprep.subr.mxu0 0.0
  %1052 = vmatpush1.msra.mxu0 0.0
  %1053 = vmatprep.subr.mxu0 0.0
  %1054 = vmatpush1.msra.mxu0 0.0
  %1055 = vmatprep.subr.mxu0 0.0
  %1056 = vmatpush1.msra.mxu0 0.0
  %1057 = vmatprep.subr.mxu0 0.0
  %1058 = vmatpush1.msra.mxu0 0.0
  %1059 = vmatprep.subr.mxu0 0.0
  %1060 = vmatpush1.msra.mxu0 0.0
  %1061 = vmatprep.subr.mxu0 0.0
  %1062 = vmatpush1.msra.mxu0 0.0
  %1063 = vmatprep.subr.mxu0 0.0
  %1064 = vmatpush1.msra.mxu0 0.0
  %1065 = vmatprep.subr.mxu0 0.0
  %1066 = vmatpush1.msra.mxu0 0.0
  %1067 = vmatprep.subr.mxu0 0.0
  %1068 = vmatpush1.msra.mxu0 0.0
  %1069 = vmatprep.subr.mxu0 0.0
  %1070 = vmatpush1.msra.mxu0 0.0
  %1071 = vmatprep.mubr.f32.mxu0 0.0
  %1072 = vmatmul.mubr.f32.gmra.mrb[0].mxu0 %v1005
  %v1073 = vpop.f32.mrb[0].mxu0
  %v1074 = vadd.f32 %v380, %v1073
  %v1075 = vpop.f32.mrb[0].mxu0
  %1076 = vdwg.mxu0
  %1077 = vst [vmem:[#allocation3 + $0x20] sm:$0xff] %v1074
  %v1078 = vld [vmem:[#allocation2 + $0x28] sm:$0xff]
  %v1079 = vpack.c.bf16 %v995, %v995
  %1081 = vrot.lane.b32.xlu0 %v1079, 64
  %v1082 = vpop.permute.xlu0 %1081
  %v1084 = vsel %vm301, %v1082, 0
  %1086 = vmatprep.subr.bf16.mxu0 0
  %1087 = vmatpush1.bf16.msra.mxu0 %v297
  %1088 = vmatprep.subr.bf16.mxu0 0
  %1089 = vmatpush1.bf16.msra.mxu0 %v298
  %1090 = vmatprep.subr.bf16.mxu0 0
  %1091 = vmatpush1.bf16.msra.mxu0 0
  %1092 = vmatprep.subr.bf16.mxu0 0
  %1093 = vmatpush1.bf16.msra.mxu0 0
  %1094 = vmatprep.subr.bf16.mxu0 0
  %1095 = vmatpush1.bf16.msra.mxu0 0
  %1096 = vmatprep.subr.bf16.mxu0 0
  %1097 = vmatpush1.bf16.msra.mxu0 0
  %1098 = vmatprep.subr.bf16.mxu0 0
  %1099 = vmatpush1.bf16.msra.mxu0 0
  %1100 = vmatprep.subr.bf16.mxu0 0
  %1101 = vmatpush1.bf16.msra.mxu0 0
  %1102 = vmatprep.subr.bf16.mxu0 0
  %1103 = vmatpush1.bf16.msra.mxu0 0
  %1104 = vmatprep.subr.bf16.mxu0 0
  %1105 = vmatpush1.bf16.msra.mxu0 0
  %1106 = vmatprep.subr.bf16.mxu0 0
  %1107 = vmatpush1.bf16.msra.mxu0 0
  %1108 = vmatprep.subr.bf16.mxu0 0
  %1109 = vmatpush1.bf16.msra.mxu0 0
  %1110 = vmatprep.subr.bf16.mxu0 0
  %1111 = vmatpush1.bf16.msra.mxu0 0
  %1112 = vmatprep.subr.bf16.mxu0 0
  %1113 = vmatpush1.bf16.msra.mxu0 0
  %1114 = vmatprep.subr.bf16.mxu0 0
  %1115 = vmatpush1.bf16.msra.mxu0 0
  %1116 = vmatprep.subr.bf16.mxu0 0
  %1117 = vmatpush1.bf16.msra.mxu0 0
  %1118 = vmatprep.mubr.bf16.mxu0 0
  %1119 = vmatmul.mubr.bf16.gmra.mrb[0].mxu0 %v1084
  %v1120 = vpop.f32.mrb[0].mxu0
  %v1121 = vadd.f32 0.0, %v1120
  %v1122 = vpop.f32.mrb[0].mxu0
  %v1123 = vpop.f32.mrb[0].mxu0
  %v1124 = vpop.f32.mrb[0].mxu0
  %1125 = vdwg.mxu0
  %v1126 = vadd.f32 %v1078, %v1121
  %v1127 = vxor.u32 %v1126, 2147483648
  %v1128 = vmul.f32 %v1127, 1.442695
  %v1129 = vpow.pop %v1128
  %v1130 = vadd.f32 %v1129, 1.0
  %v1131 = vrcp.pop %v1130
  %v1132 = vmul.f32 1.0, %v1131
  %v1133 = vtanh.pop %v1126
  %v1134 = vmul.f32 %v1132, %v989
  %1136 = vrot.lane.b32.xlu0 %v1133, 32
  %v1137 = vpop.permute.xlu0 %1136
  %v1139 = vmul.f32 %v1132, %v1137
  %1141 = vrot.lane.b32.xlu0 %v1139, 32
  %v1142 = vpop.permute.xlu0 %1141
  %v1144 = vadd.f32 %v1134, %v1142
  %v1145 = vtanh.pop %v1144
  %1147 = vrot.lane.b32.xlu0 %v1145, 32
  %v1148 = vpop.permute.xlu0 %1147
  %v1150 = vmul.f32 %v1132, %v1148
  %v1151 = vld [vmem:[%s1 + $0x28] sm:$0xff]
  %1153 = vrot.lane.b32.xlu0 %v1151, 64
  %v1154 = vpop.permute.xlu0 %1153
  %v1156 = vmul.f32 %v1150, %v1154
  %1158 = vrot.lane.b32.xlu0 %v1156, 64
  %v1159 = vpop.permute.xlu0 %1158
  %v1160 = vsel %vm301, %v1159, 0
  %1162 = vmatprep.subr.mxu0 0.0
  %1163 = vmatpush1.msra.mxu0 %v283
  %1164 = vmatprep.subr.mxu0 0.0
  %1165 = vmatpush1.msra.mxu0 %v284
  %1166 = vmatprep.subr.mxu0 0.0
  %1167 = vmatpush1.msra.mxu0 %v285
  %1168 = vmatprep.subr.mxu0 0.0
  %1169 = vmatpush1.msra.mxu0 %v286
  %1170 = vmatprep.subr.mxu0 0.0
  %1171 = vmatpush1.msra.mxu0 0.0
  %1172 = vmatprep.subr.mxu0 0.0
  %1173 = vmatpush1.msra.mxu0 0.0
  %1174 = vmatprep.subr.mxu0 0.0
  %1175 = vmatpush1.msra.mxu0 0.0
  %1176 = vmatprep.subr.mxu0 0.0
  %1177 = vmatpush1.msra.mxu0 0.0
  %1178 = vmatprep.subr.mxu0 0.0
  %1179 = vmatpush1.msra.mxu0 0.0
  %1180 = vmatprep.subr.mxu0 0.0
  %1181 = vmatpush1.msra.mxu0 0.0
  %1182 = vmatprep.subr.mxu0 0.0
  %1183 = vmatpush1.msra.mxu0 0.0
  %1184 = vmatprep.subr.mxu0 0.0
  %1185 = vmatpush1.msra.mxu0 0.0
  %1186 = vmatprep.subr.mxu0 0.0
  %1187 = vmatpush1.msra.mxu0 0.0
  %1188 = vmatprep.subr.mxu0 0.0
  %1189 = vmatpush1.msra.mxu0 0.0
  %1190 = vmatprep.subr.mxu0 0.0
  %1191 = vmatpush1.msra.mxu0 0.0
  %1192 = vmatprep.subr.mxu0 0.0
  %1193 = vmatpush1.msra.mxu0 0.0
  %1194 = vmatprep.subr.mxu0 0.0
  %1195 = vmatpush1.msra.mxu0 0.0
  %1196 = vmatprep.subr.mxu0 0.0
  %1197 = vmatpush1.msra.mxu0 0.0
  %1198 = vmatprep.subr.mxu0 0.0
  %1199 = vmatpush1.msra.mxu0 0.0
  %1200 = vmatprep.subr.mxu0 0.0
  %1201 = vmatpush1.msra.mxu0 0.0
  %1202 = vmatprep.subr.mxu0 0.0
  %1203 = vmatpush1.msra.mxu0 0.0
  %1204 = vmatprep.subr.mxu0 0.0
  %1205 = vmatpush1.msra.mxu0 0.0
  %1206 = vmatprep.subr.mxu0 0.0
  %1207 = vmatpush1.msra.mxu0 0.0
  %1208 = vmatprep.subr.mxu0 0.0
  %1209 = vmatpush1.msra.mxu0 0.0
  %1210 = vmatprep.subr.mxu0 0.0
  %1211 = vmatpush1.msra.mxu0 0.0
  %1212 = vmatprep.subr.mxu0 0.0
  %1213 = vmatpush1.msra.mxu0 0.0
  %1214 = vmatprep.subr.mxu0 0.0
  %1215 = vmatpush1.msra.mxu0 0.0
  %1216 = vmatprep.subr.mxu0 0.0
  %1217 = vmatpush1.msra.mxu0 0.0
  %1218 = vmatprep.subr.mxu0 0.0
  %1219 = vmatpush1.msra.mxu0 0.0
  %1220 = vmatprep.subr.mxu0 0.0
  %1221 = vmatpush1.msra.mxu0 0.0
  %1222 = vmatprep.subr.mxu0 0.0
  %1223 = vmatpush1.msra.mxu0 0.0
  %1224 = vmatprep.subr.mxu0 0.0
  %1225 = vmatpush1.msra.mxu0 0.0
  %1226 = vmatprep.mubr.f32.mxu0 0.0
  %1227 = vmatmul.mubr.f32.gmra.mrb[0].mxu0 %v1160
  %v1228 = vpop.f32.mrb[0].mxu0
  %v1229 = vadd.f32 %v380, %v1228
  %v1230 = vpop.f32.mrb[0].mxu0
  %1231 = vdwg.mxu0
  %1232 = vst [vmem:[#allocation3 + $0x28] sm:$0xff] %v1229
  %v1233 = vld [vmem:[#allocation2 + $0x30] sm:$0xff]
  %v1234 = vpack.c.bf16 %v1150, %v1150
  %1236 = vrot.lane.b32.xlu0 %v1234, 64
  %v1237 = vpop.permute.xlu0 %1236
  %v1239 = vsel %vm301, %v1237, 0
  %1241 = vmatprep.subr.bf16.mxu0 0
  %1242 = vmatpush1.bf16.msra.mxu0 %v297
  %1243 = vmatprep.subr.bf16.mxu0 0
  %1244 = vmatpush1.bf16.msra.mxu0 %v298
  %1245 = vmatprep.subr.bf16.mxu0 0
  %1246 = vmatpush1.bf16.msra.mxu0 0
  %1247 = vmatprep.subr.bf16.mxu0 0
  %1248 = vmatpush1.bf16.msra.mxu0 0
  %1249 = vmatprep.subr.bf16.mxu0 0
  %1250 = vmatpush1.bf16.msra.mxu0 0
  %1251 = vmatprep.subr.bf16.mxu0 0
  %1252 = vmatpush1.bf16.msra.mxu0 0
  %1253 = vmatprep.subr.bf16.mxu0 0
  %1254 = vmatpush1.bf16.msra.mxu0 0
  %1255 = vmatprep.subr.bf16.mxu0 0
  %1256 = vmatpush1.bf16.msra.mxu0 0
  %1257 = vmatprep.subr.bf16.mxu0 0
  %1258 = vmatpush1.bf16.msra.mxu0 0
  %1259 = vmatprep.subr.bf16.mxu0 0
  %1260 = vmatpush1.bf16.msra.mxu0 0
  %1261 = vmatprep.subr.bf16.mxu0 0
  %1262 = vmatpush1.bf16.msra.mxu0 0
  %1263 = vmatprep.subr.bf16.mxu0 0
  %1264 = vmatpush1.bf16.msra.mxu0 0
  %1265 = vmatprep.subr.bf16.mxu0 0
  %1266 = vmatpush1.bf16.msra.mxu0 0
  %1267 = vmatprep.subr.bf16.mxu0 0
  %1268 = vmatpush1.bf16.msra.mxu0 0
  %1269 = vmatprep.subr.bf16.mxu0 0
  %1270 = vmatpush1.bf16.msra.mxu0 0
  %1271 = vmatprep.subr.bf16.mxu0 0
  %1272 = vmatpush1.bf16.msra.mxu0 0
  %1273 = vmatprep.mubr.bf16.mxu0 0
  %1274 = vmatmul.mubr.bf16.gmra.mrb[0].mxu0 %v1239
  %v1275 = vpop.f32.mrb[0].mxu0
  %v1276 = vadd.f32 0.0, %v1275
  %v1277 = vpop.f32.mrb[0].mxu0
  %v1278 = vpop.f32.mrb[0].mxu0
  %v1279 = vpop.f32.mrb[0].mxu0
  %1280 = vdwg.mxu0
  %v1281 = vadd.f32 %v1233, %v1276
  %v1282 = vxor.u32 %v1281, 2147483648
  %v1283 = vmul.f32 %v1282, 1.442695
  %v1284 = vpow.pop %v1283
  %v1285 = vadd.f32 %v1284, 1.0
  %v1286 = vrcp.pop %v1285
  %v1287 = vmul.f32 1.0, %v1286
  %v1288 = vtanh.pop %v1281
  %v1289 = vmul.f32 %v1287, %v1144
  %1291 = vrot.lane.b32.xlu0 %v1288, 32
  %v1292 = vpop.permute.xlu0 %1291
  %v1294 = vmul.f32 %v1287, %v1292
  %1296 = vrot.lane.b32.xlu0 %v1294, 32
  %v1297 = vpop.permute.xlu0 %1296
  %v1299 = vadd.f32 %v1289, %v1297
  %v1300 = vtanh.pop %v1299
  %1302 = vrot.lane.b32.xlu0 %v1300, 32
  %v1303 = vpop.permute.xlu0 %1302
  %v1305 = vmul.f32 %v1287, %v1303
  %v1306 = vld [vmem:[%s1 + $0x30] sm:$0xff]
  %1308 = vrot.lane.b32.xlu0 %v1306, 64
  %v1309 = vpop.permute.xlu0 %1308
  %v1311 = vmul.f32 %v1305, %v1309
  %1313 = vrot.lane.b32.xlu0 %v1311, 64
  %v1314 = vpop.permute.xlu0 %1313
  %v1315 = vsel %vm301, %v1314, 0
  %1317 = vmatprep.subr.mxu0 0.0
  %1318 = vmatpush1.msra.mxu0 %v283
  %1319 = vmatprep.subr.mxu0 0.0
  %1320 = vmatpush1.msra.mxu0 %v284
  %1321 = vmatprep.subr.mxu0 0.0
  %1322 = vmatpush1.msra.mxu0 %v285
  %1323 = vmatprep.subr.mxu0 0.0
  %1324 = vmatpush1.msra.mxu0 %v286
  %1325 = vmatprep.subr.mxu0 0.0
  %1326 = vmatpush1.msra.mxu0 0.0
  %1327 = vmatprep.subr.mxu0 0.0
  %1328 = vmatpush1.msra.mxu0 0.0
  %1329 = vmatprep.subr.mxu0 0.0
  %1330 = vmatpush1.msra.mxu0 0.0
  %1331 = vmatprep.subr.mxu0 0.0
  %1332 = vmatpush1.msra.mxu0 0.0
  %1333 = vmatprep.subr.mxu0 0.0
  %1334 = vmatpush1.msra.mxu0 0.0
  %1335 = vmatprep.subr.mxu0 0.0
  %1336 = vmatpush1.msra.mxu0 0.0
  %1337 = vmatprep.subr.mxu0 0.0
  %1338 = vmatpush1.msra.mxu0 0.0
  %1339 = vmatprep.subr.mxu0 0.0
  %1340 = vmatpush1.msra.mxu0 0.0
  %1341 = vmatprep.subr.mxu0 0.0
  %1342 = vmatpush1.msra.mxu0 0.0
  %1343 = vmatprep.subr.mxu0 0.0
  %1344 = vmatpush1.msra.mxu0 0.0
  %1345 = vmatprep.subr.mxu0 0.0
  %1346 = vmatpush1.msra.mxu0 0.0
  %1347 = vmatprep.subr.mxu0 0.0
  %1348 = vmatpush1.msra.mxu0 0.0
  %1349 = vmatprep.subr.mxu0 0.0
  %1350 = vmatpush1.msra.mxu0 0.0
  %1351 = vmatprep.subr.mxu0 0.0
  %1352 = vmatpush1.msra.mxu0 0.0
  %1353 = vmatprep.subr.mxu0 0.0
  %1354 = vmatpush1.msra.mxu0 0.0
  %1355 = vmatprep.subr.mxu0 0.0
  %1356 = vmatpush1.msra.mxu0 0.0
  %1357 = vmatprep.subr.mxu0 0.0
  %1358 = vmatpush1.msra.mxu0 0.0
  %1359 = vmatprep.subr.mxu0 0.0
  %1360 = vmatpush1.msra.mxu0 0.0
  %1361 = vmatprep.subr.mxu0 0.0
  %1362 = vmatpush1.msra.mxu0 0.0
  %1363 = vmatprep.subr.mxu0 0.0
  %1364 = vmatpush1.msra.mxu0 0.0
  %1365 = vmatprep.subr.mxu0 0.0
  %1366 = vmatpush1.msra.mxu0 0.0
  %1367 = vmatprep.subr.mxu0 0.0
  %1368 = vmatpush1.msra.mxu0 0.0
  %1369 = vmatprep.subr.mxu0 0.0
  %1370 = vmatpush1.msra.mxu0 0.0
  %1371 = vmatprep.subr.mxu0 0.0
  %1372 = vmatpush1.msra.mxu0 0.0
  %1373 = vmatprep.subr.mxu0 0.0
  %1374 = vmatpush1.msra.mxu0 0.0
  %1375 = vmatprep.subr.mxu0 0.0
  %1376 = vmatpush1.msra.mxu0 0.0
  %1377 = vmatprep.subr.mxu0 0.0
  %1378 = vmatpush1.msra.mxu0 0.0
  %1379 = vmatprep.subr.mxu0 0.0
  %1380 = vmatpush1.msra.mxu0 0.0
  %1381 = vmatprep.mubr.f32.mxu0 0.0
  %1382 = vmatmul.mubr.f32.gmra.mrb[0].mxu0 %v1315
  %v1383 = vpop.f32.mrb[0].mxu0
  %v1384 = vadd.f32 %v380, %v1383
  %v1385 = vpop.f32.mrb[0].mxu0
  %1386 = vdwg.mxu0
  %1387 = vst [vmem:[#allocation3 + $0x30] sm:$0xff] %v1384
  %v1388 = vld [vmem:[#allocation2 + $0x38] sm:$0xff]
  %v1389 = vpack.c.bf16 %v1305, %v1305
  %1391 = vrot.lane.b32.xlu0 %v1389, 64
  %v1392 = vpop.permute.xlu0 %1391
  %v1394 = vsel %vm301, %v1392, 0
  %1396 = vmatprep.subr.bf16.mxu0 0
  %1397 = vmatpush1.bf16.msra.mxu0 %v297
  %1398 = vmatprep.subr.bf16.mxu0 0
  %1399 = vmatpush1.bf16.msra.mxu0 %v298
  %1400 = vmatprep.subr.bf16.mxu0 0
  %1401 = vmatpush1.bf16.msra.mxu0 0
  %1402 = vmatprep.subr.bf16.mxu0 0
  %1403 = vmatpush1.bf16.msra.mxu0 0
  %1404 = vmatprep.subr.bf16.mxu0 0
  %1405 = vmatpush1.bf16.msra.mxu0 0
  %1406 = vmatprep.subr.bf16.mxu0 0
  %1407 = vmatpush1.bf16.msra.mxu0 0
  %1408 = vmatprep.subr.bf16.mxu0 0
  %1409 = vmatpush1.bf16.msra.mxu0 0
  %1410 = vmatprep.subr.bf16.mxu0 0
  %1411 = vmatpush1.bf16.msra.mxu0 0
  %1412 = vmatprep.subr.bf16.mxu0 0
  %1413 = vmatpush1.bf16.msra.mxu0 0
  %1414 = vmatprep.subr.bf16.mxu0 0
  %1415 = vmatpush1.bf16.msra.mxu0 0
  %1416 = vmatprep.subr.bf16.mxu0 0
  %1417 = vmatpush1.bf16.msra.mxu0 0
  %1418 = vmatprep.subr.bf16.mxu0 0
  %1419 = vmatpush1.bf16.msra.mxu0 0
  %1420 = vmatprep.subr.bf16.mxu0 0
  %1421 = vmatpush1.bf16.msra.mxu0 0
  %1422 = vmatprep.subr.bf16.mxu0 0
  %1423 = vmatpush1.bf16.msra.mxu0 0
  %1424 = vmatprep.subr.bf16.mxu0 0
  %1425 = vmatpush1.bf16.msra.mxu0 0
  %1426 = vmatprep.subr.bf16.mxu0 0
  %1427 = vmatpush1.bf16.msra.mxu0 0
  %1428 = vmatprep.mubr.bf16.mxu0 0
  %1429 = vmatmul.mubr.bf16.gmra.mrb[0].mxu0 %v1394
  %v1430 = vpop.f32.mrb[0].mxu0
  %v1431 = vadd.f32 0.0, %v1430
  %v1432 = vpop.f32.mrb[0].mxu0
  %v1433 = vpop.f32.mrb[0].mxu0
  %v1434 = vpop.f32.mrb[0].mxu0
  %1435 = vdwg.mxu0
  %v1436 = vadd.f32 %v1388, %v1431
  %v1437 = vxor.u32 %v1436, 2147483648
  %v1438 = vmul.f32 %v1437, 1.442695
  %v1439 = vpow.pop %v1438
  %v1440 = vadd.f32 %v1439, 1.0
  %v1441 = vrcp.pop %v1440
  %v1442 = vmul.f32 1.0, %v1441
  %v1443 = vtanh.pop %v1436
  %v1444 = vmul.f32 %v1442, %v1299
  %1446 = vrot.lane.b32.xlu0 %v1443, 32
  %v1447 = vpop.permute.xlu0 %1446
  %v1449 = vmul.f32 %v1442, %v1447
  %1451 = vrot.lane.b32.xlu0 %v1449, 32
  %v1452 = vpop.permute.xlu0 %1451
  %v1454 = vadd.f32 %v1444, %v1452
  %v1455 = vtanh.pop %v1454
  %1457 = vrot.lane.b32.xlu0 %v1455, 32
  %v1458 = vpop.permute.xlu0 %1457
  %v1460 = vmul.f32 %v1442, %v1458
  %v1461 = vld [vmem:[%s1 + $0x38] sm:$0xff]
  %1463 = vrot.lane.b32.xlu0 %v1461, 64
  %v1464 = vpop.permute.xlu0 %1463
  %v1466 = vmul.f32 %v1460, %v1464
  %1468 = vrot.lane.b32.xlu0 %v1466, 64
  %v1469 = vpop.permute.xlu0 %1468
  %v1470 = vsel %vm301, %v1469, 0
  %1472 = vmatprep.subr.mxu0 0.0
  %1473 = vmatpush1.msra.mxu0 %v283
  %1474 = vmatprep.subr.mxu0 0.0
  %1475 = vmatpush1.msra.mxu0 %v284
  %1476 = vmatprep.subr.mxu0 0.0
  %1477 = vmatpush1.msra.mxu0 %v285
  %1478 = vmatprep.subr.mxu0 0.0
  %1479 = vmatpush1.msra.mxu0 %v286
  %1480 = vmatprep.subr.mxu0 0.0
  %1481 = vmatpush1.msra.mxu0 0.0
  %1482 = vmatprep.subr.mxu0 0.0
  %1483 = vmatpush1.msra.mxu0 0.0
  %1484 = vmatprep.subr.mxu0 0.0
  %1485 = vmatpush1.msra.mxu0 0.0
  %1486 = vmatprep.subr.mxu0 0.0
  %1487 = vmatpush1.msra.mxu0 0.0
  %1488 = vmatprep.subr.mxu0 0.0
  %1489 = vmatpush1.msra.mxu0 0.0
  %1490 = vmatprep.subr.mxu0 0.0
  %1491 = vmatpush1.msra.mxu0 0.0
  %1492 = vmatprep.subr.mxu0 0.0
  %1493 = vmatpush1.msra.mxu0 0.0
  %1494 = vmatprep.subr.mxu0 0.0
  %1495 = vmatpush1.msra.mxu0 0.0
  %1496 = vmatprep.subr.mxu0 0.0
  %1497 = vmatpush1.msra.mxu0 0.0
  %1498 = vmatprep.subr.mxu0 0.0
  %1499 = vmatpush1.msra.mxu0 0.0
  %1500 = vmatprep.subr.mxu0 0.0
  %1501 = vmatpush1.msra.mxu0 0.0
  %1502 = vmatprep.subr.mxu0 0.0
  %1503 = vmatpush1.msra.mxu0 0.0
  %1504 = vmatprep.subr.mxu0 0.0
  %1505 = vmatpush1.msra.mxu0 0.0
  %1506 = vmatprep.subr.mxu0 0.0
  %1507 = vmatpush1.msra.mxu0 0.0
  %1508 = vmatprep.subr.mxu0 0.0
  %1509 = vmatpush1.msra.mxu0 0.0
  %1510 = vmatprep.subr.mxu0 0.0
  %1511 = vmatpush1.msra.mxu0 0.0
  %1512 = vmatprep.subr.mxu0 0.0
  %1513 = vmatpush1.msra.mxu0 0.0
  %1514 = vmatprep.subr.mxu0 0.0
  %1515 = vmatpush1.msra.mxu0 0.0
  %1516 = vmatprep.subr.mxu0 0.0
  %1517 = vmatpush1.msra.mxu0 0.0
  %1518 = vmatprep.subr.mxu0 0.0
  %1519 = vmatpush1.msra.mxu0 0.0
  %1520 = vmatprep.subr.mxu0 0.0
  %1521 = vmatpush1.msra.mxu0 0.0
  %1522 = vmatprep.subr.mxu0 0.0
  %1523 = vmatpush1.msra.mxu0 0.0
  %1524 = vmatprep.subr.mxu0 0.0
  %1525 = vmatpush1.msra.mxu0 0.0
  %1526 = vmatprep.subr.mxu0 0.0
  %1527 = vmatpush1.msra.mxu0 0.0
  %1528 = vmatprep.subr.mxu0 0.0
  %1529 = vmatpush1.msra.mxu0 0.0
  %1530 = vmatprep.subr.mxu0 0.0
  %1531 = vmatpush1.msra.mxu0 0.0
  %1532 = vmatprep.subr.mxu0 0.0
  %1533 = vmatpush1.msra.mxu0 0.0
  %1534 = vmatprep.subr.mxu0 0.0
  %1535 = vmatpush1.msra.mxu0 0.0
  %1536 = vmatprep.mubr.f32.mxu0 0.0
  %1537 = vmatmul.mubr.f32.gmra.mrb[0].mxu0 %v1470
  %v1538 = vpop.f32.mrb[0].mxu0
  %v1539 = vadd.f32 %v380, %v1538
  %v1540 = vpop.f32.mrb[0].mxu0
  %1541 = vdwg.mxu0
  %1542 = vst [vmem:[#allocation3 + $0x38] sm:$0xff] %v1539
  %v1543 = vld [vmem:[#allocation2 + $0x40] sm:$0xff]
  %v1544 = vpack.c.bf16 %v1460, %v1460
  %1546 = vrot.lane.b32.xlu0 %v1544, 64
  %v1547 = vpop.permute.xlu0 %1546
  %v1549 = vsel %vm301, %v1547, 0
  %1551 = vmatprep.subr.bf16.mxu0 0
  %1552 = vmatpush1.bf16.msra.mxu0 %v297
  %1553 = vmatprep.subr.bf16.mxu0 0
  %1554 = vmatpush1.bf16.msra.mxu0 %v298
  %1555 = vmatprep.subr.bf16.mxu0 0
  %1556 = vmatpush1.bf16.msra.mxu0 0
  %1557 = vmatprep.subr.bf16.mxu0 0
  %1558 = vmatpush1.bf16.msra.mxu0 0
  %1559 = vmatprep.subr.bf16.mxu0 0
  %1560 = vmatpush1.bf16.msra.mxu0 0
  %1561 = vmatprep.subr.bf16.mxu0 0
  %1562 = vmatpush1.bf16.msra.mxu0 0
  %1563 = vmatprep.subr.bf16.mxu0 0
  %1564 = vmatpush1.bf16.msra.mxu0 0
  %1565 = vmatprep.subr.bf16.mxu0 0
  %1566 = vmatpush1.bf16.msra.mxu0 0
  %1567 = vmatprep.subr.bf16.mxu0 0
  %1568 = vmatpush1.bf16.msra.mxu0 0
  %1569 = vmatprep.subr.bf16.mxu0 0
  %1570 = vmatpush1.bf16.msra.mxu0 0
  %1571 = vmatprep.subr.bf16.mxu0 0
  %1572 = vmatpush1.bf16.msra.mxu0 0
  %1573 = vmatprep.subr.bf16.mxu0 0
  %1574 = vmatpush1.bf16.msra.mxu0 0
  %1575 = vmatprep.subr.bf16.mxu0 0
  %1576 = vmatpush1.bf16.msra.mxu0 0
  %1577 = vmatprep.subr.bf16.mxu0 0
  %1578 = vmatpush1.bf16.msra.mxu0 0
  %1579 = vmatprep.subr.bf16.mxu0 0
  %1580 = vmatpush1.bf16.msra.mxu0 0
  %1581 = vmatprep.subr.bf16.mxu0 0
  %1582 = vmatpush1.bf16.msra.mxu0 0
  %1583 = vmatprep.mubr.bf16.mxu0 0
  %1584 = vmatmul.mubr.bf16.gmra.mrb[0].mxu0 %v1549
  %v1585 = vpop.f32.mrb[0].mxu0
  %v1586 = vadd.f32 0.0, %v1585
  %v1587 = vpop.f32.mrb[0].mxu0
  %v1588 = vpop.f32.mrb[0].mxu0
  %v1589 = vpop.f32.mrb[0].mxu0
  %1590 = vdwg.mxu0
  %v1591 = vadd.f32 %v1543, %v1586
  %v1592 = vxor.u32 %v1591, 2147483648
  %v1593 = vmul.f32 %v1592, 1.442695
  %v1594 = vpow.pop %v1593
  %v1595 = vadd.f32 %v1594, 1.0
  %v1596 = vrcp.pop %v1595
  %v1597 = vmul.f32 1.0, %v1596
  %v1598 = vtanh.pop %v1591
  %v1599 = vmul.f32 %v1597, %v1454
  %1601 = vrot.lane.b32.xlu0 %v1598, 32
  %v1602 = vpop.permute.xlu0 %1601
  %v1604 = vmul.f32 %v1597, %v1602
  %1606 = vrot.lane.b32.xlu0 %v1604, 32
  %v1607 = vpop.permute.xlu0 %1606
  %v1609 = vadd.f32 %v1599, %v1607
  %v1610 = vtanh.pop %v1609
  %1612 = vrot.lane.b32.xlu0 %v1610, 32
  %v1613 = vpop.permute.xlu0 %1612
  %v1615 = vmul.f32 %v1597, %v1613
  %v1616 = vld [vmem:[%s1 + $0x40] sm:$0xff]
  %1618 = vrot.lane.b32.xlu0 %v1616, 64
  %v1619 = vpop.permute.xlu0 %1618
  %v1621 = vmul.f32 %v1615, %v1619
  %1623 = vrot.lane.b32.xlu0 %v1621, 64
  %v1624 = vpop.permute.xlu0 %1623
  %v1625 = vsel %vm301, %v1624, 0
  %1627 = vmatprep.subr.mxu0 0.0
  %1628 = vmatpush1.msra.mxu0 %v283
  %1629 = vmatprep.subr.mxu0 0.0
  %1630 = vmatpush1.msra.mxu0 %v284
  %1631 = vmatprep.subr.mxu0 0.0
  %1632 = vmatpush1.msra.mxu0 %v285
  %1633 = vmatprep.subr.mxu0 0.0
  %1634 = vmatpush1.msra.mxu0 %v286
  %1635 = vmatprep.subr.mxu0 0.0
  %1636 = vmatpush1.msra.mxu0 0.0
  %1637 = vmatprep.subr.mxu0 0.0
  %1638 = vmatpush1.msra.mxu0 0.0
  %1639 = vmatprep.subr.mxu0 0.0
  %1640 = vmatpush1.msra.mxu0 0.0
  %1641 = vmatprep.subr.mxu0 0.0
  %1642 = vmatpush1.msra.mxu0 0.0
  %1643 = vmatprep.subr.mxu0 0.0
  %1644 = vmatpush1.msra.mxu0 0.0
  %1645 = vmatprep.subr.mxu0 0.0
  %1646 = vmatpush1.msra.mxu0 0.0
  %1647 = vmatprep.subr.mxu0 0.0
  %1648 = vmatpush1.msra.mxu0 0.0
  %1649 = vmatprep.subr.mxu0 0.0
  %1650 = vmatpush1.msra.mxu0 0.0
  %1651 = vmatprep.subr.mxu0 0.0
  %1652 = vmatpush1.msra.mxu0 0.0
  %1653 = vmatprep.subr.mxu0 0.0
  %1654 = vmatpush1.msra.mxu0 0.0
  %1655 = vmatprep.subr.mxu0 0.0
  %1656 = vmatpush1.msra.mxu0 0.0
  %1657 = vmatprep.subr.mxu0 0.0
  %1658 = vmatpush1.msra.mxu0 0.0
  %1659 = vmatprep.subr.mxu0 0.0
  %1660 = vmatpush1.msra.mxu0 0.0
  %1661 = vmatprep.subr.mxu0 0.0
  %1662 = vmatpush1.msra.mxu0 0.0
  %1663 = vmatprep.subr.mxu0 0.0
  %1664 = vmatpush1.msra.mxu0 0.0
  %1665 = vmatprep.subr.mxu0 0.0
  %1666 = vmatpush1.msra.mxu0 0.0
  %1667 = vmatprep.subr.mxu0 0.0
  %1668 = vmatpush1.msra.mxu0 0.0
  %1669 = vmatprep.subr.mxu0 0.0
  %1670 = vmatpush1.msra.mxu0 0.0
  %1671 = vmatprep.subr.mxu0 0.0
  %1672 = vmatpush1.msra.mxu0 0.0
  %1673 = vmatprep.subr.mxu0 0.0
  %1674 = vmatpush1.msra.mxu0 0.0
  %1675 = vmatprep.subr.mxu0 0.0
  %1676 = vmatpush1.msra.mxu0 0.0
  %1677 = vmatprep.subr.mxu0 0.0
  %1678 = vmatpush1.msra.mxu0 0.0
  %1679 = vmatprep.subr.mxu0 0.0
  %1680 = vmatpush1.msra.mxu0 0.0
  %1681 = vmatprep.subr.mxu0 0.0
  %1682 = vmatpush1.msra.mxu0 0.0
  %1683 = vmatprep.subr.mxu0 0.0
  %1684 = vmatpush1.msra.mxu0 0.0
  %1685 = vmatprep.subr.mxu0 0.0
  %1686 = vmatpush1.msra.mxu0 0.0
  %1687 = vmatprep.subr.mxu0 0.0
  %1688 = vmatpush1.msra.mxu0 0.0
  %1689 = vmatprep.subr.mxu0 0.0
  %1690 = vmatpush1.msra.mxu0 0.0
  %1691 = vmatprep.mubr.f32.mxu0 0.0
  %1692 = vmatmul.mubr.f32.gmra.mrb[0].mxu0 %v1625
  %v1693 = vpop.f32.mrb[0].mxu0
  %v1694 = vadd.f32 %v380, %v1693
  %v1695 = vpop.f32.mrb[0].mxu0
  %1696 = vdwg.mxu0
  %1697 = vst [vmem:[#allocation3 + $0x40] sm:$0xff] %v1694
  %v1698 = vld [vmem:[#allocation2 + $0x48] sm:$0xff]
  %v1699 = vpack.c.bf16 %v1615, %v1615
  %1701 = vrot.lane.b32.xlu0 %v1699, 64
  %v1702 = vpop.permute.xlu0 %1701
  %v1704 = vsel %vm301, %v1702, 0
  %1706 = vmatprep.subr.bf16.mxu0 0
  %1707 = vmatpush1.bf16.msra.mxu0 %v297
  %1708 = vmatprep.subr.bf16.mxu0 0
  %1709 = vmatpush1.bf16.msra.mxu0 %v298
  %1710 = vmatprep.subr.bf16.mxu0 0
  %1711 = vmatpush1.bf16.msra.mxu0 0
  %1712 = vmatprep.subr.bf16.mxu0 0
  %1713 = vmatpush1.bf16.msra.mxu0 0
  %1714 = vmatprep.subr.bf16.mxu0 0
  %1715 = vmatpush1.bf16.msra.mxu0 0
  %1716 = vmatprep.subr.bf16.mxu0 0
  %1717 = vmatpush1.bf16.msra.mxu0 0
  %1718 = vmatprep.subr.bf16.mxu0 0
  %1719 = vmatpush1.bf16.msra.mxu0 0
  %1720 = vmatprep.subr.bf16.mxu0 0
  %1721 = vmatpush1.bf16.msra.mxu0 0
  %1722 = vmatprep.subr.bf16.mxu0 0
  %1723 = vmatpush1.bf16.msra.mxu0 0
  %1724 = vmatprep.subr.bf16.mxu0 0
  %1725 = vmatpush1.bf16.msra.mxu0 0
  %1726 = vmatprep.subr.bf16.mxu0 0
  %1727 = vmatpush1.bf16.msra.mxu0 0
  %1728 = vmatprep.subr.bf16.mxu0 0
  %1729 = vmatpush1.bf16.msra.mxu0 0
  %1730 = vmatprep.subr.bf16.mxu0 0
  %1731 = vmatpush1.bf16.msra.mxu0 0
  %1732 = vmatprep.subr.bf16.mxu0 0
  %1733 = vmatpush1.bf16.msra.mxu0 0
  %1734 = vmatprep.subr.bf16.mxu0 0
  %1735 = vmatpush1.bf16.msra.mxu0 0
  %1736 = vmatprep.subr.bf16.mxu0 0
  %1737 = vmatpush1.bf16.msra.mxu0 0
  %1738 = vmatprep.mubr.bf16.mxu0 0
  %1739 = vmatmul.mubr.bf16.gmra.mrb[0].mxu0 %v1704
  %v1740 = vpop.f32.mrb[0].mxu0
  %v1741 = vadd.f32 0.0, %v1740
  %v1742 = vpop.f32.mrb[0].mxu0
  %v1743 = vpop.f32.mrb[0].mxu0
  %v1744 = vpop.f32.mrb[0].mxu0
  %1745 = vdwg.mxu0
  %v1746 = vadd.f32 %v1698, %v1741
  %v1747 = vxor.u32 %v1746, 2147483648
  %v1748 = vmul.f32 %v1747, 1.442695
  %v1749 = vpow.pop %v1748
  %v1750 = vadd.f32 %v1749, 1.0
  %v1751 = vrcp.pop %v1750
  %v1752 = vmul.f32 1.0, %v1751
  %v1753 = vtanh.pop %v1746
  %v1754 = vmul.f32 %v1752, %v1609
  %1756 = vrot.lane.b32.xlu0 %v1753, 32
  %v1757 = vpop.permute.xlu0 %1756
  %v1759 = vmul.f32 %v1752, %v1757
  %1761 = vrot.lane.b32.xlu0 %v1759, 32
  %v1762 = vpop.permute.xlu0 %1761
  %v1764 = vadd.f32 %v1754, %v1762
  %v1765 = vtanh.pop %v1764
  %1767 = vrot.lane.b32.xlu0 %v1765, 32
  %v1768 = vpop.permute.xlu0 %1767
  %v1770 = vmul.f32 %v1752, %v1768
  %v1771 = vld [vmem:[%s1 + $0x48] sm:$0xff]
  %1773 = vrot.lane.b32.xlu0 %v1771, 64
  %v1774 = vpop.permute.xlu0 %1773
  %v1776 = vmul.f32 %v1770, %v1774
  %1778 = vrot.lane.b32.xlu0 %v1776, 64
  %v1779 = vpop.permute.xlu0 %1778
  %v1780 = vsel %vm301, %v1779, 0
  %1782 = vmatprep.subr.mxu0 0.0
  %1783 = vmatpush1.msra.mxu0 %v283
  %1784 = vmatprep.subr.mxu0 0.0
  %1785 = vmatpush1.msra.mxu0 %v284
  %1786 = vmatprep.subr.mxu0 0.0
  %1787 = vmatpush1.msra.mxu0 %v285
  %1788 = vmatprep.subr.mxu0 0.0
  %1789 = vmatpush1.msra.mxu0 %v286
  %1790 = vmatprep.subr.mxu0 0.0
  %1791 = vmatpush1.msra.mxu0 0.0
  %1792 = vmatprep.subr.mxu0 0.0
  %1793 = vmatpush1.msra.mxu0 0.0
  %1794 = vmatprep.subr.mxu0 0.0
  %1795 = vmatpush1.msra.mxu0 0.0
  %1796 = vmatprep.subr.mxu0 0.0
  %1797 = vmatpush1.msra.mxu0 0.0
  %1798 = vmatprep.subr.mxu0 0.0
  %1799 = vmatpush1.msra.mxu0 0.0
  %1800 = vmatprep.subr.mxu0 0.0
  %1801 = vmatpush1.msra.mxu0 0.0
  %1802 = vmatprep.subr.mxu0 0.0
  %1803 = vmatpush1.msra.mxu0 0.0
  %1804 = vmatprep.subr.mxu0 0.0
  %1805 = vmatpush1.msra.mxu0 0.0
  %1806 = vmatprep.subr.mxu0 0.0
  %1807 = vmatpush1.msra.mxu0 0.0
  %1808 = vmatprep.subr.mxu0 0.0
  %1809 = vmatpush1.msra.mxu0 0.0
  %1810 = vmatprep.subr.mxu0 0.0
  %1811 = vmatpush1.msra.mxu0 0.0
  %1812 = vmatprep.subr.mxu0 0.0
  %1813 = vmatpush1.msra.mxu0 0.0
  %1814 = vmatprep.subr.mxu0 0.0
  %1815 = vmatpush1.msra.mxu0 0.0
  %1816 = vmatprep.subr.mxu0 0.0
  %1817 = vmatpush1.msra.mxu0 0.0
  %1818 = vmatprep.subr.mxu0 0.0
  %1819 = vmatpush1.msra.mxu0 0.0
  %1820 = vmatprep.subr.mxu0 0.0
  %1821 = vmatpush1.msra.mxu0 0.0
  %1822 = vmatprep.subr.mxu0 0.0
  %1823 = vmatpush1.msra.mxu0 0.0
  %1824 = vmatprep.subr.mxu0 0.0
  %1825 = vmatpush1.msra.mxu0 0.0
  %1826 = vmatprep.subr.mxu0 0.0
  %1827 = vmatpush1.msra.mxu0 0.0
  %1828 = vmatprep.subr.mxu0 0.0
  %1829 = vmatpush1.msra.mxu0 0.0
  %1830 = vmatprep.subr.mxu0 0.0
  %1831 = vmatpush1.msra.mxu0 0.0
  %1832 = vmatprep.subr.mxu0 0.0
  %1833 = vmatpush1.msra.mxu0 0.0
  %1834 = vmatprep.subr.mxu0 0.0
  %1835 = vmatpush1.msra.mxu0 0.0
  %1836 = vmatprep.subr.mxu0 0.0
  %1837 = vmatpush1.msra.mxu0 0.0
  %1838 = vmatprep.subr.mxu0 0.0
  %1839 = vmatpush1.msra.mxu0 0.0
  %1840 = vmatprep.subr.mxu0 0.0
  %1841 = vmatpush1.msra.mxu0 0.0
  %1842 = vmatprep.subr.mxu0 0.0
  %1843 = vmatpush1.msra.mxu0 0.0
  %1844 = vmatprep.subr.mxu0 0.0
  %1845 = vmatpush1.msra.mxu0 0.0
  %1846 = vmatprep.mubr.f32.mxu0 0.0
  %1847 = vmatmul.mubr.f32.gmra.mrb[0].mxu0 %v1780
  %v1848 = vpop.f32.mrb[0].mxu0
  %v1849 = vadd.f32 %v380, %v1848
  %v1850 = vpop.f32.mrb[0].mxu0
  %1851 = vdwg.mxu0
  %1852 = vst [vmem:[#allocation3 + $0x48] sm:$0xff] %v1849
  %v1853 = vld [vmem:[#allocation2 + $0x50] sm:$0xff]
  %v1854 = vpack.c.bf16 %v1770, %v1770
  %1856 = vrot.lane.b32.xlu0 %v1854, 64
  %v1857 = vpop.permute.xlu0 %1856
  %v1859 = vsel %vm301, %v1857, 0
  %1861 = vmatprep.subr.bf16.mxu0 0
  %1862 = vmatpush1.bf16.msra.mxu0 %v297
  %1863 = vmatprep.subr.bf16.mxu0 0
  %1864 = vmatpush1.bf16.msra.mxu0 %v298
  %1865 = vmatprep.subr.bf16.mxu0 0
  %1866 = vmatpush1.bf16.msra.mxu0 0
  %1867 = vmatprep.subr.bf16.mxu0 0
  %1868 = vmatpush1.bf16.msra.mxu0 0
  %1869 = vmatprep.subr.bf16.mxu0 0
  %1870 = vmatpush1.bf16.msra.mxu0 0
  %1871 = vmatprep.subr.bf16.mxu0 0
  %1872 = vmatpush1.bf16.msra.mxu0 0
  %1873 = vmatprep.subr.bf16.mxu0 0
  %1874 = vmatpush1.bf16.msra.mxu0 0
  %1875 = vmatprep.subr.bf16.mxu0 0
  %1876 = vmatpush1.bf16.msra.mxu0 0
  %1877 = vmatprep.subr.bf16.mxu0 0
  %1878 = vmatpush1.bf16.msra.mxu0 0
  %1879 = vmatprep.subr.bf16.mxu0 0
  %1880 = vmatpush1.bf16.msra.mxu0 0
  %1881 = vmatprep.subr.bf16.mxu0 0
  %1882 = vmatpush1.bf16.msra.mxu0 0
  %1883 = vmatprep.subr.bf16.mxu0 0
  %1884 = vmatpush1.bf16.msra.mxu0 0
  %1885 = vmatprep.subr.bf16.mxu0 0
  %1886 = vmatpush1.bf16.msra.mxu0 0
  %1887 = vmatprep.subr.bf16.mxu0 0
  %1888 = vmatpush1.bf16.msra.mxu0 0
  %1889 = vmatprep.subr.bf16.mxu0 0
  %1890 = vmatpush1.bf16.msra.mxu0 0
  %1891 = vmatprep.subr.bf16.mxu0 0
  %1892 = vmatpush1.bf16.msra.mxu0 0
  %1893 = vmatprep.mubr.bf16.mxu0 0
  %1894 = vmatmul.mubr.bf16.gmra.mrb[0].mxu0 %v1859
  %v1895 = vpop.f32.mrb[0].mxu0
  %v1896 = vadd.f32 0.0, %v1895
  %v1897 = vpop.f32.mrb[0].mxu0
  %v1898 = vpop.f32.mrb[0].mxu0
  %v1899 = vpop.f32.mrb[0].mxu0
  %1900 = vdwg.mxu0
  %v1901 = vadd.f32 %v1853, %v1896
  %v1902 = vxor.u32 %v1901, 2147483648
  %v1903 = vmul.f32 %v1902, 1.442695
  %v1904 = vpow.pop %v1903
  %v1905 = vadd.f32 %v1904, 1.0
  %v1906 = vrcp.pop %v1905
  %v1907 = vmul.f32 1.0, %v1906
  %v1908 = vtanh.pop %v1901
  %v1909 = vmul.f32 %v1907, %v1764
  %1911 = vrot.lane.b32.xlu0 %v1908, 32
  %v1912 = vpop.permute.xlu0 %1911
  %v1914 = vmul.f32 %v1907, %v1912
  %1916 = vrot.lane.b32.xlu0 %v1914, 32
  %v1917 = vpop.permute.xlu0 %1916
  %v1919 = vadd.f32 %v1909, %v1917
  %v1920 = vtanh.pop %v1919
  %1922 = vrot.lane.b32.xlu0 %v1920, 32
  %v1923 = vpop.permute.xlu0 %1922
  %v1925 = vmul.f32 %v1907, %v1923
  %v1926 = vld [vmem:[%s1 + $0x50] sm:$0xff]
  %1928 = vrot.lane.b32.xlu0 %v1926, 64
  %v1929 = vpop.permute.xlu0 %1928
  %v1931 = vmul.f32 %v1925, %v1929
  %1933 = vrot.lane.b32.xlu0 %v1931, 64
  %v1934 = vpop.permute.xlu0 %1933
  %v1935 = vsel %vm301, %v1934, 0
  %1937 = vmatprep.subr.mxu0 0.0
  %1938 = vmatpush1.msra.mxu0 %v283
  %1939 = vmatprep.subr.mxu0 0.0
  %1940 = vmatpush1.msra.mxu0 %v284
  %1941 = vmatprep.subr.mxu0 0.0
  %1942 = vmatpush1.msra.mxu0 %v285
  %1943 = vmatprep.subr.mxu0 0.0
  %1944 = vmatpush1.msra.mxu0 %v286
  %1945 = vmatprep.subr.mxu0 0.0
  %1946 = vmatpush1.msra.mxu0 0.0
  %1947 = vmatprep.subr.mxu0 0.0
  %1948 = vmatpush1.msra.mxu0 0.0
  %1949 = vmatprep.subr.mxu0 0.0
  %1950 = vmatpush1.msra.mxu0 0.0
  %1951 = vmatprep.subr.mxu0 0.0
  %1952 = vmatpush1.msra.mxu0 0.0
  %1953 = vmatprep.subr.mxu0 0.0
  %1954 = vmatpush1.msra.mxu0 0.0
  %1955 = vmatprep.subr.mxu0 0.0
  %1956 = vmatpush1.msra.mxu0 0.0
  %1957 = vmatprep.subr.mxu0 0.0
  %1958 = vmatpush1.msra.mxu0 0.0
  %1959 = vmatprep.subr.mxu0 0.0
  %1960 = vmatpush1.msra.mxu0 0.0
  %1961 = vmatprep.subr.mxu0 0.0
  %1962 = vmatpush1.msra.mxu0 0.0
  %1963 = vmatprep.subr.mxu0 0.0
  %1964 = vmatpush1.msra.mxu0 0.0
  %1965 = vmatprep.subr.mxu0 0.0
  %1966 = vmatpush1.msra.mxu0 0.0
  %1967 = vmatprep.subr.mxu0 0.0
  %1968 = vmatpush1.msra.mxu0 0.0
  %1969 = vmatprep.subr.mxu0 0.0
  %1970 = vmatpush1.msra.mxu0 0.0
  %1971 = vmatprep.subr.mxu0 0.0
  %1972 = vmatpush1.msra.mxu0 0.0
  %1973 = vmatprep.subr.mxu0 0.0
  %1974 = vmatpush1.msra.mxu0 0.0
  %1975 = vmatprep.subr.mxu0 0.0
  %1976 = vmatpush1.msra.mxu0 0.0
  %1977 = vmatprep.subr.mxu0 0.0
  %1978 = vmatpush1.msra.mxu0 0.0
  %1979 = vmatprep.subr.mxu0 0.0
  %1980 = vmatpush1.msra.mxu0 0.0
  %1981 = vmatprep.subr.mxu0 0.0
  %1982 = vmatpush1.msra.mxu0 0.0
  %1983 = vmatprep.subr.mxu0 0.0
  %1984 = vmatpush1.msra.mxu0 0.0
  %1985 = vmatprep.subr.mxu0 0.0
  %1986 = vmatpush1.msra.mxu0 0.0
  %1987 = vmatprep.subr.mxu0 0.0
  %1988 = vmatpush1.msra.mxu0 0.0
  %1989 = vmatprep.subr.mxu0 0.0
  %1990 = vmatpush1.msra.mxu0 0.0
  %1991 = vmatprep.subr.mxu0 0.0
  %1992 = vmatpush1.msra.mxu0 0.0
  %1993 = vmatprep.subr.mxu0 0.0
  %1994 = vmatpush1.msra.mxu0 0.0
  %1995 = vmatprep.subr.mxu0 0.0
  %1996 = vmatpush1.msra.mxu0 0.0
  %1997 = vmatprep.subr.mxu0 0.0
  %1998 = vmatpush1.msra.mxu0 0.0
  %1999 = vmatprep.subr.mxu0 0.0
  %2000 = vmatpush1.msra.mxu0 0.0
  %2001 = vmatprep.mubr.f32.mxu0 0.0
  %2002 = vmatmul.mubr.f32.gmra.mrb[0].mxu0 %v1935
  %v2003 = vpop.f32.mrb[0].mxu0
  %v2004 = vadd.f32 %v380, %v2003
  %v2005 = vpop.f32.mrb[0].mxu0
  %2006 = vdwg.mxu0
  %2007 = vst [vmem:[#allocation3 + $0x50] sm:$0xff] %v2004
  %v2008 = vld [vmem:[#allocation2 + $0x58] sm:$0xff]
  %v2009 = vpack.c.bf16 %v1925, %v1925
  %2011 = vrot.lane.b32.xlu0 %v2009, 64
  %v2012 = vpop.permute.xlu0 %2011
  %v2014 = vsel %vm301, %v2012, 0
  %2016 = vmatprep.subr.bf16.mxu0 0
  %2017 = vmatpush1.bf16.msra.mxu0 %v297
  %2018 = vmatprep.subr.bf16.mxu0 0
  %2019 = vmatpush1.bf16.msra.mxu0 %v298
  %2020 = vmatprep.subr.bf16.mxu0 0
  %2021 = vmatpush1.bf16.msra.mxu0 0
  %2022 = vmatprep.subr.bf16.mxu0 0
  %2023 = vmatpush1.bf16.msra.mxu0 0
  %2024 = vmatprep.subr.bf16.mxu0 0
  %2025 = vmatpush1.bf16.msra.mxu0 0
  %2026 = vmatprep.subr.bf16.mxu0 0
  %2027 = vmatpush1.bf16.msra.mxu0 0
  %2028 = vmatprep.subr.bf16.mxu0 0
  %2029 = vmatpush1.bf16.msra.mxu0 0
  %2030 = vmatprep.subr.bf16.mxu0 0
  %2031 = vmatpush1.bf16.msra.mxu0 0
  %2032 = vmatprep.subr.bf16.mxu0 0
  %2033 = vmatpush1.bf16.msra.mxu0 0
  %2034 = vmatprep.subr.bf16.mxu0 0
  %2035 = vmatpush1.bf16.msra.mxu0 0
  %2036 = vmatprep.subr.bf16.mxu0 0
  %2037 = vmatpush1.bf16.msra.mxu0 0
  %2038 = vmatprep.subr.bf16.mxu0 0
  %2039 = vmatpush1.bf16.msra.mxu0 0
  %2040 = vmatprep.subr.bf16.mxu0 0
  %2041 = vmatpush1.bf16.msra.mxu0 0
  %2042 = vmatprep.subr.bf16.mxu0 0
  %2043 = vmatpush1.bf16.msra.mxu0 0
  %2044 = vmatprep.subr.bf16.mxu0 0
  %2045 = vmatpush1.bf16.msra.mxu0 0
  %2046 = vmatprep.subr.bf16.mxu0 0
  %2047 = vmatpush1.bf16.msra.mxu0 0
  %2048 = vmatprep.mubr.bf16.mxu0 0
  %2049 = vmatmul.mubr.bf16.gmra.mrb[0].mxu0 %v2014
  %v2050 = vpop.f32.mrb[0].mxu0
  %v2051 = vadd.f32 0.0, %v2050
  %v2052 = vpop.f32.mrb[0].mxu0
  %v2053 = vpop.f32.mrb[0].mxu0
  %v2054 = vpop.f32.mrb[0].mxu0
  %2055 = vdwg.mxu0
  %v2056 = vadd.f32 %v2008, %v2051
  %v2057 = vxor.u32 %v2056, 2147483648
  %v2058 = vmul.f32 %v2057, 1.442695
  %v2059 = vpow.pop %v2058
  %v2060 = vadd.f32 %v2059, 1.0
  %v2061 = vrcp.pop %v2060
  %v2062 = vmul.f32 1.0, %v2061
  %v2063 = vtanh.pop %v2056
  %v2064 = vmul.f32 %v2062, %v1919
  %2066 = vrot.lane.b32.xlu0 %v2063, 32
  %v2067 = vpop.permute.xlu0 %2066
  %v2069 = vmul.f32 %v2062, %v2067
  %2071 = vrot.lane.b32.xlu0 %v2069, 32
  %v2072 = vpop.permute.xlu0 %2071
  %v2074 = vadd.f32 %v2064, %v2072
  %v2075 = vtanh.pop %v2074
  %2077 = vrot.lane.b32.xlu0 %v2075, 32
  %v2078 = vpop.permute.xlu0 %2077
  %v2080 = vmul.f32 %v2062, %v2078
  %v2081 = vld [vmem:[%s1 + $0x58] sm:$0xff]
  %2083 = vrot.lane.b32.xlu0 %v2081, 64
  %v2084 = vpop.permute.xlu0 %2083
  %v2086 = vmul.f32 %v2080, %v2084
  %2088 = vrot.lane.b32.xlu0 %v2086, 64
  %v2089 = vpop.permute.xlu0 %2088
  %v2090 = vsel %vm301, %v2089, 0
  %2092 = vmatprep.subr.mxu0 0.0
  %2093 = vmatpush1.msra.mxu0 %v283
  %2094 = vmatprep.subr.mxu0 0.0
  %2095 = vmatpush1.msra.mxu0 %v284
  %2096 = vmatprep.subr.mxu0 0.0
  %2097 = vmatpush1.msra.mxu0 %v285
  %2098 = vmatprep.subr.mxu0 0.0
  %2099 = vmatpush1.msra.mxu0 %v286
  %2100 = vmatprep.subr.mxu0 0.0
  %2101 = vmatpush1.msra.mxu0 0.0
  %2102 = vmatprep.subr.mxu0 0.0
  %2103 = vmatpush1.msra.mxu0 0.0
  %2104 = vmatprep.subr.mxu0 0.0
  %2105 = vmatpush1.msra.mxu0 0.0
  %2106 = vmatprep.subr.mxu0 0.0
  %2107 = vmatpush1.msra.mxu0 0.0
  %2108 = vmatprep.subr.mxu0 0.0
  %2109 = vmatpush1.msra.mxu0 0.0
  %2110 = vmatprep.subr.mxu0 0.0
  %2111 = vmatpush1.msra.mxu0 0.0
  %2112 = vmatprep.subr.mxu0 0.0
  %2113 = vmatpush1.msra.mxu0 0.0
  %2114 = vmatprep.subr.mxu0 0.0
  %2115 = vmatpush1.msra.mxu0 0.0
  %2116 = vmatprep.subr.mxu0 0.0
  %2117 = vmatpush1.msra.mxu0 0.0
  %2118 = vmatprep.subr.mxu0 0.0
  %2119 = vmatpush1.msra.mxu0 0.0
  %2120 = vmatprep.subr.mxu0 0.0
  %2121 = vmatpush1.msra.mxu0 0.0
  %2122 = vmatprep.subr.mxu0 0.0
  %2123 = vmatpush1.msra.mxu0 0.0
  %2124 = vmatprep.subr.mxu0 0.0
  %2125 = vmatpush1.msra.mxu0 0.0
  %2126 = vmatprep.subr.mxu0 0.0
  %2127 = vmatpush1.msra.mxu0 0.0
  %2128 = vmatprep.subr.mxu0 0.0
  %2129 = vmatpush1.msra.mxu0 0.0
  %2130 = vmatprep.subr.mxu0 0.0
  %2131 = vmatpush1.msra.mxu0 0.0
  %2132 = vmatprep.subr.mxu0 0.0
  %2133 = vmatpush1.msra.mxu0 0.0
  %2134 = vmatprep.subr.mxu0 0.0
  %2135 = vmatpush1.msra.mxu0 0.0
  %2136 = vmatprep.subr.mxu0 0.0
  %2137 = vmatpush1.msra.mxu0 0.0
  %2138 = vmatprep.subr.mxu0 0.0
  %2139 = vmatpush1.msra.mxu0 0.0
  %2140 = vmatprep.subr.mxu0 0.0
  %2141 = vmatpush1.msra.mxu0 0.0
  %2142 = vmatprep.subr.mxu0 0.0
  %2143 = vmatpush1.msra.mxu0 0.0
  %2144 = vmatprep.subr.mxu0 0.0
  %2145 = vmatpush1.msra.mxu0 0.0
  %2146 = vmatprep.subr.mxu0 0.0
  %2147 = vmatpush1.msra.mxu0 0.0
  %2148 = vmatprep.subr.mxu0 0.0
  %2149 = vmatpush1.msra.mxu0 0.0
  %2150 = vmatprep.subr.mxu0 0.0
  %2151 = vmatpush1.msra.mxu0 0.0
  %2152 = vmatprep.subr.mxu0 0.0
  %2153 = vmatpush1.msra.mxu0 0.0
  %2154 = vmatprep.subr.mxu0 0.0
  %2155 = vmatpush1.msra.mxu0 0.0
  %2156 = vmatprep.mubr.f32.mxu0 0.0
  %2157 = vmatmul.mubr.f32.gmra.mrb[0].mxu0 %v2090
  %v2158 = vpop.f32.mrb[0].mxu0
  %v2159 = vadd.f32 %v380, %v2158
  %v2160 = vpop.f32.mrb[0].mxu0
  %2161 = vdwg.mxu0
  %2162 = vst [vmem:[#allocation3 + $0x58] sm:$0xff] %v2159
  %v2163 = vld [vmem:[#allocation2 + $0x60] sm:$0xff]
  %v2164 = vpack.c.bf16 %v2080, %v2080
  %2166 = vrot.lane.b32.xlu0 %v2164, 64
  %v2167 = vpop.permute.xlu0 %2166
  %v2169 = vsel %vm301, %v2167, 0
  %2171 = vmatprep.subr.bf16.mxu0 0
  %2172 = vmatpush1.bf16.msra.mxu0 %v297
  %2173 = vmatprep.subr.bf16.mxu0 0
  %2174 = vmatpush1.bf16.msra.mxu0 %v298
  %2175 = vmatprep.subr.bf16.mxu0 0
  %2176 = vmatpush1.bf16.msra.mxu0 0
  %2177 = vmatprep.subr.bf16.mxu0 0
  %2178 = vmatpush1.bf16.msra.mxu0 0
  %2179 = vmatprep.subr.bf16.mxu0 0
  %2180 = vmatpush1.bf16.msra.mxu0 0
  %2181 = vmatprep.subr.bf16.mxu0 0
  %2182 = vmatpush1.bf16.msra.mxu0 0
  %2183 = vmatprep.subr.bf16.mxu0 0
  %2184 = vmatpush1.bf16.msra.mxu0 0
  %2185 = vmatprep.subr.bf16.mxu0 0
  %2186 = vmatpush1.bf16.msra.mxu0 0
  %2187 = vmatprep.subr.bf16.mxu0 0
  %2188 = vmatpush1.bf16.msra.mxu0 0
  %2189 = vmatprep.subr.bf16.mxu0 0
  %2190 = vmatpush1.bf16.msra.mxu0 0
  %2191 = vmatprep.subr.bf16.mxu0 0
  %2192 = vmatpush1.bf16.msra.mxu0 0
  %2193 = vmatprep.subr.bf16.mxu0 0
  %2194 = vmatpush1.bf16.msra.mxu0 0
  %2195 = vmatprep.subr.bf16.mxu0 0
  %2196 = vmatpush1.bf16.msra.mxu0 0
  %2197 = vmatprep.subr.bf16.mxu0 0
  %2198 = vmatpush1.bf16.msra.mxu0 0
  %2199 = vmatprep.subr.bf16.mxu0 0
  %2200 = vmatpush1.bf16.msra.mxu0 0
  %2201 = vmatprep.subr.bf16.mxu0 0
  %2202 = vmatpush1.bf16.msra.mxu0 0
  %2203 = vmatprep.mubr.bf16.mxu0 0
  %2204 = vmatmul.mubr.bf16.gmra.mrb[0].mxu0 %v2169
  %v2205 = vpop.f32.mrb[0].mxu0
  %v2206 = vadd.f32 0.0, %v2205
  %v2207 = vpop.f32.mrb[0].mxu0
  %v2208 = vpop.f32.mrb[0].mxu0
  %v2209 = vpop.f32.mrb[0].mxu0
  %2210 = vdwg.mxu0
  %v2211 = vadd.f32 %v2163, %v2206
  %v2212 = vxor.u32 %v2211, 2147483648
  %v2213 = vmul.f32 %v2212, 1.442695
  %v2214 = vpow.pop %v2213
  %v2215 = vadd.f32 %v2214, 1.0
  %v2216 = vrcp.pop %v2215
  %v2217 = vmul.f32 1.0, %v2216
  %v2218 = vtanh.pop %v2211
  %v2219 = vmul.f32 %v2217, %v2074
  %2221 = vrot.lane.b32.xlu0 %v2218, 32
  %v2222 = vpop.permute.xlu0 %2221
  %v2224 = vmul.f32 %v2217, %v2222
  %2226 = vrot.lane.b32.xlu0 %v2224, 32
  %v2227 = vpop.permute.xlu0 %2226
  %v2229 = vadd.f32 %v2219, %v2227
  %v2230 = vtanh.pop %v2229
  %2232 = vrot.lane.b32.xlu0 %v2230, 32
  %v2233 = vpop.permute.xlu0 %2232
  %v2235 = vmul.f32 %v2217, %v2233
  %v2236 = vld [vmem:[%s1 + $0x60] sm:$0xff]
  %2238 = vrot.lane.b32.xlu0 %v2236, 64
  %v2239 = vpop.permute.xlu0 %2238
  %v2241 = vmul.f32 %v2235, %v2239
  %2243 = vrot.lane.b32.xlu0 %v2241, 64
  %v2244 = vpop.permute.xlu0 %2243
  %v2245 = vsel %vm301, %v2244, 0
  %2247 = vmatprep.subr.mxu0 0.0
  %2248 = vmatpush1.msra.mxu0 %v283
  %2249 = vmatprep.subr.mxu0 0.0
  %2250 = vmatpush1.msra.mxu0 %v284
  %2251 = vmatprep.subr.mxu0 0.0
  %2252 = vmatpush1.msra.mxu0 %v285
  %2253 = vmatprep.subr.mxu0 0.0
  %2254 = vmatpush1.msra.mxu0 %v286
  %2255 = vmatprep.subr.mxu0 0.0
  %2256 = vmatpush1.msra.mxu0 0.0
  %2257 = vmatprep.subr.mxu0 0.0
  %2258 = vmatpush1.msra.mxu0 0.0
  %2259 = vmatprep.subr.mxu0 0.0
  %2260 = vmatpush1.msra.mxu0 0.0
  %2261 = vmatprep.subr.mxu0 0.0
  %2262 = vmatpush1.msra.mxu0 0.0
  %2263 = vmatprep.subr.mxu0 0.0
  %2264 = vmatpush1.msra.mxu0 0.0
  %2265 = vmatprep.subr.mxu0 0.0
  %2266 = vmatpush1.msra.mxu0 0.0
  %2267 = vmatprep.subr.mxu0 0.0
  %2268 = vmatpush1.msra.mxu0 0.0
  %2269 = vmatprep.subr.mxu0 0.0
  %2270 = vmatpush1.msra.mxu0 0.0
  %2271 = vmatprep.subr.mxu0 0.0
  %2272 = vmatpush1.msra.mxu0 0.0
  %2273 = vmatprep.subr.mxu0 0.0
  %2274 = vmatpush1.msra.mxu0 0.0
  %2275 = vmatprep.subr.mxu0 0.0
  %2276 = vmatpush1.msra.mxu0 0.0
  %2277 = vmatprep.subr.mxu0 0.0
  %2278 = vmatpush1.msra.mxu0 0.0
  %2279 = vmatprep.subr.mxu0 0.0
  %2280 = vmatpush1.msra.mxu0 0.0
  %2281 = vmatprep.subr.mxu0 0.0
  %2282 = vmatpush1.msra.mxu0 0.0
  %2283 = vmatprep.subr.mxu0 0.0
  %2284 = vmatpush1.msra.mxu0 0.0
  %2285 = vmatprep.subr.mxu0 0.0
  %2286 = vmatpush1.msra.mxu0 0.0
  %2287 = vmatprep.subr.mxu0 0.0
  %2288 = vmatpush1.msra.mxu0 0.0
  %2289 = vmatprep.subr.mxu0 0.0
  %2290 = vmatpush1.msra.mxu0 0.0
  %2291 = vmatprep.subr.mxu0 0.0
  %2292 = vmatpush1.msra.mxu0 0.0
  %2293 = vmatprep.subr.mxu0 0.0
  %2294 = vmatpush1.msra.mxu0 0.0
  %2295 = vmatprep.subr.mxu0 0.0
  %2296 = vmatpush1.msra.mxu0 0.0
  %2297 = vmatprep.subr.mxu0 0.0
  %2298 = vmatpush1.msra.mxu0 0.0
  %2299 = vmatprep.subr.mxu0 0.0
  %2300 = vmatpush1.msra.mxu0 0.0
  %2301 = vmatprep.subr.mxu0 0.0
  %2302 = vmatpush1.msra.mxu0 0.0
  %2303 = vmatprep.subr.mxu0 0.0
  %2304 = vmatpush1.msra.mxu0 0.0
  %2305 = vmatprep.subr.mxu0 0.0
  %2306 = vmatpush1.msra.mxu0 0.0
  %2307 = vmatprep.subr.mxu0 0.0
  %2308 = vmatpush1.msra.mxu0 0.0
  %2309 = vmatprep.subr.mxu0 0.0
  %2310 = vmatpush1.msra.mxu0 0.0
  %2311 = vmatprep.mubr.f32.mxu0 0.0
  %2312 = vmatmul.mubr.f32.gmra.mrb[0].mxu0 %v2245
  %v2313 = vpop.f32.mrb[0].mxu0
  %v2314 = vadd.f32 %v380, %v2313
  %v2315 = vpop.f32.mrb[0].mxu0
  %2316 = vdwg.mxu0
  %2317 = vst [vmem:[#allocation3 + $0x60] sm:$0xff] %v2314
  %v2318 = vld [vmem:[#allocation2 + $0x68] sm:$0xff]
  %v2319 = vpack.c.bf16 %v2235, %v2235
  %2321 = vrot.lane.b32.xlu0 %v2319, 64
  %v2322 = vpop.permute.xlu0 %2321
  %v2324 = vsel %vm301, %v2322, 0
  %2326 = vmatprep.subr.bf16.mxu0 0
  %2327 = vmatpush1.bf16.msra.mxu0 %v297
  %2328 = vmatprep.subr.bf16.mxu0 0
  %2329 = vmatpush1.bf16.msra.mxu0 %v298
  %2330 = vmatprep.subr.bf16.mxu0 0
  %2331 = vmatpush1.bf16.msra.mxu0 0
  %2332 = vmatprep.subr.bf16.mxu0 0
  %2333 = vmatpush1.bf16.msra.mxu0 0
  %2334 = vmatprep.subr.bf16.mxu0 0
  %2335 = vmatpush1.bf16.msra.mxu0 0
  %2336 = vmatprep.subr.bf16.mxu0 0
  %2337 = vmatpush1.bf16.msra.mxu0 0
  %2338 = vmatprep.subr.bf16.mxu0 0
  %2339 = vmatpush1.bf16.msra.mxu0 0
  %2340 = vmatprep.subr.bf16.mxu0 0
  %2341 = vmatpush1.bf16.msra.mxu0 0
  %2342 = vmatprep.subr.bf16.mxu0 0
  %2343 = vmatpush1.bf16.msra.mxu0 0
  %2344 = vmatprep.subr.bf16.mxu0 0
  %2345 = vmatpush1.bf16.msra.mxu0 0
  %2346 = vmatprep.subr.bf16.mxu0 0
  %2347 = vmatpush1.bf16.msra.mxu0 0
  %2348 = vmatprep.subr.bf16.mxu0 0
  %2349 = vmatpush1.bf16.msra.mxu0 0
  %2350 = vmatprep.subr.bf16.mxu0 0
  %2351 = vmatpush1.bf16.msra.mxu0 0
  %2352 = vmatprep.subr.bf16.mxu0 0
  %2353 = vmatpush1.bf16.msra.mxu0 0
  %2354 = vmatprep.subr.bf16.mxu0 0
  %2355 = vmatpush1.bf16.msra.mxu0 0
  %2356 = vmatprep.subr.bf16.mxu0 0
  %2357 = vmatpush1.bf16.msra.mxu0 0
  %2358 = vmatprep.mubr.bf16.mxu0 0
  %2359 = vmatmul.mubr.bf16.gmra.mrb[0].mxu0 %v2324
  %v2360 = vpop.f32.mrb[0].mxu0
  %v2361 = vadd.f32 0.0, %v2360
  %v2362 = vpop.f32.mrb[0].mxu0
  %v2363 = vpop.f32.mrb[0].mxu0
  %v2364 = vpop.f32.mrb[0].mxu0
  %2365 = vdwg.mxu0
  %v2366 = vadd.f32 %v2318, %v2361
  %v2367 = vxor.u32 %v2366, 2147483648
  %v2368 = vmul.f32 %v2367, 1.442695
  %v2369 = vpow.pop %v2368
  %v2370 = vadd.f32 %v2369, 1.0
  %v2371 = vrcp.pop %v2370
  %v2372 = vmul.f32 1.0, %v2371
  %v2373 = vtanh.pop %v2366
  %v2374 = vmul.f32 %v2372, %v2229
  %2376 = vrot.lane.b32.xlu0 %v2373, 32
  %v2377 = vpop.permute.xlu0 %2376
  %v2379 = vmul.f32 %v2372, %v2377
  %2381 = vrot.lane.b32.xlu0 %v2379, 32
  %v2382 = vpop.permute.xlu0 %2381
  %v2384 = vadd.f32 %v2374, %v2382
  %v2385 = vtanh.pop %v2384
  %2387 = vrot.lane.b32.xlu0 %v2385, 32
  %v2388 = vpop.permute.xlu0 %2387
  %v2390 = vmul.f32 %v2372, %v2388
  %v2391 = vld [vmem:[%s1 + $0x68] sm:$0xff]
  %2393 = vrot.lane.b32.xlu0 %v2391, 64
  %v2394 = vpop.permute.xlu0 %2393
  %v2396 = vmul.f32 %v2390, %v2394
  %2398 = vrot.lane.b32.xlu0 %v2396, 64
  %v2399 = vpop.permute.xlu0 %2398
  %v2400 = vsel %vm301, %v2399, 0
  %2402 = vmatprep.subr.mxu0 0.0
  %2403 = vmatpush1.msra.mxu0 %v283
  %2404 = vmatprep.subr.mxu0 0.0
  %2405 = vmatpush1.msra.mxu0 %v284
  %2406 = vmatprep.subr.mxu0 0.0
  %2407 = vmatpush1.msra.mxu0 %v285
  %2408 = vmatprep.subr.mxu0 0.0
  %2409 = vmatpush1.msra.mxu0 %v286
  %2410 = vmatprep.subr.mxu0 0.0
  %2411 = vmatpush1.msra.mxu0 0.0
  %2412 = vmatprep.subr.mxu0 0.0
  %2413 = vmatpush1.msra.mxu0 0.0
  %2414 = vmatprep.subr.mxu0 0.0
  %2415 = vmatpush1.msra.mxu0 0.0
  %2416 = vmatprep.subr.mxu0 0.0
  %2417 = vmatpush1.msra.mxu0 0.0
  %2418 = vmatprep.subr.mxu0 0.0
  %2419 = vmatpush1.msra.mxu0 0.0
  %2420 = vmatprep.subr.mxu0 0.0
  %2421 = vmatpush1.msra.mxu0 0.0
  %2422 = vmatprep.subr.mxu0 0.0
  %2423 = vmatpush1.msra.mxu0 0.0
  %2424 = vmatprep.subr.mxu0 0.0
  %2425 = vmatpush1.msra.mxu0 0.0
  %2426 = vmatprep.subr.mxu0 0.0
  %2427 = vmatpush1.msra.mxu0 0.0
  %2428 = vmatprep.subr.mxu0 0.0
  %2429 = vmatpush1.msra.mxu0 0.0
  %2430 = vmatprep.subr.mxu0 0.0
  %2431 = vmatpush1.msra.mxu0 0.0
  %2432 = vmatprep.subr.mxu0 0.0
  %2433 = vmatpush1.msra.mxu0 0.0
  %2434 = vmatprep.subr.mxu0 0.0
  %2435 = vmatpush1.msra.mxu0 0.0
  %2436 = vmatprep.subr.mxu0 0.0
  %2437 = vmatpush1.msra.mxu0 0.0
  %2438 = vmatprep.subr.mxu0 0.0
  %2439 = vmatpush1.msra.mxu0 0.0
  %2440 = vmatprep.subr.mxu0 0.0
  %2441 = vmatpush1.msra.mxu0 0.0
  %2442 = vmatprep.subr.mxu0 0.0
  %2443 = vmatpush1.msra.mxu0 0.0
  %2444 = vmatprep.subr.mxu0 0.0
  %2445 = vmatpush1.msra.mxu0 0.0
  %2446 = vmatprep.subr.mxu0 0.0
  %2447 = vmatpush1.msra.mxu0 0.0
  %2448 = vmatprep.subr.mxu0 0.0
  %2449 = vmatpush1.msra.mxu0 0.0
  %2450 = vmatprep.subr.mxu0 0.0
  %2451 = vmatpush1.msra.mxu0 0.0
  %2452 = vmatprep.subr.mxu0 0.0
  %2453 = vmatpush1.msra.mxu0 0.0
  %2454 = vmatprep.subr.mxu0 0.0
  %2455 = vmatpush1.msra.mxu0 0.0
  %2456 = vmatprep.subr.mxu0 0.0
  %2457 = vmatpush1.msra.mxu0 0.0
  %2458 = vmatprep.subr.mxu0 0.0
  %2459 = vmatpush1.msra.mxu0 0.0
  %2460 = vmatprep.subr.mxu0 0.0
  %2461 = vmatpush1.msra.mxu0 0.0
  %2462 = vmatprep.subr.mxu0 0.0
  %2463 = vmatpush1.msra.mxu0 0.0
  %2464 = vmatprep.subr.mxu0 0.0
  %2465 = vmatpush1.msra.mxu0 0.0
  %2466 = vmatprep.mubr.f32.mxu0 0.0
  %2467 = vmatmul.mubr.f32.gmra.mrb[0].mxu0 %v2400
  %v2468 = vpop.f32.mrb[0].mxu0
  %v2469 = vadd.f32 %v380, %v2468
  %v2470 = vpop.f32.mrb[0].mxu0
  %2471 = vdwg.mxu0
  %2472 = vst [vmem:[#allocation3 + $0x68] sm:$0xff] %v2469
  %v2473 = vld [vmem:[#allocation2 + $0x70] sm:$0xff]
  %v2474 = vpack.c.bf16 %v2390, %v2390
  %2476 = vrot.lane.b32.xlu0 %v2474, 64
  %v2477 = vpop.permute.xlu0 %2476
  %v2479 = vsel %vm301, %v2477, 0
  %2481 = vmatprep.subr.bf16.mxu0 0
  %2482 = vmatpush1.bf16.msra.mxu0 %v297
  %2483 = vmatprep.subr.bf16.mxu0 0
  %2484 = vmatpush1.bf16.msra.mxu0 %v298
  %2485 = vmatprep.subr.bf16.mxu0 0
  %2486 = vmatpush1.bf16.msra.mxu0 0
  %2487 = vmatprep.subr.bf16.mxu0 0
  %2488 = vmatpush1.bf16.msra.mxu0 0
  %2489 = vmatprep.subr.bf16.mxu0 0
  %2490 = vmatpush1.bf16.msra.mxu0 0
  %2491 = vmatprep.subr.bf16.mxu0 0
  %2492 = vmatpush1.bf16.msra.mxu0 0
  %2493 = vmatprep.subr.bf16.mxu0 0
  %2494 = vmatpush1.bf16.msra.mxu0 0
  %2495 = vmatprep.subr.bf16.mxu0 0
  %2496 = vmatpush1.bf16.msra.mxu0 0
  %2497 = vmatprep.subr.bf16.mxu0 0
  %2498 = vmatpush1.bf16.msra.mxu0 0
  %2499 = vmatprep.subr.bf16.mxu0 0
  %2500 = vmatpush1.bf16.msra.mxu0 0
  %2501 = vmatprep.subr.bf16.mxu0 0
  %2502 = vmatpush1.bf16.msra.mxu0 0
  %2503 = vmatprep.subr.bf16.mxu0 0
  %2504 = vmatpush1.bf16.msra.mxu0 0
  %2505 = vmatprep.subr.bf16.mxu0 0
  %2506 = vmatpush1.bf16.msra.mxu0 0
  %2507 = vmatprep.subr.bf16.mxu0 0
  %2508 = vmatpush1.bf16.msra.mxu0 0
  %2509 = vmatprep.subr.bf16.mxu0 0
  %2510 = vmatpush1.bf16.msra.mxu0 0
  %2511 = vmatprep.subr.bf16.mxu0 0
  %2512 = vmatpush1.bf16.msra.mxu0 0
  %2513 = vmatprep.mubr.bf16.mxu0 0
  %2514 = vmatmul.mubr.bf16.gmra.mrb[0].mxu0 %v2479
  %v2515 = vpop.f32.mrb[0].mxu0
  %v2516 = vadd.f32 0.0, %v2515
  %v2517 = vpop.f32.mrb[0].mxu0
  %v2518 = vpop.f32.mrb[0].mxu0
  %v2519 = vpop.f32.mrb[0].mxu0
  %2520 = vdwg.mxu0
  %v2521 = vadd.f32 %v2473, %v2516
  %v2522 = vxor.u32 %v2521, 2147483648
  %v2523 = vmul.f32 %v2522, 1.442695
  %v2524 = vpow.pop %v2523
  %v2525 = vadd.f32 %v2524, 1.0
  %v2526 = vrcp.pop %v2525
  %v2527 = vmul.f32 1.0, %v2526
  %v2528 = vtanh.pop %v2521
  %v2529 = vmul.f32 %v2527, %v2384
  %2531 = vrot.lane.b32.xlu0 %v2528, 32
  %v2532 = vpop.permute.xlu0 %2531
  %v2534 = vmul.f32 %v2527, %v2532
  %2536 = vrot.lane.b32.xlu0 %v2534, 32
  %v2537 = vpop.permute.xlu0 %2536
  %v2539 = vadd.f32 %v2529, %v2537
  %v2540 = vtanh.pop %v2539
  %2542 = vrot.lane.b32.xlu0 %v2540, 32
  %v2543 = vpop.permute.xlu0 %2542
  %v2545 = vmul.f32 %v2527, %v2543
  %v2546 = vld [vmem:[%s1 + $0x70] sm:$0xff]
  %2548 = vrot.lane.b32.xlu0 %v2546, 64
  %v2549 = vpop.permute.xlu0 %2548
  %v2551 = vmul.f32 %v2545, %v2549
  %2553 = vrot.lane.b32.xlu0 %v2551, 64
  %v2554 = vpop.permute.xlu0 %2553
  %v2555 = vsel %vm301, %v2554, 0
  %2557 = vmatprep.subr.mxu0 0.0
  %2558 = vmatpush1.msra.mxu0 %v283
  %2559 = vmatprep.subr.mxu0 0.0
  %2560 = vmatpush1.msra.mxu0 %v284
  %2561 = vmatprep.subr.mxu0 0.0
  %2562 = vmatpush1.msra.mxu0 %v285
  %2563 = vmatprep.subr.mxu0 0.0
  %2564 = vmatpush1.msra.mxu0 %v286
  %2565 = vmatprep.subr.mxu0 0.0
  %2566 = vmatpush1.msra.mxu0 0.0
  %2567 = vmatprep.subr.mxu0 0.0
  %2568 = vmatpush1.msra.mxu0 0.0
  %2569 = vmatprep.subr.mxu0 0.0
  %2570 = vmatpush1.msra.mxu0 0.0
  %2571 = vmatprep.subr.mxu0 0.0
  %2572 = vmatpush1.msra.mxu0 0.0
  %2573 = vmatprep.subr.mxu0 0.0
  %2574 = vmatpush1.msra.mxu0 0.0
  %2575 = vmatprep.subr.mxu0 0.0
  %2576 = vmatpush1.msra.mxu0 0.0
  %2577 = vmatprep.subr.mxu0 0.0
  %2578 = vmatpush1.msra.mxu0 0.0
  %2579 = vmatprep.subr.mxu0 0.0
  %2580 = vmatpush1.msra.mxu0 0.0
  %2581 = vmatprep.subr.mxu0 0.0
  %2582 = vmatpush1.msra.mxu0 0.0
  %2583 = vmatprep.subr.mxu0 0.0
  %2584 = vmatpush1.msra.mxu0 0.0
  %2585 = vmatprep.subr.mxu0 0.0
  %2586 = vmatpush1.msra.mxu0 0.0
  %2587 = vmatprep.subr.mxu0 0.0
  %2588 = vmatpush1.msra.mxu0 0.0
  %2589 = vmatprep.subr.mxu0 0.0
  %2590 = vmatpush1.msra.mxu0 0.0
  %2591 = vmatprep.subr.mxu0 0.0
  %2592 = vmatpush1.msra.mxu0 0.0
  %2593 = vmatprep.subr.mxu0 0.0
  %2594 = vmatpush1.msra.mxu0 0.0
  %2595 = vmatprep.subr.mxu0 0.0
  %2596 = vmatpush1.msra.mxu0 0.0
  %2597 = vmatprep.subr.mxu0 0.0
  %2598 = vmatpush1.msra.mxu0 0.0
  %2599 = vmatprep.subr.mxu0 0.0
  %2600 = vmatpush1.msra.mxu0 0.0
  %2601 = vmatprep.subr.mxu0 0.0
  %2602 = vmatpush1.msra.mxu0 0.0
  %2603 = vmatprep.subr.mxu0 0.0
  %2604 = vmatpush1.msra.mxu0 0.0
  %2605 = vmatprep.subr.mxu0 0.0
  %2606 = vmatpush1.msra.mxu0 0.0
  %2607 = vmatprep.subr.mxu0 0.0
  %2608 = vmatpush1.msra.mxu0 0.0
  %2609 = vmatprep.subr.mxu0 0.0
  %2610 = vmatpush1.msra.mxu0 0.0
  %2611 = vmatprep.subr.mxu0 0.0
  %2612 = vmatpush1.msra.mxu0 0.0
  %2613 = vmatprep.subr.mxu0 0.0
  %2614 = vmatpush1.msra.mxu0 0.0
  %2615 = vmatprep.subr.mxu0 0.0
  %2616 = vmatpush1.msra.mxu0 0.0
  %2617 = vmatprep.subr.mxu0 0.0
  %2618 = vmatpush1.msra.mxu0 0.0
  %2619 = vmatprep.subr.mxu0 0.0
  %2620 = vmatpush1.msra.mxu0 0.0
  %2621 = vmatprep.mubr.f32.mxu0 0.0
  %2622 = vmatmul.mubr.f32.gmra.mrb[0].mxu0 %v2555
  %v2623 = vpop.f32.mrb[0].mxu0
  %v2624 = vadd.f32 %v380, %v2623
  %v2625 = vpop.f32.mrb[0].mxu0
  %2626 = vdwg.mxu0
  %2627 = vst [vmem:[#allocation3 + $0x70] sm:$0xff] %v2624
  %v2628 = vld [vmem:[#allocation2 + $0x78] sm:$0xff]
  %v2629 = vpack.c.bf16 %v2545, %v2545
  %2631 = vrot.lane.b32.xlu0 %v2629, 64
  %v2632 = vpop.permute.xlu0 %2631
  %v2634 = vsel %vm301, %v2632, 0
  %2636 = vmatprep.subr.bf16.mxu0 0
  %2637 = vmatpush1.bf16.msra.mxu0 %v297
  %2638 = vmatprep.subr.bf16.mxu0 0
  %2639 = vmatpush1.bf16.msra.mxu0 %v298
  %2640 = vmatprep.subr.bf16.mxu0 0
  %2641 = vmatpush1.bf16.msra.mxu0 0
  %2642 = vmatprep.subr.bf16.mxu0 0
  %2643 = vmatpush1.bf16.msra.mxu0 0
  %2644 = vmatprep.subr.bf16.mxu0 0
  %2645 = vmatpush1.bf16.msra.mxu0 0
  %2646 = vmatprep.subr.bf16.mxu0 0
  %2647 = vmatpush1.bf16.msra.mxu0 0
  %2648 = vmatprep.subr.bf16.mxu0 0
  %2649 = vmatpush1.bf16.msra.mxu0 0
  %2650 = vmatprep.subr.bf16.mxu0 0
  %2651 = vmatpush1.bf16.msra.mxu0 0
  %2652 = vmatprep.subr.bf16.mxu0 0
  %2653 = vmatpush1.bf16.msra.mxu0 0
  %2654 = vmatprep.subr.bf16.mxu0 0
  %2655 = vmatpush1.bf16.msra.mxu0 0
  %2656 = vmatprep.subr.bf16.mxu0 0
  %2657 = vmatpush1.bf16.msra.mxu0 0
  %2658 = vmatprep.subr.bf16.mxu0 0
  %2659 = vmatpush1.bf16.msra.mxu0 0
  %2660 = vmatprep.subr.bf16.mxu0 0
  %2661 = vmatpush1.bf16.msra.mxu0 0
  %2662 = vmatprep.subr.bf16.mxu0 0
  %2663 = vmatpush1.bf16.msra.mxu0 0
  %2664 = vmatprep.subr.bf16.mxu0 0
  %2665 = vmatpush1.bf16.msra.mxu0 0
  %2666 = vmatprep.subr.bf16.mxu0 0
  %2667 = vmatpush1.bf16.msra.mxu0 0
  %2668 = vmatprep.mubr.bf16.mxu0 0
  %2669 = vmatmul.mubr.bf16.gmra.mrb[0].mxu0 %v2634
  %v2670 = vpop.f32.mrb[0].mxu0
  %v2671 = vadd.f32 0.0, %v2670
  %v2672 = vpop.f32.mrb[0].mxu0
  %v2673 = vpop.f32.mrb[0].mxu0
  %v2674 = vpop.f32.mrb[0].mxu0
  %2675 = vdwg.mxu0
  %v2676 = vadd.f32 %v2628, %v2671
  %v2677 = vxor.u32 %v2676, 2147483648
  %v2678 = vmul.f32 %v2677, 1.442695
  %v2679 = vpow.pop %v2678
  %v2680 = vadd.f32 %v2679, 1.0
  %v2681 = vrcp.pop %v2680
  %v2682 = vmul.f32 1.0, %v2681
  %v2683 = vtanh.pop %v2676
  %v2684 = vmul.f32 %v2682, %v2539
  %2686 = vrot.lane.b32.xlu0 %v2683, 32
  %v2687 = vpop.permute.xlu0 %2686
  %v2689 = vmul.f32 %v2682, %v2687
  %2691 = vrot.lane.b32.xlu0 %v2689, 32
  %v2692 = vpop.permute.xlu0 %2691
  %v2694 = vadd.f32 %v2684, %v2692
  %v2695 = vtanh.pop %v2694
  %2697 = vrot.lane.b32.xlu0 %v2695, 32
  %v2698 = vpop.permute.xlu0 %2697
  %v2700 = vmul.f32 %v2682, %v2698
  %v2701 = vld [vmem:[%s1 + $0x78] sm:$0xff]
  %2703 = vrot.lane.b32.xlu0 %v2701, 64
  %v2704 = vpop.permute.xlu0 %2703
  %v2706 = vmul.f32 %v2700, %v2704
  %2708 = vrot.lane.b32.xlu0 %v2706, 64
  %v2709 = vpop.permute.xlu0 %2708
  %v2710 = vsel %vm301, %v2709, 0
  %2712 = vmatprep.subr.mxu0 0.0
  %2713 = vmatpush1.msra.mxu0 %v283
  %2714 = vmatprep.subr.mxu0 0.0
  %2715 = vmatpush1.msra.mxu0 %v284
  %2716 = vmatprep.subr.mxu0 0.0
  %2717 = vmatpush1.msra.mxu0 %v285
  %2718 = vmatprep.subr.mxu0 0.0
  %2719 = vmatpush1.msra.mxu0 %v286
  %2720 = vmatprep.subr.mxu0 0.0
  %2721 = vmatpush1.msra.mxu0 0.0
  %2722 = vmatprep.subr.mxu0 0.0
  %2723 = vmatpush1.msra.mxu0 0.0
  %2724 = vmatprep.subr.mxu0 0.0
  %2725 = vmatpush1.msra.mxu0 0.0
  %2726 = vmatprep.subr.mxu0 0.0
  %2727 = vmatpush1.msra.mxu0 0.0
  %2728 = vmatprep.subr.mxu0 0.0
  %2729 = vmatpush1.msra.mxu0 0.0
  %2730 = vmatprep.subr.mxu0 0.0
  %2731 = vmatpush1.msra.mxu0 0.0
  %2732 = vmatprep.subr.mxu0 0.0
  %2733 = vmatpush1.msra.mxu0 0.0
  %2734 = vmatprep.subr.mxu0 0.0
  %2735 = vmatpush1.msra.mxu0 0.0
  %2736 = vmatprep.subr.mxu0 0.0
  %2737 = vmatpush1.msra.mxu0 0.0
  %2738 = vmatprep.subr.mxu0 0.0
  %2739 = vmatpush1.msra.mxu0 0.0
  %2740 = vmatprep.subr.mxu0 0.0
  %2741 = vmatpush1.msra.mxu0 0.0
  %2742 = vmatprep.subr.mxu0 0.0
  %2743 = vmatpush1.msra.mxu0 0.0
  %2744 = vmatprep.subr.mxu0 0.0
  %2745 = vmatpush1.msra.mxu0 0.0
  %2746 = vmatprep.subr.mxu0 0.0
  %2747 = vmatpush1.msra.mxu0 0.0
  %2748 = vmatprep.subr.mxu0 0.0
  %2749 = vmatpush1.msra.mxu0 0.0
  %2750 = vmatprep.subr.mxu0 0.0
  %2751 = vmatpush1.msra.mxu0 0.0
  %2752 = vmatprep.subr.mxu0 0.0
  %2753 = vmatpush1.msra.mxu0 0.0
  %2754 = vmatprep.subr.mxu0 0.0
  %2755 = vmatpush1.msra.mxu0 0.0
  %2756 = vmatprep.subr.mxu0 0.0
  %2757 = vmatpush1.msra.mxu0 0.0
  %2758 = vmatprep.subr.mxu0 0.0
  %2759 = vmatpush1.msra.mxu0 0.0
  %2760 = vmatprep.subr.mxu0 0.0
  %2761 = vmatpush1.msra.mxu0 0.0
  %2762 = vmatprep.subr.mxu0 0.0
  %2763 = vmatpush1.msra.mxu0 0.0
  %2764 = vmatprep.subr.mxu0 0.0
  %2765 = vmatpush1.msra.mxu0 0.0
  %2766 = vmatprep.subr.mxu0 0.0
  %2767 = vmatpush1.msra.mxu0 0.0
  %2768 = vmatprep.subr.mxu0 0.0
  %2769 = vmatpush1.msra.mxu0 0.0
  %2770 = vmatprep.subr.mxu0 0.0
  %2771 = vmatpush1.msra.mxu0 0.0
  %2772 = vmatprep.subr.mxu0 0.0
  %2773 = vmatpush1.msra.mxu0 0.0
  %2774 = vmatprep.subr.mxu0 0.0
  %2775 = vmatpush1.msra.mxu0 0.0
  %2776 = vmatprep.mubr.f32.mxu0 0.0
  %2777 = vmatmul.mubr.f32.gmra.mrb[0].mxu0 %v2710
  %v2778 = vpop.f32.mrb[0].mxu0
  %v2779 = vadd.f32 %v380, %v2778
  %v2780 = vpop.f32.mrb[0].mxu0
  %2781 = vdwg.mxu0
  %2782 = vst [vmem:[#allocation3 + $0x78] sm:$0xff] %v2779
  %v2783 = vld [vmem:[%s8] sm:$0xf]
  %v2784 = vld [vmem:[%s8 + $0x4] sm:$0xf]
  %v2785 = vld [vmem:[%s8 + $0x8] sm:$0xf]
  %v2786 = vld [vmem:[%s8 + $0xc] sm:$0xf]
  %v2787 = vld [vmem:[#allocation3] sm:$0xff]
  %v2792 = vunpack.c.l.b16 %v2783
  %v2793 = vunpack.c.l.b16 %v2784
  %v2794 = vunpack.c.l.b16 %v2785
  %v2795 = vunpack.c.l.b16 %v2786
  %v2796 = vpack.c.b16 %v2793, %v2792
  %v2797 = vpack.c.b16 %v2795, %v2794
  %2800 = vmatprep.subr.bf16.mxu0 0
  %2801 = vmatpush1.bf16.msra.mxu0 %v2796
  %2802 = vmatprep.subr.bf16.mxu0 0
  %2803 = vmatpush1.bf16.msra.mxu0 %v2797
  %2804 = vmatprep.subr.bf16.mxu0 0
  %2805 = vmatpush1.bf16.msra.mxu0 0
  %2806 = vmatprep.subr.bf16.mxu0 0
  %2807 = vmatpush1.bf16.msra.mxu0 0
  %2808 = vmatprep.subr.bf16.mxu0 0
  %2809 = vmatpush1.bf16.msra.mxu0 0
  %2810 = vmatprep.subr.bf16.mxu0 0
  %2811 = vmatpush1.bf16.msra.mxu0 0
  %2812 = vmatprep.subr.bf16.mxu0 0
  %2813 = vmatpush1.bf16.msra.mxu0 0
  %2814 = vmatprep.subr.bf16.mxu0 0
  %2815 = vmatpush1.bf16.msra.mxu0 0
  %2816 = vmatprep.subr.bf16.mxu0 0
  %2817 = vmatpush1.bf16.msra.mxu0 0
  %2818 = vmatprep.subr.bf16.mxu0 0
  %2819 = vmatpush1.bf16.msra.mxu0 0
  %2820 = vmatprep.subr.bf16.mxu0 0
  %2821 = vmatpush1.bf16.msra.mxu0 0
  %2822 = vmatprep.subr.bf16.mxu0 0
  %2823 = vmatpush1.bf16.msra.mxu0 0
  %2824 = vmatprep.subr.bf16.mxu0 0
  %2825 = vmatpush1.bf16.msra.mxu0 0
  %2826 = vmatprep.subr.bf16.mxu0 0
  %2827 = vmatpush1.bf16.msra.mxu0 0
  %2828 = vmatprep.subr.bf16.mxu0 0
  %2829 = vmatpush1.bf16.msra.mxu0 0
  %2830 = vmatprep.subr.bf16.mxu0 0
  %2831 = vmatpush1.bf16.msra.mxu0 0
  %2832 = vmatprep.mubr.bf16.mxu0 0
  %2833 = vmatmul.mubr.bf16.gmra.mrb[0].mxu0 %v303
  %v2834 = vpop.f32.mrb[0].mxu0
  %v2835 = vadd.f32 0.0, %v2834
  %v2836 = vpop.f32.mrb[0].mxu0
  %v2837 = vpop.f32.mrb[0].mxu0
  %v2838 = vpop.f32.mrb[0].mxu0
  %2839 = vdwg.mxu0
  %v2840 = vadd.f32 %v2787, %v2835
  %v2841 = vxor.u32 %v2840, 2147483648
  %v2842 = vmul.f32 %v2841, 1.442695
  %v2843 = vpow.pop %v2842
  %v2844 = vadd.f32 %v2843, 1.0
  %v2845 = vrcp.pop %v2844
  %v2846 = vmul.f32 1.0, %v2845
  %v2847 = vtanh.pop %v2840
  %v2848 = vmul.f32 %v2846, 0.0
  %2850 = vrot.lane.b32.xlu0 %v2847, 32
  %v2851 = vpop.permute.xlu0 %2850
  %v2853 = vmul.f32 %v2846, %v2851
  %2855 = vrot.lane.b32.xlu0 %v2853, 32
  %v2856 = vpop.permute.xlu0 %2855
  %v2858 = vadd.f32 %v2848, %v2856
  %v2859 = vtanh.pop %v2858
  %2861 = vrot.lane.b32.xlu0 %v2859, 32
  %v2862 = vpop.permute.xlu0 %2861
  %v2864 = vmul.f32 %v2846, %v2862
  %v2865 = vld [vmem:[%s1] sm:$0xff]
  %2867 = vrot.lane.b32.xlu0 %v2865, 64
  %v2868 = vpop.permute.xlu0 %2867
  %v2870 = vmul.f32 %v2864, %v2868
  %v2871 = vadd.f32 %v2870, 0.0
  %v2872 = vld [vmem:[#allocation3 + $0x8] sm:$0xff]
  %v2873 = vpack.c.bf16 %v2864, %v2864
  %2875 = vrot.lane.b32.xlu0 %v2873, 64
  %v2876 = vpop.permute.xlu0 %2875
  %v2878 = vsel %vm301, %v2876, 0
  %2880 = vmatprep.subr.bf16.mxu0 0
  %2881 = vmatpush1.bf16.msra.mxu0 %v2796
  %2882 = vmatprep.subr.bf16.mxu0 0
  %2883 = vmatpush1.bf16.msra.mxu0 %v2797
  %2884 = vmatprep.subr.bf16.mxu0 0
  %2885 = vmatpush1.bf16.msra.mxu0 0
  %2886 = vmatprep.subr.bf16.mxu0 0
  %2887 = vmatpush1.bf16.msra.mxu0 0
  %2888 = vmatprep.subr.bf16.mxu0 0
  %2889 = vmatpush1.bf16.msra.mxu0 0
  %2890 = vmatprep.subr.bf16.mxu0 0
  %2891 = vmatpush1.bf16.msra.mxu0 0
  %2892 = vmatprep.subr.bf16.mxu0 0
  %2893 = vmatpush1.bf16.msra.mxu0 0
  %2894 = vmatprep.subr.bf16.mxu0 0
  %2895 = vmatpush1.bf16.msra.mxu0 0
  %2896 = vmatprep.subr.bf16.mxu0 0
  %2897 = vmatpush1.bf16.msra.mxu0 0
  %2898 = vmatprep.subr.bf16.mxu0 0
  %2899 = vmatpush1.bf16.msra.mxu0 0
  %2900 = vmatprep.subr.bf16.mxu0 0
  %2901 = vmatpush1.bf16.msra.mxu0 0
  %2902 = vmatprep.subr.bf16.mxu0 0
  %2903 = vmatpush1.bf16.msra.mxu0 0
  %2904 = vmatprep.subr.bf16.mxu0 0
  %2905 = vmatpush1.bf16.msra.mxu0 0
  %2906 = vmatprep.subr.bf16.mxu0 0
  %2907 = vmatpush1.bf16.msra.mxu0 0
  %2908 = vmatprep.subr.bf16.mxu0 0
  %2909 = vmatpush1.bf16.msra.mxu0 0
  %2910 = vmatprep.subr.bf16.mxu0 0
  %2911 = vmatpush1.bf16.msra.mxu0 0
  %2912 = vmatprep.mubr.bf16.mxu0 0
  %2913 = vmatmul.mubr.bf16.gmra.mrb[0].mxu0 %v2878
  %v2914 = vpop.f32.mrb[0].mxu0
  %v2915 = vadd.f32 0.0, %v2914
  %v2916 = vpop.f32.mrb[0].mxu0
  %v2917 = vpop.f32.mrb[0].mxu0
  %v2918 = vpop.f32.mrb[0].mxu0
  %2919 = vdwg.mxu0
  %v2920 = vadd.f32 %v2872, %v2915
  %v2921 = vxor.u32 %v2920, 2147483648
  %v2922 = vmul.f32 %v2921, 1.442695
  %v2923 = vpow.pop %v2922
  %v2924 = vadd.f32 %v2923, 1.0
  %v2925 = vrcp.pop %v2924
  %v2926 = vmul.f32 1.0, %v2925
  %v2927 = vtanh.pop %v2920
  %v2928 = vmul.f32 %v2926, %v2858
  %2930 = vrot.lane.b32.xlu0 %v2927, 32
  %v2931 = vpop.permute.xlu0 %2930
  %v2933 = vmul.f32 %v2926, %v2931
  %2935 = vrot.lane.b32.xlu0 %v2933, 32
  %v2936 = vpop.permute.xlu0 %2935
  %v2938 = vadd.f32 %v2928, %v2936
  %v2939 = vtanh.pop %v2938
  %2941 = vrot.lane.b32.xlu0 %v2939, 32
  %v2942 = vpop.permute.xlu0 %2941
  %v2944 = vmul.f32 %v2926, %v2942
  %v2945 = vld [vmem:[%s1 + $0x8] sm:$0xff]
  %2947 = vrot.lane.b32.xlu0 %v2945, 64
  %v2948 = vpop.permute.xlu0 %2947
  %v2950 = vmul.f32 %v2944, %v2948
  %v2951 = vadd.f32 %v2871, %v2950
  %v2952 = vld [vmem:[#allocation3 + $0x10] sm:$0xff]
  %v2953 = vpack.c.bf16 %v2944, %v2944
  %2955 = vrot.lane.b32.xlu0 %v2953, 64
  %v2956 = vpop.permute.xlu0 %2955
  %v2958 = vsel %vm301, %v2956, 0
  %2960 = vmatprep.subr.bf16.mxu0 0
  %2961 = vmatpush1.bf16.msra.mxu0 %v2796
  %2962 = vmatprep.subr.bf16.mxu0 0
  %2963 = vmatpush1.bf16.msra.mxu0 %v2797
  %2964 = vmatprep.subr.bf16.mxu0 0
  %2965 = vmatpush1.bf16.msra.mxu0 0
  %2966 = vmatprep.subr.bf16.mxu0 0
  %2967 = vmatpush1.bf16.msra.mxu0 0
  %2968 = vmatprep.subr.bf16.mxu0 0
  %2969 = vmatpush1.bf16.msra.mxu0 0
  %2970 = vmatprep.subr.bf16.mxu0 0
  %2971 = vmatpush1.bf16.msra.mxu0 0
  %2972 = vmatprep.subr.bf16.mxu0 0
  %2973 = vmatpush1.bf16.msra.mxu0 0
  %2974 = vmatprep.subr.bf16.mxu0 0
  %2975 = vmatpush1.bf16.msra.mxu0 0
  %2976 = vmatprep.subr.bf16.mxu0 0
  %2977 = vmatpush1.bf16.msra.mxu0 0
  %2978 = vmatprep.subr.bf16.mxu0 0
  %2979 = vmatpush1.bf16.msra.mxu0 0
  %2980 = vmatprep.subr.bf16.mxu0 0
  %2981 = vmatpush1.bf16.msra.mxu0 0
  %2982 = vmatprep.subr.bf16.mxu0 0
  %2983 = vmatpush1.bf16.msra.mxu0 0
  %2984 = vmatprep.subr.bf16.mxu0 0
  %2985 = vmatpush1.bf16.msra.mxu0 0
  %2986 = vmatprep.subr.bf16.mxu0 0
  %2987 = vmatpush1.bf16.msra.mxu0 0
  %2988 = vmatprep.subr.bf16.mxu0 0
  %2989 = vmatpush1.bf16.msra.mxu0 0
  %2990 = vmatprep.subr.bf16.mxu0 0
  %2991 = vmatpush1.bf16.msra.mxu0 0
  %2992 = vmatprep.mubr.bf16.mxu0 0
  %2993 = vmatmul.mubr.bf16.gmra.mrb[0].mxu0 %v2958
  %v2994 = vpop.f32.mrb[0].mxu0
  %v2995 = vadd.f32 0.0, %v2994
  %v2996 = vpop.f32.mrb[0].mxu0
  %v2997 = vpop.f32.mrb[0].mxu0
  %v2998 = vpop.f32.mrb[0].mxu0
  %2999 = vdwg.mxu0
  %v3000 = vadd.f32 %v2952, %v2995
  %v3001 = vxor.u32 %v3000, 2147483648
  %v3002 = vmul.f32 %v3001, 1.442695
  %v3003 = vpow.pop %v3002
  %v3004 = vadd.f32 %v3003, 1.0
  %v3005 = vrcp.pop %v3004
  %v3006 = vmul.f32 1.0, %v3005
  %v3007 = vtanh.pop %v3000
  %v3008 = vmul.f32 %v3006, %v2938
  %3010 = vrot.lane.b32.xlu0 %v3007, 32
  %v3011 = vpop.permute.xlu0 %3010
  %v3013 = vmul.f32 %v3006, %v3011
  %3015 = vrot.lane.b32.xlu0 %v3013, 32
  %v3016 = vpop.permute.xlu0 %3015
  %v3018 = vadd.f32 %v3008, %v3016
  %v3019 = vtanh.pop %v3018
  %3021 = vrot.lane.b32.xlu0 %v3019, 32
  %v3022 = vpop.permute.xlu0 %3021
  %v3024 = vmul.f32 %v3006, %v3022
  %v3025 = vld [vmem:[%s1 + $0x10] sm:$0xff]
  %3027 = vrot.lane.b32.xlu0 %v3025, 64
  %v3028 = vpop.permute.xlu0 %3027
  %v3030 = vmul.f32 %v3024, %v3028
  %v3031 = vadd.f32 %v2951, %v3030
  %v3032 = vld [vmem:[#allocation3 + $0x18] sm:$0xff]
  %v3033 = vpack.c.bf16 %v3024, %v3024
  %3035 = vrot.lane.b32.xlu0 %v3033, 64
  %v3036 = vpop.permute.xlu0 %3035
  %v3038 = vsel %vm301, %v3036, 0
  %3040 = vmatprep.subr.bf16.mxu0 0
  %3041 = vmatpush1.bf16.msra.mxu0 %v2796
  %3042 = vmatprep.subr.bf16.mxu0 0
  %3043 = vmatpush1.bf16.msra.mxu0 %v2797
  %3044 = vmatprep.subr.bf16.mxu0 0
  %3045 = vmatpush1.bf16.msra.mxu0 0
  %3046 = vmatprep.subr.bf16.mxu0 0
  %3047 = vmatpush1.bf16.msra.mxu0 0
  %3048 = vmatprep.subr.bf16.mxu0 0
  %3049 = vmatpush1.bf16.msra.mxu0 0
  %3050 = vmatprep.subr.bf16.mxu0 0
  %3051 = vmatpush1.bf16.msra.mxu0 0
  %3052 = vmatprep.subr.bf16.mxu0 0
  %3053 = vmatpush1.bf16.msra.mxu0 0
  %3054 = vmatprep.subr.bf16.mxu0 0
  %3055 = vmatpush1.bf16.msra.mxu0 0
  %3056 = vmatprep.subr.bf16.mxu0 0
  %3057 = vmatpush1.bf16.msra.mxu0 0
  %3058 = vmatprep.subr.bf16.mxu0 0
  %3059 = vmatpush1.bf16.msra.mxu0 0
  %3060 = vmatprep.subr.bf16.mxu0 0
  %3061 = vmatpush1.bf16.msra.mxu0 0
  %3062 = vmatprep.subr.bf16.mxu0 0
  %3063 = vmatpush1.bf16.msra.mxu0 0
  %3064 = vmatprep.subr.bf16.mxu0 0
  %3065 = vmatpush1.bf16.msra.mxu0 0
  %3066 = vmatprep.subr.bf16.mxu0 0
  %3067 = vmatpush1.bf16.msra.mxu0 0
  %3068 = vmatprep.subr.bf16.mxu0 0
  %3069 = vmatpush1.bf16.msra.mxu0 0
  %3070 = vmatprep.subr.bf16.mxu0 0
  %3071 = vmatpush1.bf16.msra.mxu0 0
  %3072 = vmatprep.mubr.bf16.mxu0 0
  %3073 = vmatmul.mubr.bf16.gmra.mrb[0].mxu0 %v3038
  %v3074 = vpop.f32.mrb[0].mxu0
  %v3075 = vadd.f32 0.0, %v3074
  %v3076 = vpop.f32.mrb[0].mxu0
  %v3077 = vpop.f32.mrb[0].mxu0
  %v3078 = vpop.f32.mrb[0].mxu0
  %3079 = vdwg.mxu0
  %v3080 = vadd.f32 %v3032, %v3075
  %v3081 = vxor.u32 %v3080, 2147483648
  %v3082 = vmul.f32 %v3081, 1.442695
  %v3083 = vpow.pop %v3082
  %v3084 = vadd.f32 %v3083, 1.0
  %v3085 = vrcp.pop %v3084
  %v3086 = vmul.f32 1.0, %v3085
  %v3087 = vtanh.pop %v3080
  %v3088 = vmul.f32 %v3086, %v3018
  %3090 = vrot.lane.b32.xlu0 %v3087, 32
  %v3091 = vpop.permute.xlu0 %3090
  %v3093 = vmul.f32 %v3086, %v3091
  %3095 = vrot.lane.b32.xlu0 %v3093, 32
  %v3096 = vpop.permute.xlu0 %3095
  %v3098 = vadd.f32 %v3088, %v3096
  %v3099 = vtanh.pop %v3098
  %3101 = vrot.lane.b32.xlu0 %v3099, 32
  %v3102 = vpop.permute.xlu0 %3101
  %v3104 = vmul.f32 %v3086, %v3102
  %v3105 = vld [vmem:[%s1 + $0x18] sm:$0xff]
  %3107 = vrot.lane.b32.xlu0 %v3105, 64
  %v3108 = vpop.permute.xlu0 %3107
  %v3110 = vmul.f32 %v3104, %v3108
  %v3111 = vadd.f32 %v3031, %v3110
  %v3112 = vld [vmem:[#allocation3 + $0x20] sm:$0xff]
  %v3113 = vpack.c.bf16 %v3104, %v3104
  %3115 = vrot.lane.b32.xlu0 %v3113, 64
  %v3116 = vpop.permute.xlu0 %3115
  %v3118 = vsel %vm301, %v3116, 0
  %3120 = vmatprep.subr.bf16.mxu0 0
  %3121 = vmatpush1.bf16.msra.mxu0 %v2796
  %3122 = vmatprep.subr.bf16.mxu0 0
  %3123 = vmatpush1.bf16.msra.mxu0 %v2797
  %3124 = vmatprep.subr.bf16.mxu0 0
  %3125 = vmatpush1.bf16.msra.mxu0 0
  %3126 = vmatprep.subr.bf16.mxu0 0
  %3127 = vmatpush1.bf16.msra.mxu0 0
  %3128 = vmatprep.subr.bf16.mxu0 0
  %3129 = vmatpush1.bf16.msra.mxu0 0
  %3130 = vmatprep.subr.bf16.mxu0 0
  %3131 = vmatpush1.bf16.msra.mxu0 0
  %3132 = vmatprep.subr.bf16.mxu0 0
  %3133 = vmatpush1.bf16.msra.mxu0 0
  %3134 = vmatprep.subr.bf16.mxu0 0
  %3135 = vmatpush1.bf16.msra.mxu0 0
  %3136 = vmatprep.subr.bf16.mxu0 0
  %3137 = vmatpush1.bf16.msra.mxu0 0
  %3138 = vmatprep.subr.bf16.mxu0 0
  %3139 = vmatpush1.bf16.msra.mxu0 0
  %3140 = vmatprep.subr.bf16.mxu0 0
  %3141 = vmatpush1.bf16.msra.mxu0 0
  %3142 = vmatprep.subr.bf16.mxu0 0
  %3143 = vmatpush1.bf16.msra.mxu0 0
  %3144 = vmatprep.subr.bf16.mxu0 0
  %3145 = vmatpush1.bf16.msra.mxu0 0
  %3146 = vmatprep.subr.bf16.mxu0 0
  %3147 = vmatpush1.bf16.msra.mxu0 0
  %3148 = vmatprep.subr.bf16.mxu0 0
  %3149 = vmatpush1.bf16.msra.mxu0 0
  %3150 = vmatprep.subr.bf16.mxu0 0
  %3151 = vmatpush1.bf16.msra.mxu0 0
  %3152 = vmatprep.mubr.bf16.mxu0 0
  %3153 = vmatmul.mubr.bf16.gmra.mrb[0].mxu0 %v3118
  %v3154 = vpop.f32.mrb[0].mxu0
  %v3155 = vadd.f32 0.0, %v3154
  %v3156 = vpop.f32.mrb[0].mxu0
  %v3157 = vpop.f32.mrb[0].mxu0
  %v3158 = vpop.f32.mrb[0].mxu0
  %3159 = vdwg.mxu0
  %v3160 = vadd.f32 %v3112, %v3155
  %v3161 = vxor.u32 %v3160, 2147483648
  %v3162 = vmul.f32 %v3161, 1.442695
  %v3163 = vpow.pop %v3162
  %v3164 = vadd.f32 %v3163, 1.0
  %v3165 = vrcp.pop %v3164
  %v3166 = vmul.f32 1.0, %v3165
  %v3167 = vtanh.pop %v3160
  %v3168 = vmul.f32 %v3166, %v3098
  %3170 = vrot.lane.b32.xlu0 %v3167, 32
  %v3171 = vpop.permute.xlu0 %3170
  %v3173 = vmul.f32 %v3166, %v3171
  %3175 = vrot.lane.b32.xlu0 %v3173, 32
  %v3176 = vpop.permute.xlu0 %3175
  %v3178 = vadd.f32 %v3168, %v3176
  %v3179 = vtanh.pop %v3178
  %3181 = vrot.lane.b32.xlu0 %v3179, 32
  %v3182 = vpop.permute.xlu0 %3181
  %v3184 = vmul.f32 %v3166, %v3182
  %v3185 = vld [vmem:[%s1 + $0x20] sm:$0xff]
  %3187 = vrot.lane.b32.xlu0 %v3185, 64
  %v3188 = vpop.permute.xlu0 %3187
  %v3190 = vmul.f32 %v3184, %v3188
  %v3191 = vadd.f32 %v3111, %v3190
  %v3192 = vld [vmem:[#allocation3 + $0x28] sm:$0xff]
  %v3193 = vpack.c.bf16 %v3184, %v3184
  %3195 = vrot.lane.b32.xlu0 %v3193, 64
  %v3196 = vpop.permute.xlu0 %3195
  %v3198 = vsel %vm301, %v3196, 0
  %3200 = vmatprep.subr.bf16.mxu0 0
  %3201 = vmatpush1.bf16.msra.mxu0 %v2796
  %3202 = vmatprep.subr.bf16.mxu0 0
  %3203 = vmatpush1.bf16.msra.mxu0 %v2797
  %3204 = vmatprep.subr.bf16.mxu0 0
  %3205 = vmatpush1.bf16.msra.mxu0 0
  %3206 = vmatprep.subr.bf16.mxu0 0
  %3207 = vmatpush1.bf16.msra.mxu0 0
  %3208 = vmatprep.subr.bf16.mxu0 0
  %3209 = vmatpush1.bf16.msra.mxu0 0
  %3210 = vmatprep.subr.bf16.mxu0 0
  %3211 = vmatpush1.bf16.msra.mxu0 0
  %3212 = vmatprep.subr.bf16.mxu0 0
  %3213 = vmatpush1.bf16.msra.mxu0 0
  %3214 = vmatprep.subr.bf16.mxu0 0
  %3215 = vmatpush1.bf16.msra.mxu0 0
  %3216 = vmatprep.subr.bf16.mxu0 0
  %3217 = vmatpush1.bf16.msra.mxu0 0
  %3218 = vmatprep.subr.bf16.mxu0 0
  %3219 = vmatpush1.bf16.msra.mxu0 0
  %3220 = vmatprep.subr.bf16.mxu0 0
  %3221 = vmatpush1.bf16.msra.mxu0 0
  %3222 = vmatprep.subr.bf16.mxu0 0
  %3223 = vmatpush1.bf16.msra.mxu0 0
  %3224 = vmatprep.subr.bf16.mxu0 0
  %3225 = vmatpush1.bf16.msra.mxu0 0
  %3226 = vmatprep.subr.bf16.mxu0 0
  %3227 = vmatpush1.bf16.msra.mxu0 0
  %3228 = vmatprep.subr.bf16.mxu0 0
  %3229 = vmatpush1.bf16.msra.mxu0 0
  %3230 = vmatprep.subr.bf16.mxu0 0
  %3231 = vmatpush1.bf16.msra.mxu0 0
  %3232 = vmatprep.mubr.bf16.mxu0 0
  %3233 = vmatmul.mubr.bf16.gmra.mrb[0].mxu0 %v3198
  %v3234 = vpop.f32.mrb[0].mxu0
  %v3235 = vadd.f32 0.0, %v3234
  %v3236 = vpop.f32.mrb[0].mxu0
  %v3237 = vpop.f32.mrb[0].mxu0
  %v3238 = vpop.f32.mrb[0].mxu0
  %3239 = vdwg.mxu0
  %v3240 = vadd.f32 %v3192, %v3235
  %v3241 = vxor.u32 %v3240, 2147483648
  %v3242 = vmul.f32 %v3241, 1.442695
  %v3243 = vpow.pop %v3242
  %v3244 = vadd.f32 %v3243, 1.0
  %v3245 = vrcp.pop %v3244
  %v3246 = vmul.f32 1.0, %v3245
  %v3247 = vtanh.pop %v3240
  %v3248 = vmul.f32 %v3246, %v3178
  %3250 = vrot.lane.b32.xlu0 %v3247, 32
  %v3251 = vpop.permute.xlu0 %3250
  %v3253 = vmul.f32 %v3246, %v3251
  %3255 = vrot.lane.b32.xlu0 %v3253, 32
  %v3256 = vpop.permute.xlu0 %3255
  %v3258 = vadd.f32 %v3248, %v3256
  %v3259 = vtanh.pop %v3258
  %3261 = vrot.lane.b32.xlu0 %v3259, 32
  %v3262 = vpop.permute.xlu0 %3261
  %v3264 = vmul.f32 %v3246, %v3262
  %v3265 = vld [vmem:[%s1 + $0x28] sm:$0xff]
  %3267 = vrot.lane.b32.xlu0 %v3265, 64
  %v3268 = vpop.permute.xlu0 %3267
  %v3270 = vmul.f32 %v3264, %v3268
  %v3271 = vadd.f32 %v3191, %v3270
  %v3272 = vld [vmem:[#allocation3 + $0x30] sm:$0xff]
  %v3273 = vpack.c.bf16 %v3264, %v3264
  %3275 = vrot.lane.b32.xlu0 %v3273, 64
  %v3276 = vpop.permute.xlu0 %3275
  %v3278 = vsel %vm301, %v3276, 0
  %3280 = vmatprep.subr.bf16.mxu0 0
  %3281 = vmatpush1.bf16.msra.mxu0 %v2796
  %3282 = vmatprep.subr.bf16.mxu0 0
  %3283 = vmatpush1.bf16.msra.mxu0 %v2797
  %3284 = vmatprep.subr.bf16.mxu0 0
  %3285 = vmatpush1.bf16.msra.mxu0 0
  %3286 = vmatprep.subr.bf16.mxu0 0
  %3287 = vmatpush1.bf16.msra.mxu0 0
  %3288 = vmatprep.subr.bf16.mxu0 0
  %3289 = vmatpush1.bf16.msra.mxu0 0
  %3290 = vmatprep.subr.bf16.mxu0 0
  %3291 = vmatpush1.bf16.msra.mxu0 0
  %3292 = vmatprep.subr.bf16.mxu0 0
  %3293 = vmatpush1.bf16.msra.mxu0 0
  %3294 = vmatprep.subr.bf16.mxu0 0
  %3295 = vmatpush1.bf16.msra.mxu0 0
  %3296 = vmatprep.subr.bf16.mxu0 0
  %3297 = vmatpush1.bf16.msra.mxu0 0
  %3298 = vmatprep.subr.bf16.mxu0 0
  %3299 = vmatpush1.bf16.msra.mxu0 0
  %3300 = vmatprep.subr.bf16.mxu0 0
  %3301 = vmatpush1.bf16.msra.mxu0 0
  %3302 = vmatprep.subr.bf16.mxu0 0
  %3303 = vmatpush1.bf16.msra.mxu0 0
  %3304 = vmatprep.subr.bf16.mxu0 0
  %3305 = vmatpush1.bf16.msra.mxu0 0
  %3306 = vmatprep.subr.bf16.mxu0 0
  %3307 = vmatpush1.bf16.msra.mxu0 0
  %3308 = vmatprep.subr.bf16.mxu0 0
  %3309 = vmatpush1.bf16.msra.mxu0 0
  %3310 = vmatprep.subr.bf16.mxu0 0
  %3311 = vmatpush1.bf16.msra.mxu0 0
  %3312 = vmatprep.mubr.bf16.mxu0 0
  %3313 = vmatmul.mubr.bf16.gmra.mrb[0].mxu0 %v3278
  %v3314 = vpop.f32.mrb[0].mxu0
  %v3315 = vadd.f32 0.0, %v3314
  %v3316 = vpop.f32.mrb[0].mxu0
  %v3317 = vpop.f32.mrb[0].mxu0
  %v3318 = vpop.f32.mrb[0].mxu0
  %3319 = vdwg.mxu0
  %v3320 = vadd.f32 %v3272, %v3315
  %v3321 = vxor.u32 %v3320, 2147483648
  %v3322 = vmul.f32 %v3321, 1.442695
  %v3323 = vpow.pop %v3322
  %v3324 = vadd.f32 %v3323, 1.0
  %v3325 = vrcp.pop %v3324
  %v3326 = vmul.f32 1.0, %v3325
  %v3327 = vtanh.pop %v3320
  %v3328 = vmul.f32 %v3326, %v3258
  %3330 = vrot.lane.b32.xlu0 %v3327, 32
  %v3331 = vpop.permute.xlu0 %3330
  %v3333 = vmul.f32 %v3326, %v3331
  %3335 = vrot.lane.b32.xlu0 %v3333, 32
  %v3336 = vpop.permute.xlu0 %3335
  %v3338 = vadd.f32 %v3328, %v3336
  %v3339 = vtanh.pop %v3338
  %3341 = vrot.lane.b32.xlu0 %v3339, 32
  %v3342 = vpop.permute.xlu0 %3341
  %v3344 = vmul.f32 %v3326, %v3342
  %v3345 = vld [vmem:[%s1 + $0x30] sm:$0xff]
  %3347 = vrot.lane.b32.xlu0 %v3345, 64
  %v3348 = vpop.permute.xlu0 %3347
  %v3350 = vmul.f32 %v3344, %v3348
  %v3351 = vadd.f32 %v3271, %v3350
  %v3352 = vld [vmem:[#allocation3 + $0x38] sm:$0xff]
  %v3353 = vpack.c.bf16 %v3344, %v3344
  %3355 = vrot.lane.b32.xlu0 %v3353, 64
  %v3356 = vpop.permute.xlu0 %3355
  %v3358 = vsel %vm301, %v3356, 0
  %3360 = vmatprep.subr.bf16.mxu0 0
  %3361 = vmatpush1.bf16.msra.mxu0 %v2796
  %3362 = vmatprep.subr.bf16.mxu0 0
  %3363 = vmatpush1.bf16.msra.mxu0 %v2797
  %3364 = vmatprep.subr.bf16.mxu0 0
  %3365 = vmatpush1.bf16.msra.mxu0 0
  %3366 = vmatprep.subr.bf16.mxu0 0
  %3367 = vmatpush1.bf16.msra.mxu0 0
  %3368 = vmatprep.subr.bf16.mxu0 0
  %3369 = vmatpush1.bf16.msra.mxu0 0
  %3370 = vmatprep.subr.bf16.mxu0 0
  %3371 = vmatpush1.bf16.msra.mxu0 0
  %3372 = vmatprep.subr.bf16.mxu0 0
  %3373 = vmatpush1.bf16.msra.mxu0 0
  %3374 = vmatprep.subr.bf16.mxu0 0
  %3375 = vmatpush1.bf16.msra.mxu0 0
  %3376 = vmatprep.subr.bf16.mxu0 0
  %3377 = vmatpush1.bf16.msra.mxu0 0
  %3378 = vmatprep.subr.bf16.mxu0 0
  %3379 = vmatpush1.bf16.msra.mxu0 0
  %3380 = vmatprep.subr.bf16.mxu0 0
  %3381 = vmatpush1.bf16.msra.mxu0 0
  %3382 = vmatprep.subr.bf16.mxu0 0
  %3383 = vmatpush1.bf16.msra.mxu0 0
  %3384 = vmatprep.subr.bf16.mxu0 0
  %3385 = vmatpush1.bf16.msra.mxu0 0
  %3386 = vmatprep.subr.bf16.mxu0 0
  %3387 = vmatpush1.bf16.msra.mxu0 0
  %3388 = vmatprep.subr.bf16.mxu0 0
  %3389 = vmatpush1.bf16.msra.mxu0 0
  %3390 = vmatprep.subr.bf16.mxu0 0
  %3391 = vmatpush1.bf16.msra.mxu0 0
  %3392 = vmatprep.mubr.bf16.mxu0 0
  %3393 = vmatmul.mubr.bf16.gmra.mrb[0].mxu0 %v3358
  %v3394 = vpop.f32.mrb[0].mxu0
  %v3395 = vadd.f32 0.0, %v3394
  %v3396 = vpop.f32.mrb[0].mxu0
  %v3397 = vpop.f32.mrb[0].mxu0
  %v3398 = vpop.f32.mrb[0].mxu0
  %3399 = vdwg.mxu0
  %v3400 = vadd.f32 %v3352, %v3395
  %v3401 = vxor.u32 %v3400, 2147483648
  %v3402 = vmul.f32 %v3401, 1.442695
  %v3403 = vpow.pop %v3402
  %v3404 = vadd.f32 %v3403, 1.0
  %v3405 = vrcp.pop %v3404
  %v3406 = vmul.f32 1.0, %v3405
  %v3407 = vtanh.pop %v3400
  %v3408 = vmul.f32 %v3406, %v3338
  %3410 = vrot.lane.b32.xlu0 %v3407, 32
  %v3411 = vpop.permute.xlu0 %3410
  %v3413 = vmul.f32 %v3406, %v3411
  %3415 = vrot.lane.b32.xlu0 %v3413, 32
  %v3416 = vpop.permute.xlu0 %3415
  %v3418 = vadd.f32 %v3408, %v3416
  %v3419 = vtanh.pop %v3418
  %3421 = vrot.lane.b32.xlu0 %v3419, 32
  %v3422 = vpop.permute.xlu0 %3421
  %v3424 = vmul.f32 %v3406, %v3422
  %v3425 = vld [vmem:[%s1 + $0x38] sm:$0xff]
  %3427 = vrot.lane.b32.xlu0 %v3425, 64
  %v3428 = vpop.permute.xlu0 %3427
  %v3430 = vmul.f32 %v3424, %v3428
  %v3431 = vadd.f32 %v3351, %v3430
  %v3432 = vld [vmem:[#allocation3 + $0x40] sm:$0xff]
  %v3433 = vpack.c.bf16 %v3424, %v3424
  %3435 = vrot.lane.b32.xlu0 %v3433, 64
  %v3436 = vpop.permute.xlu0 %3435
  %v3438 = vsel %vm301, %v3436, 0
  %3440 = vmatprep.subr.bf16.mxu0 0
  %3441 = vmatpush1.bf16.msra.mxu0 %v2796
  %3442 = vmatprep.subr.bf16.mxu0 0
  %3443 = vmatpush1.bf16.msra.mxu0 %v2797
  %3444 = vmatprep.subr.bf16.mxu0 0
  %3445 = vmatpush1.bf16.msra.mxu0 0
  %3446 = vmatprep.subr.bf16.mxu0 0
  %3447 = vmatpush1.bf16.msra.mxu0 0
  %3448 = vmatprep.subr.bf16.mxu0 0
  %3449 = vmatpush1.bf16.msra.mxu0 0
  %3450 = vmatprep.subr.bf16.mxu0 0
  %3451 = vmatpush1.bf16.msra.mxu0 0
  %3452 = vmatprep.subr.bf16.mxu0 0
  %3453 = vmatpush1.bf16.msra.mxu0 0
  %3454 = vmatprep.subr.bf16.mxu0 0
  %3455 = vmatpush1.bf16.msra.mxu0 0
  %3456 = vmatprep.subr.bf16.mxu0 0
  %3457 = vmatpush1.bf16.msra.mxu0 0
  %3458 = vmatprep.subr.bf16.mxu0 0
  %3459 = vmatpush1.bf16.msra.mxu0 0
  %3460 = vmatprep.subr.bf16.mxu0 0
  %3461 = vmatpush1.bf16.msra.mxu0 0
  %3462 = vmatprep.subr.bf16.mxu0 0
  %3463 = vmatpush1.bf16.msra.mxu0 0
  %3464 = vmatprep.subr.bf16.mxu0 0
  %3465 = vmatpush1.bf16.msra.mxu0 0
  %3466 = vmatprep.subr.bf16.mxu0 0
  %3467 = vmatpush1.bf16.msra.mxu0 0
  %3468 = vmatprep.subr.bf16.mxu0 0
  %3469 = vmatpush1.bf16.msra.mxu0 0
  %3470 = vmatprep.subr.bf16.mxu0 0
  %3471 = vmatpush1.bf16.msra.mxu0 0
  %3472 = vmatprep.mubr.bf16.mxu0 0
  %3473 = vmatmul.mubr.bf16.gmra.mrb[0].mxu0 %v3438
  %v3474 = vpop.f32.mrb[0].mxu0
  %v3475 = vadd.f32 0.0, %v3474
  %v3476 = vpop.f32.mrb[0].mxu0
  %v3477 = vpop.f32.mrb[0].mxu0
  %v3478 = vpop.f32.mrb[0].mxu0
  %3479 = vdwg.mxu0
  %v3480 = vadd.f32 %v3432, %v3475
  %v3481 = vxor.u32 %v3480, 2147483648
  %v3482 = vmul.f32 %v3481, 1.442695
  %v3483 = vpow.pop %v3482
  %v3484 = vadd.f32 %v3483, 1.0
  %v3485 = vrcp.pop %v3484
  %v3486 = vmul.f32 1.0, %v3485
  %v3487 = vtanh.pop %v3480
  %v3488 = vmul.f32 %v3486, %v3418
  %3490 = vrot.lane.b32.xlu0 %v3487, 32
  %v3491 = vpop.permute.xlu0 %3490
  %v3493 = vmul.f32 %v3486, %v3491
  %3495 = vrot.lane.b32.xlu0 %v3493, 32
  %v3496 = vpop.permute.xlu0 %3495
  %v3498 = vadd.f32 %v3488, %v3496
  %v3499 = vtanh.pop %v3498
  %3501 = vrot.lane.b32.xlu0 %v3499, 32
  %v3502 = vpop.permute.xlu0 %3501
  %v3504 = vmul.f32 %v3486, %v3502
  %v3505 = vld [vmem:[%s1 + $0x40] sm:$0xff]
  %3507 = vrot.lane.b32.xlu0 %v3505, 64
  %v3508 = vpop.permute.xlu0 %3507
  %v3510 = vmul.f32 %v3504, %v3508
  %v3511 = vadd.f32 %v3431, %v3510
  %v3512 = vld [vmem:[#allocation3 + $0x48] sm:$0xff]
  %v3513 = vpack.c.bf16 %v3504, %v3504
  %3515 = vrot.lane.b32.xlu0 %v3513, 64
  %v3516 = vpop.permute.xlu0 %3515
  %v3518 = vsel %vm301, %v3516, 0
  %3520 = vmatprep.subr.bf16.mxu0 0
  %3521 = vmatpush1.bf16.msra.mxu0 %v2796
  %3522 = vmatprep.subr.bf16.mxu0 0
  %3523 = vmatpush1.bf16.msra.mxu0 %v2797
  %3524 = vmatprep.subr.bf16.mxu0 0
  %3525 = vmatpush1.bf16.msra.mxu0 0
  %3526 = vmatprep.subr.bf16.mxu0 0
  %3527 = vmatpush1.bf16.msra.mxu0 0
  %3528 = vmatprep.subr.bf16.mxu0 0
  %3529 = vmatpush1.bf16.msra.mxu0 0
  %3530 = vmatprep.subr.bf16.mxu0 0
  %3531 = vmatpush1.bf16.msra.mxu0 0
  %3532 = vmatprep.subr.bf16.mxu0 0
  %3533 = vmatpush1.bf16.msra.mxu0 0
  %3534 = vmatprep.subr.bf16.mxu0 0
  %3535 = vmatpush1.bf16.msra.mxu0 0
  %3536 = vmatprep.subr.bf16.mxu0 0
  %3537 = vmatpush1.bf16.msra.mxu0 0
  %3538 = vmatprep.subr.bf16.mxu0 0
  %3539 = vmatpush1.bf16.msra.mxu0 0
  %3540 = vmatprep.subr.bf16.mxu0 0
  %3541 = vmatpush1.bf16.msra.mxu0 0
  %3542 = vmatprep.subr.bf16.mxu0 0
  %3543 = vmatpush1.bf16.msra.mxu0 0
  %3544 = vmatprep.subr.bf16.mxu0 0
  %3545 = vmatpush1.bf16.msra.mxu0 0
  %3546 = vmatprep.subr.bf16.mxu0 0
  %3547 = vmatpush1.bf16.msra.mxu0 0
  %3548 = vmatprep.subr.bf16.mxu0 0
  %3549 = vmatpush1.bf16.msra.mxu0 0
  %3550 = vmatprep.subr.bf16.mxu0 0
  %3551 = vmatpush1.bf16.msra.mxu0 0
  %3552 = vmatprep.mubr.bf16.mxu0 0
  %3553 = vmatmul.mubr.bf16.gmra.mrb[0].mxu0 %v3518
  %v3554 = vpop.f32.mrb[0].mxu0
  %v3555 = vadd.f32 0.0, %v3554
  %v3556 = vpop.f32.mrb[0].mxu0
  %v3557 = vpop.f32.mrb[0].mxu0
  %v3558 = vpop.f32.mrb[0].mxu0
  %3559 = vdwg.mxu0
  %v3560 = vadd.f32 %v3512, %v3555
  %v3561 = vxor.u32 %v3560, 2147483648
  %v3562 = vmul.f32 %v3561, 1.442695
  %v3563 = vpow.pop %v3562
  %v3564 = vadd.f32 %v3563, 1.0
  %v3565 = vrcp.pop %v3564
  %v3566 = vmul.f32 1.0, %v3565
  %v3567 = vtanh.pop %v3560
  %v3568 = vmul.f32 %v3566, %v3498
  %3570 = vrot.lane.b32.xlu0 %v3567, 32
  %v3571 = vpop.permute.xlu0 %3570
  %v3573 = vmul.f32 %v3566, %v3571
  %3575 = vrot.lane.b32.xlu0 %v3573, 32
  %v3576 = vpop.permute.xlu0 %3575
  %v3578 = vadd.f32 %v3568, %v3576
  %v3579 = vtanh.pop %v3578
  %3581 = vrot.lane.b32.xlu0 %v3579, 32
  %v3582 = vpop.permute.xlu0 %3581
  %v3584 = vmul.f32 %v3566, %v3582
  %v3585 = vld [vmem:[%s1 + $0x48] sm:$0xff]
  %3587 = vrot.lane.b32.xlu0 %v3585, 64
  %v3588 = vpop.permute.xlu0 %3587
  %v3590 = vmul.f32 %v3584, %v3588
  %v3591 = vadd.f32 %v3511, %v3590
  %v3592 = vld [vmem:[#allocation3 + $0x50] sm:$0xff]
  %v3593 = vpack.c.bf16 %v3584, %v3584
  %3595 = vrot.lane.b32.xlu0 %v3593, 64
  %v3596 = vpop.permute.xlu0 %3595
  %v3598 = vsel %vm301, %v3596, 0
  %3600 = vmatprep.subr.bf16.mxu0 0
  %3601 = vmatpush1.bf16.msra.mxu0 %v2796
  %3602 = vmatprep.subr.bf16.mxu0 0
  %3603 = vmatpush1.bf16.msra.mxu0 %v2797
  %3604 = vmatprep.subr.bf16.mxu0 0
  %3605 = vmatpush1.bf16.msra.mxu0 0
  %3606 = vmatprep.subr.bf16.mxu0 0
  %3607 = vmatpush1.bf16.msra.mxu0 0
  %3608 = vmatprep.subr.bf16.mxu0 0
  %3609 = vmatpush1.bf16.msra.mxu0 0
  %3610 = vmatprep.subr.bf16.mxu0 0
  %3611 = vmatpush1.bf16.msra.mxu0 0
  %3612 = vmatprep.subr.bf16.mxu0 0
  %3613 = vmatpush1.bf16.msra.mxu0 0
  %3614 = vmatprep.subr.bf16.mxu0 0
  %3615 = vmatpush1.bf16.msra.mxu0 0
  %3616 = vmatprep.subr.bf16.mxu0 0
  %3617 = vmatpush1.bf16.msra.mxu0 0
  %3618 = vmatprep.subr.bf16.mxu0 0
  %3619 = vmatpush1.bf16.msra.mxu0 0
  %3620 = vmatprep.subr.bf16.mxu0 0
  %3621 = vmatpush1.bf16.msra.mxu0 0
  %3622 = vmatprep.subr.bf16.mxu0 0
  %3623 = vmatpush1.bf16.msra.mxu0 0
  %3624 = vmatprep.subr.bf16.mxu0 0
  %3625 = vmatpush1.bf16.msra.mxu0 0
  %3626 = vmatprep.subr.bf16.mxu0 0
  %3627 = vmatpush1.bf16.msra.mxu0 0
  %3628 = vmatprep.subr.bf16.mxu0 0
  %3629 = vmatpush1.bf16.msra.mxu0 0
  %3630 = vmatprep.subr.bf16.mxu0 0
  %3631 = vmatpush1.bf16.msra.mxu0 0
  %3632 = vmatprep.mubr.bf16.mxu0 0
  %3633 = vmatmul.mubr.bf16.gmra.mrb[0].mxu0 %v3598
  %v3634 = vpop.f32.mrb[0].mxu0
  %v3635 = vadd.f32 0.0, %v3634
  %v3636 = vpop.f32.mrb[0].mxu0
  %v3637 = vpop.f32.mrb[0].mxu0
  %v3638 = vpop.f32.mrb[0].mxu0
  %3639 = vdwg.mxu0
  %v3640 = vadd.f32 %v3592, %v3635
  %v3641 = vxor.u32 %v3640, 2147483648
  %v3642 = vmul.f32 %v3641, 1.442695
  %v3643 = vpow.pop %v3642
  %v3644 = vadd.f32 %v3643, 1.0
  %v3645 = vrcp.pop %v3644
  %v3646 = vmul.f32 1.0, %v3645
  %v3647 = vtanh.pop %v3640
  %v3648 = vmul.f32 %v3646, %v3578
  %3650 = vrot.lane.b32.xlu0 %v3647, 32
  %v3651 = vpop.permute.xlu0 %3650
  %v3653 = vmul.f32 %v3646, %v3651
  %3655 = vrot.lane.b32.xlu0 %v3653, 32
  %v3656 = vpop.permute.xlu0 %3655
  %v3658 = vadd.f32 %v3648, %v3656
  %v3659 = vtanh.pop %v3658
  %3661 = vrot.lane.b32.xlu0 %v3659, 32
  %v3662 = vpop.permute.xlu0 %3661
  %v3664 = vmul.f32 %v3646, %v3662
  %v3665 = vld [vmem:[%s1 + $0x50] sm:$0xff]
  %3667 = vrot.lane.b32.xlu0 %v3665, 64
  %v3668 = vpop.permute.xlu0 %3667
  %v3670 = vmul.f32 %v3664, %v3668
  %v3671 = vadd.f32 %v3591, %v3670
  %v3672 = vld [vmem:[#allocation3 + $0x58] sm:$0xff]
  %v3673 = vpack.c.bf16 %v3664, %v3664
  %3675 = vrot.lane.b32.xlu0 %v3673, 64
  %v3676 = vpop.permute.xlu0 %3675
  %v3678 = vsel %vm301, %v3676, 0
  %3680 = vmatprep.subr.bf16.mxu0 0
  %3681 = vmatpush1.bf16.msra.mxu0 %v2796
  %3682 = vmatprep.subr.bf16.mxu0 0
  %3683 = vmatpush1.bf16.msra.mxu0 %v2797
  %3684 = vmatprep.subr.bf16.mxu0 0
  %3685 = vmatpush1.bf16.msra.mxu0 0
  %3686 = vmatprep.subr.bf16.mxu0 0
  %3687 = vmatpush1.bf16.msra.mxu0 0
  %3688 = vmatprep.subr.bf16.mxu0 0
  %3689 = vmatpush1.bf16.msra.mxu0 0
  %3690 = vmatprep.subr.bf16.mxu0 0
  %3691 = vmatpush1.bf16.msra.mxu0 0
  %3692 = vmatprep.subr.bf16.mxu0 0
  %3693 = vmatpush1.bf16.msra.mxu0 0
  %3694 = vmatprep.subr.bf16.mxu0 0
  %3695 = vmatpush1.bf16.msra.mxu0 0
  %3696 = vmatprep.subr.bf16.mxu0 0
  %3697 = vmatpush1.bf16.msra.mxu0 0
  %3698 = vmatprep.subr.bf16.mxu0 0
  %3699 = vmatpush1.bf16.msra.mxu0 0
  %3700 = vmatprep.subr.bf16.mxu0 0
  %3701 = vmatpush1.bf16.msra.mxu0 0
  %3702 = vmatprep.subr.bf16.mxu0 0
  %3703 = vmatpush1.bf16.msra.mxu0 0
  %3704 = vmatprep.subr.bf16.mxu0 0
  %3705 = vmatpush1.bf16.msra.mxu0 0
  %3706 = vmatprep.subr.bf16.mxu0 0
  %3707 = vmatpush1.bf16.msra.mxu0 0
  %3708 = vmatprep.subr.bf16.mxu0 0
  %3709 = vmatpush1.bf16.msra.mxu0 0
  %3710 = vmatprep.subr.bf16.mxu0 0
  %3711 = vmatpush1.bf16.msra.mxu0 0
  %3712 = vmatprep.mubr.bf16.mxu0 0
  %3713 = vmatmul.mubr.bf16.gmra.mrb[0].mxu0 %v3678
  %v3714 = vpop.f32.mrb[0].mxu0
  %v3715 = vadd.f32 0.0, %v3714
  %v3716 = vpop.f32.mrb[0].mxu0
  %v3717 = vpop.f32.mrb[0].mxu0
  %v3718 = vpop.f32.mrb[0].mxu0
  %3719 = vdwg.mxu0
  %v3720 = vadd.f32 %v3672, %v3715
  %v3721 = vxor.u32 %v3720, 2147483648
  %v3722 = vmul.f32 %v3721, 1.442695
  %v3723 = vpow.pop %v3722
  %v3724 = vadd.f32 %v3723, 1.0
  %v3725 = vrcp.pop %v3724
  %v3726 = vmul.f32 1.0, %v3725
  %v3727 = vtanh.pop %v3720
  %v3728 = vmul.f32 %v3726, %v3658
  %3730 = vrot.lane.b32.xlu0 %v3727, 32
  %v3731 = vpop.permute.xlu0 %3730
  %v3733 = vmul.f32 %v3726, %v3731
  %3735 = vrot.lane.b32.xlu0 %v3733, 32
  %v3736 = vpop.permute.xlu0 %3735
  %v3738 = vadd.f32 %v3728, %v3736
  %v3739 = vtanh.pop %v3738
  %3741 = vrot.lane.b32.xlu0 %v3739, 32
  %v3742 = vpop.permute.xlu0 %3741
  %v3744 = vmul.f32 %v3726, %v3742
  %v3745 = vld [vmem:[%s1 + $0x58] sm:$0xff]
  %3747 = vrot.lane.b32.xlu0 %v3745, 64
  %v3748 = vpop.permute.xlu0 %3747
  %v3750 = vmul.f32 %v3744, %v3748
  %v3751 = vadd.f32 %v3671, %v3750
  %v3752 = vld [vmem:[#allocation3 + $0x60] sm:$0xff]
  %v3753 = vpack.c.bf16 %v3744, %v3744
  %3755 = vrot.lane.b32.xlu0 %v3753, 64
  %v3756 = vpop.permute.xlu0 %3755
  %v3758 = vsel %vm301, %v3756, 0
  %3760 = vmatprep.subr.bf16.mxu0 0
  %3761 = vmatpush1.bf16.msra.mxu0 %v2796
  %3762 = vmatprep.subr.bf16.mxu0 0
  %3763 = vmatpush1.bf16.msra.mxu0 %v2797
  %3764 = vmatprep.subr.bf16.mxu0 0
  %3765 = vmatpush1.bf16.msra.mxu0 0
  %3766 = vmatprep.subr.bf16.mxu0 0
  %3767 = vmatpush1.bf16.msra.mxu0 0
  %3768 = vmatprep.subr.bf16.mxu0 0
  %3769 = vmatpush1.bf16.msra.mxu0 0
  %3770 = vmatprep.subr.bf16.mxu0 0
  %3771 = vmatpush1.bf16.msra.mxu0 0
  %3772 = vmatprep.subr.bf16.mxu0 0
  %3773 = vmatpush1.bf16.msra.mxu0 0
  %3774 = vmatprep.subr.bf16.mxu0 0
  %3775 = vmatpush1.bf16.msra.mxu0 0
  %3776 = vmatprep.subr.bf16.mxu0 0
  %3777 = vmatpush1.bf16.msra.mxu0 0
  %3778 = vmatprep.subr.bf16.mxu0 0
  %3779 = vmatpush1.bf16.msra.mxu0 0
  %3780 = vmatprep.subr.bf16.mxu0 0
  %3781 = vmatpush1.bf16.msra.mxu0 0
  %3782 = vmatprep.subr.bf16.mxu0 0
  %3783 = vmatpush1.bf16.msra.mxu0 0
  %3784 = vmatprep.subr.bf16.mxu0 0
  %3785 = vmatpush1.bf16.msra.mxu0 0
  %3786 = vmatprep.subr.bf16.mxu0 0
  %3787 = vmatpush1.bf16.msra.mxu0 0
  %3788 = vmatprep.subr.bf16.mxu0 0
  %3789 = vmatpush1.bf16.msra.mxu0 0
  %3790 = vmatprep.subr.bf16.mxu0 0
  %3791 = vmatpush1.bf16.msra.mxu0 0
  %3792 = vmatprep.mubr.bf16.mxu0 0
  %3793 = vmatmul.mubr.bf16.gmra.mrb[0].mxu0 %v3758
  %v3794 = vpop.f32.mrb[0].mxu0
  %v3795 = vadd.f32 0.0, %v3794
  %v3796 = vpop.f32.mrb[0].mxu0
  %v3797 = vpop.f32.mrb[0].mxu0
  %v3798 = vpop.f32.mrb[0].mxu0
  %3799 = vdwg.mxu0
  %v3800 = vadd.f32 %v3752, %v3795
  %v3801 = vxor.u32 %v3800, 2147483648
  %v3802 = vmul.f32 %v3801, 1.442695
  %v3803 = vpow.pop %v3802
  %v3804 = vadd.f32 %v3803, 1.0
  %v3805 = vrcp.pop %v3804
  %v3806 = vmul.f32 1.0, %v3805
  %v3807 = vtanh.pop %v3800
  %v3808 = vmul.f32 %v3806, %v3738
  %3810 = vrot.lane.b32.xlu0 %v3807, 32
  %v3811 = vpop.permute.xlu0 %3810
  %v3813 = vmul.f32 %v3806, %v3811
  %3815 = vrot.lane.b32.xlu0 %v3813, 32
  %v3816 = vpop.permute.xlu0 %3815
  %v3818 = vadd.f32 %v3808, %v3816
  %v3819 = vtanh.pop %v3818
  %3821 = vrot.lane.b32.xlu0 %v3819, 32
  %v3822 = vpop.permute.xlu0 %3821
  %v3824 = vmul.f32 %v3806, %v3822
  %v3825 = vld [vmem:[%s1 + $0x60] sm:$0xff]
  %3827 = vrot.lane.b32.xlu0 %v3825, 64
  %v3828 = vpop.permute.xlu0 %3827
  %v3830 = vmul.f32 %v3824, %v3828
  %v3831 = vadd.f32 %v3751, %v3830
  %v3832 = vld [vmem:[#allocation3 + $0x68] sm:$0xff]
  %v3833 = vpack.c.bf16 %v3824, %v3824
  %3835 = vrot.lane.b32.xlu0 %v3833, 64
  %v3836 = vpop.permute.xlu0 %3835
  %v3838 = vsel %vm301, %v3836, 0
  %3840 = vmatprep.subr.bf16.mxu0 0
  %3841 = vmatpush1.bf16.msra.mxu0 %v2796
  %3842 = vmatprep.subr.bf16.mxu0 0
  %3843 = vmatpush1.bf16.msra.mxu0 %v2797
  %3844 = vmatprep.subr.bf16.mxu0 0
  %3845 = vmatpush1.bf16.msra.mxu0 0
  %3846 = vmatprep.subr.bf16.mxu0 0
  %3847 = vmatpush1.bf16.msra.mxu0 0
  %3848 = vmatprep.subr.bf16.mxu0 0
  %3849 = vmatpush1.bf16.msra.mxu0 0
  %3850 = vmatprep.subr.bf16.mxu0 0
  %3851 = vmatpush1.bf16.msra.mxu0 0
  %3852 = vmatprep.subr.bf16.mxu0 0
  %3853 = vmatpush1.bf16.msra.mxu0 0
  %3854 = vmatprep.subr.bf16.mxu0 0
  %3855 = vmatpush1.bf16.msra.mxu0 0
  %3856 = vmatprep.subr.bf16.mxu0 0
  %3857 = vmatpush1.bf16.msra.mxu0 0
  %3858 = vmatprep.subr.bf16.mxu0 0
  %3859 = vmatpush1.bf16.msra.mxu0 0
  %3860 = vmatprep.subr.bf16.mxu0 0
  %3861 = vmatpush1.bf16.msra.mxu0 0
  %3862 = vmatprep.subr.bf16.mxu0 0
  %3863 = vmatpush1.bf16.msra.mxu0 0
  %3864 = vmatprep.subr.bf16.mxu0 0
  %3865 = vmatpush1.bf16.msra.mxu0 0
  %3866 = vmatprep.subr.bf16.mxu0 0
  %3867 = vmatpush1.bf16.msra.mxu0 0
  %3868 = vmatprep.subr.bf16.mxu0 0
  %3869 = vmatpush1.bf16.msra.mxu0 0
  %3870 = vmatprep.subr.bf16.mxu0 0
  %3871 = vmatpush1.bf16.msra.mxu0 0
  %3872 = vmatprep.mubr.bf16.mxu0 0
  %3873 = vmatmul.mubr.bf16.gmra.mrb[0].mxu0 %v3838
  %v3874 = vpop.f32.mrb[0].mxu0
  %v3875 = vadd.f32 0.0, %v3874
  %v3876 = vpop.f32.mrb[0].mxu0
  %v3877 = vpop.f32.mrb[0].mxu0
  %v3878 = vpop.f32.mrb[0].mxu0
  %3879 = vdwg.mxu0
  %v3880 = vadd.f32 %v3832, %v3875
  %v3881 = vxor.u32 %v3880, 2147483648
  %v3882 = vmul.f32 %v3881, 1.442695
  %v3883 = vpow.pop %v3882
  %v3884 = vadd.f32 %v3883, 1.0
  %v3885 = vrcp.pop %v3884
  %v3886 = vmul.f32 1.0, %v3885
  %v3887 = vtanh.pop %v3880
  %v3888 = vmul.f32 %v3886, %v3818
  %3890 = vrot.lane.b32.xlu0 %v3887, 32
  %v3891 = vpop.permute.xlu0 %3890
  %v3893 = vmul.f32 %v3886, %v3891
  %3895 = vrot.lane.b32.xlu0 %v3893, 32
  %v3896 = vpop.permute.xlu0 %3895
  %v3898 = vadd.f32 %v3888, %v3896
  %v3899 = vtanh.pop %v3898
  %3901 = vrot.lane.b32.xlu0 %v3899, 32
  %v3902 = vpop.permute.xlu0 %3901
  %v3904 = vmul.f32 %v3886, %v3902
  %v3905 = vld [vmem:[%s1 + $0x68] sm:$0xff]
  %3907 = vrot.lane.b32.xlu0 %v3905, 64
  %v3908 = vpop.permute.xlu0 %3907
  %v3910 = vmul.f32 %v3904, %v3908
  %v3911 = vadd.f32 %v3831, %v3910
  %v3912 = vld [vmem:[#allocation3 + $0x70] sm:$0xff]
  %v3913 = vpack.c.bf16 %v3904, %v3904
  %3915 = vrot.lane.b32.xlu0 %v3913, 64
  %v3916 = vpop.permute.xlu0 %3915
  %v3918 = vsel %vm301, %v3916, 0
  %3920 = vmatprep.subr.bf16.mxu0 0
  %3921 = vmatpush1.bf16.msra.mxu0 %v2796
  %3922 = vmatprep.subr.bf16.mxu0 0
  %3923 = vmatpush1.bf16.msra.mxu0 %v2797
  %3924 = vmatprep.subr.bf16.mxu0 0
  %3925 = vmatpush1.bf16.msra.mxu0 0
  %3926 = vmatprep.subr.bf16.mxu0 0
  %3927 = vmatpush1.bf16.msra.mxu0 0
  %3928 = vmatprep.subr.bf16.mxu0 0
  %3929 = vmatpush1.bf16.msra.mxu0 0
  %3930 = vmatprep.subr.bf16.mxu0 0
  %3931 = vmatpush1.bf16.msra.mxu0 0
  %3932 = vmatprep.subr.bf16.mxu0 0
  %3933 = vmatpush1.bf16.msra.mxu0 0
  %3934 = vmatprep.subr.bf16.mxu0 0
  %3935 = vmatpush1.bf16.msra.mxu0 0
  %3936 = vmatprep.subr.bf16.mxu0 0
  %3937 = vmatpush1.bf16.msra.mxu0 0
  %3938 = vmatprep.subr.bf16.mxu0 0
  %3939 = vmatpush1.bf16.msra.mxu0 0
  %3940 = vmatprep.subr.bf16.mxu0 0
  %3941 = vmatpush1.bf16.msra.mxu0 0
  %3942 = vmatprep.subr.bf16.mxu0 0
  %3943 = vmatpush1.bf16.msra.mxu0 0
  %3944 = vmatprep.subr.bf16.mxu0 0
  %3945 = vmatpush1.bf16.msra.mxu0 0
  %3946 = vmatprep.subr.bf16.mxu0 0
  %3947 = vmatpush1.bf16.msra.mxu0 0
  %3948 = vmatprep.subr.bf16.mxu0 0
  %3949 = vmatpush1.bf16.msra.mxu0 0
  %3950 = vmatprep.subr.bf16.mxu0 0
  %3951 = vmatpush1.bf16.msra.mxu0 0
  %3952 = vmatprep.mubr.bf16.mxu0 0
  %3953 = vmatmul.mubr.bf16.gmra.mrb[0].mxu0 %v3918
  %v3954 = vpop.f32.mrb[0].mxu0
  %v3955 = vadd.f32 0.0, %v3954
  %v3956 = vpop.f32.mrb[0].mxu0
  %v3957 = vpop.f32.mrb[0].mxu0
  %v3958 = vpop.f32.mrb[0].mxu0
  %3959 = vdwg.mxu0
  %v3960 = vadd.f32 %v3912, %v3955
  %v3961 = vxor.u32 %v3960, 2147483648
  %v3962 = vmul.f32 %v3961, 1.442695
  %v3963 = vpow.pop %v3962
  %v3964 = vadd.f32 %v3963, 1.0
  %v3965 = vrcp.pop %v3964
  %v3966 = vmul.f32 1.0, %v3965
  %v3967 = vtanh.pop %v3960
  %v3968 = vmul.f32 %v3966, %v3898
  %3970 = vrot.lane.b32.xlu0 %v3967, 32
  %v3971 = vpop.permute.xlu0 %3970
  %v3973 = vmul.f32 %v3966, %v3971
  %3975 = vrot.lane.b32.xlu0 %v3973, 32
  %v3976 = vpop.permute.xlu0 %3975
  %v3978 = vadd.f32 %v3968, %v3976
  %v3979 = vtanh.pop %v3978
  %3981 = vrot.lane.b32.xlu0 %v3979, 32
  %v3982 = vpop.permute.xlu0 %3981
  %v3984 = vmul.f32 %v3966, %v3982
  %v3985 = vld [vmem:[%s1 + $0x70] sm:$0xff]
  %3987 = vrot.lane.b32.xlu0 %v3985, 64
  %v3988 = vpop.permute.xlu0 %3987
  %v3990 = vmul.f32 %v3984, %v3988
  %v3991 = vadd.f32 %v3911, %v3990
  %v3992 = vld [vmem:[#allocation3 + $0x78] sm:$0xff]
  %v3993 = vpack.c.bf16 %v3984, %v3984
  %3995 = vrot.lane.b32.xlu0 %v3993, 64
  %v3996 = vpop.permute.xlu0 %3995
  %v3998 = vsel %vm301, %v3996, 0
  %4000 = vmatprep.subr.bf16.mxu0 0
  %4001 = vmatpush1.bf16.msra.mxu0 %v2796
  %4002 = vmatprep.subr.bf16.mxu0 0
  %4003 = vmatpush1.bf16.msra.mxu0 %v2797
  %4004 = vmatprep.subr.bf16.mxu0 0
  %4005 = vmatpush1.bf16.msra.mxu0 0
  %4006 = vmatprep.subr.bf16.mxu0 0
  %4007 = vmatpush1.bf16.msra.mxu0 0
  %4008 = vmatprep.subr.bf16.mxu0 0
  %4009 = vmatpush1.bf16.msra.mxu0 0
  %4010 = vmatprep.subr.bf16.mxu0 0
  %4011 = vmatpush1.bf16.msra.mxu0 0
  %4012 = vmatprep.subr.bf16.mxu0 0
  %4013 = vmatpush1.bf16.msra.mxu0 0
  %4014 = vmatprep.subr.bf16.mxu0 0
  %4015 = vmatpush1.bf16.msra.mxu0 0
  %4016 = vmatprep.subr.bf16.mxu0 0
  %4017 = vmatpush1.bf16.msra.mxu0 0
  %4018 = vmatprep.subr.bf16.mxu0 0
  %4019 = vmatpush1.bf16.msra.mxu0 0
  %4020 = vmatprep.subr.bf16.mxu0 0
  %4021 = vmatpush1.bf16.msra.mxu0 0
  %4022 = vmatprep.subr.bf16.mxu0 0
  %4023 = vmatpush1.bf16.msra.mxu0 0
  %4024 = vmatprep.subr.bf16.mxu0 0
  %4025 = vmatpush1.bf16.msra.mxu0 0
  %4026 = vmatprep.subr.bf16.mxu0 0
  %4027 = vmatpush1.bf16.msra.mxu0 0
  %4028 = vmatprep.subr.bf16.mxu0 0
  %4029 = vmatpush1.bf16.msra.mxu0 0
  %4030 = vmatprep.subr.bf16.mxu0 0
  %4031 = vmatpush1.bf16.msra.mxu0 0
  %4032 = vmatprep.mubr.bf16.mxu0 0
  %4033 = vmatmul.mubr.bf16.gmra.mrb[0].mxu0 %v3998
  %v4034 = vpop.f32.mrb[0].mxu0
  %v4035 = vadd.f32 0.0, %v4034
  %v4036 = vpop.f32.mrb[0].mxu0
  %v4037 = vpop.f32.mrb[0].mxu0
  %v4038 = vpop.f32.mrb[0].mxu0
  %4039 = vdwg.mxu0
  %v4040 = vadd.f32 %v3992, %v4035
  %v4041 = vxor.u32 %v4040, 2147483648
  %v4042 = vmul.f32 %v4041, 1.442695
  %v4043 = vpow.pop %v4042
  %v4044 = vadd.f32 %v4043, 1.0
  %v4045 = vrcp.pop %v4044
  %v4046 = vmul.f32 1.0, %v4045
  %v4047 = vtanh.pop %v4040
  %v4048 = vmul.f32 %v4046, %v3978
  %4050 = vrot.lane.b32.xlu0 %v4047, 32
  %v4051 = vpop.permute.xlu0 %4050
  %v4053 = vmul.f32 %v4046, %v4051
  %4055 = vrot.lane.b32.xlu0 %v4053, 32
  %v4056 = vpop.permute.xlu0 %4055
  %v4058 = vadd.f32 %v4048, %v4056
  %v4059 = vtanh.pop %v4058
  %4061 = vrot.lane.b32.xlu0 %v4059, 32
  %v4062 = vpop.permute.xlu0 %4061
  %v4064 = vmul.f32 %v4046, %v4062
  %v4065 = vld [vmem:[%s1 + $0x78] sm:$0xff]
  %4067 = vrot.lane.b32.xlu0 %v4065, 64
  %v4068 = vpop.permute.xlu0 %4067
  %v4070 = vmul.f32 %v4064, %v4068
  %v4071 = vadd.f32 %v3991, %v4070
  %s4072 = sld [smem:[#allocation4]]
  %v4073 = vstv %s4072
  %v4074 = vmul.f32 %v4071, %v4073
  %v4075 = vld [vmem:[%s9] sm:$0xff]
  %v4076 = vld [vmem:[%s9 + $0x8] sm:$0xff]
  %v4077 = vld [vmem:[%s9 + $0x10] sm:$0xff]
  %v4078 = vld [vmem:[%s9 + $0x18] sm:$0xff]
  %v4079 = vld [vmem:[%s10] sm:$0x1]
  %v4081 = vlaneseq
  %v4082 = vshrl.u32 %v4081, 7
  %v4083 = vsub.s32 0, %v4082
  %v4084 = vrot.slane %v4079, %v4083
  %4087 = vrot.lane.b32.xlu0 %v4074, 64
  %v4088 = vpop.permute.xlu0 %4087
  %v4089 = vsel %vm301, %v4088, 0
  %4091 = vmatprep.subr.mxu0 0.0
  %4092 = vmatpush1.msra.mxu0 %v4075
  %4093 = vmatprep.subr.mxu0 0.0
  %4094 = vmatpush1.msra.mxu0 %v4076
  %4095 = vmatprep.subr.mxu0 0.0
  %4096 = vmatpush1.msra.mxu0 %v4077
  %4097 = vmatprep.subr.mxu0 0.0
  %4098 = vmatpush1.msra.mxu0 %v4078
  %4099 = vmatprep.subr.mxu0 0.0
  %4100 = vmatpush1.msra.mxu0 0.0
  %4101 = vmatprep.subr.mxu0 0.0
  %4102 = vmatpush1.msra.mxu0 0.0
  %4103 = vmatprep.subr.mxu0 0.0
  %4104 = vmatpush1.msra.mxu0 0.0
  %4105 = vmatprep.subr.mxu0 0.0
  %4106 = vmatpush1.msra.mxu0 0.0
  %4107 = vmatprep.subr.mxu0 0.0
  %4108 = vmatpush1.msra.mxu0 0.0
  %4109 = vmatprep.subr.mxu0 0.0
  %4110 = vmatpush1.msra.mxu0 0.0
  %4111 = vmatprep.subr.mxu0 0.0
  %4112 = vmatpush1.msra.mxu0 0.0
  %4113 = vmatprep.subr.mxu0 0.0
  %4114 = vmatpush1.msra.mxu0 0.0
  %4115 = vmatprep.subr.mxu0 0.0
  %4116 = vmatpush1.msra.mxu0 0.0
  %4117 = vmatprep.subr.mxu0 0.0
  %4118 = vmatpush1.msra.mxu0 0.0
  %4119 = vmatprep.subr.mxu0 0.0
  %4120 = vmatpush1.msra.mxu0 0.0
  %4121 = vmatprep.subr.mxu0 0.0
  %4122 = vmatpush1.msra.mxu0 0.0
  %4123 = vmatprep.subr.mxu0 0.0
  %4124 = vmatpush1.msra.mxu0 0.0
  %4125 = vmatprep.subr.mxu0 0.0
  %4126 = vmatpush1.msra.mxu0 0.0
  %4127 = vmatprep.subr.mxu0 0.0
  %4128 = vmatpush1.msra.mxu0 0.0
  %4129 = vmatprep.subr.mxu0 0.0
  %4130 = vmatpush1.msra.mxu0 0.0
  %4131 = vmatprep.subr.mxu0 0.0
  %4132 = vmatpush1.msra.mxu0 0.0
  %4133 = vmatprep.subr.mxu0 0.0
  %4134 = vmatpush1.msra.mxu0 0.0
  %4135 = vmatprep.subr.mxu0 0.0
  %4136 = vmatpush1.msra.mxu0 0.0
  %4137 = vmatprep.subr.mxu0 0.0
  %4138 = vmatpush1.msra.mxu0 0.0
  %4139 = vmatprep.subr.mxu0 0.0
  %4140 = vmatpush1.msra.mxu0 0.0
  %4141 = vmatprep.subr.mxu0 0.0
  %4142 = vmatpush1.msra.mxu0 0.0
  %4143 = vmatprep.subr.mxu0 0.0
  %4144 = vmatpush1.msra.mxu0 0.0
  %4145 = vmatprep.subr.mxu0 0.0
  %4146 = vmatpush1.msra.mxu0 0.0
  %4147 = vmatprep.subr.mxu0 0.0
  %4148 = vmatpush1.msra.mxu0 0.0
  %4149 = vmatprep.subr.mxu0 0.0
  %4150 = vmatpush1.msra.mxu0 0.0
  %4151 = vmatprep.subr.mxu0 0.0
  %4152 = vmatpush1.msra.mxu0 0.0
  %4153 = vmatprep.subr.mxu0 0.0
  %4154 = vmatpush1.msra.mxu0 0.0
  %4155 = vmatprep.mubr.f32.mxu0 0.0
  %4156 = vmatmul.mubr.f32.gmra.mrb[0].mxu0 %v4089
  %v4157 = vpop.f32.mrb[0].mxu0
  %v4158 = vadd.f32 %v4084, %v4157
  %v4159 = vpop.f32.mrb[0].mxu0
  %4160 = vdwg.mxu0
  %vm4161 = vcmask 15360
  %4162 = vst.msk [vmem:[%s11] sm:$0xff] %vm4161, %v4158
  // Predicated region
  $region46: #{tpu_custom_call.1} parent=0 // pred_check
    _
  $region47: #{tpu_custom_call.1} parent=0 // pred_check_branch
    %4164 = sbr.rel (0) target = $region49
  $region48: #{tpu_custom_call.1} parent=0 // pred_region
    _
  $region49: #{tpu_custom_call.1} parent=0 // pred_fallthru
    _
  // Predicated region
  $region50: #{tpu_custom_call.1} parent=0 // pred_check
    _
  $region51: #{tpu_custom_call.1} parent=0 // pred_check_branch
    %4166 = sbr.rel (0) target = $region53
  $region52: #{tpu_custom_call.1} parent=0 // pred_region
    _
  $region53: #{tpu_custom_call.1} parent=0 // pred_fallthru
    _

</llo_original>
